<compile_context>
chip_gen: v5e
topology: v5e:2x2
jax: 0.10.0
libtpu: 0.0.40
codegen_flags: <defaults>
</compile_context>

<pallas_src>
import math
import jax
import jax.numpy as jnp
from jax import lax
from jax.experimental import pallas as pl
from jax.experimental.pallas import tpu as pltpu

EPS = 1e-5
INV_SQRT2 = 1.0 / math.sqrt(2.0)

# Abramowitz-Stegun 7.1.26 erf coefficients (max abs error ~1.5e-7).
_A1 = 0.254829592
_A2 = -0.284496736
_A3 = 1.421413741
_A4 = -1.453152027
_A5 = 1.061405429
_P = 0.3275911


def _gelu_erf(z):
    """Exact-form GELU, 0.5*z*(1+erf(z/sqrt2)), with an EUP-friendly erf.

    erf(|x|) ~= 1 - poly(t) * exp(-x^2),  t = 1/(1 + p*|x|).
    exp() and the reciprocal go to the EUP slot; only the short Horner
    polynomial stays on the VALU.  Max erf error ~1.5e-7 (far inside the
    bf16-MXU error floor already accepted for this kernel).
    """
    x = z * INV_SQRT2
    ax = jnp.abs(x)
    t = pl.reciprocal(1.0 + _P * ax, approx=True)
    poly = ((((_A5 * t + _A4) * t + _A3) * t + _A2) * t + _A1) * t
    erf_abs = 1.0 - poly * jnp.exp(-(ax * ax))
    erf = jnp.where(x < 0.0, -erf_abs, erf_abs)
    return 0.5 * z * (1.0 + erf)


def fused_kernel(x1_ref, x2_ref, gamma_ref, beta_ref, w_ref, b_ref, o_ref):
    # --- add + layernorm (over last dim, C=512), all in f32 on the VPU ---
    x = x1_ref[...].astype(jnp.float32) + x2_ref[...].astype(jnp.float32)
    mean = jnp.mean(x, axis=-1, keepdims=True)
    cen = x - mean
    var = jnp.mean(cen * cen, axis=-1, keepdims=True)
    y = (cen * lax.rsqrt(var + EPS)) * gamma_ref[...] + beta_ref[...]

    # --- linear: bf16 operands on the MXU, f32 accumulation ---
    z = jnp.dot(y.astype(jnp.bfloat16), w_ref[...],
                preferred_element_type=jnp.float32)      # (M, TN) f32
    z = z + b_ref[...]

    # --- GELU (erf form, approximate='none' semantics), f32 ---
    o_ref[...] = _gelu_erf(z)


def _default_tn():
    """tn=512 (grid=4) so v7x's two TensorCores each pipeline 2 steps;
    tn=1024 (grid=2) on single-core, HBM-bound v5e to save per-step overhead."""
    try:
        kind = jax.devices()[0].device_kind.lower()
        if "v5" in kind:
            return 1024
    except Exception:
        pass
    return 512


def add_layernorm_linear_gelu(x1, x2, gamma, beta, w, b, *, tn=None):
    """x1, x2: (B, H, W, C) (f32 or bf16). gamma/beta: (C,). w: (C, N)
    (already transposed from PyTorch's (N, C)). b: (N,).
    Returns (B, H, W, N) in float32."""
    if tn is None:
        tn = _default_tn()
    B, H, W_, C = x1.shape
    N = w.shape[1]
    M = B * H * W_
    assert N % tn == 0

    # No wrapper-side dtype casts on the big activations (that would just add
    # an extra un-hidden HBM pass); the kernel upcasts whatever dtype arrives.
    x1f = x1.reshape(M, C)
    x2f = x2.reshape(M, C)
    gamma2 = gamma.reshape(1, C).astype(jnp.float32)
    beta2 = beta.reshape(1, C).astype(jnp.float32)
    w_bf16 = w.astype(jnp.bfloat16)            # halve the dominant HBM stream
    b2 = b.reshape(1, N).astype(jnp.float32)

    grid = (N // tn,)

    in_bytes = x1f.dtype.itemsize
    cost = pl.CostEstimate(
        flops=2 * M * C * N,
        transcendentals=2 * M * N,             # exp + reciprocal per output
        bytes_accessed=(2 * M * C * in_bytes   # x1, x2
                        + 2 * C * 4            # gamma, beta
                        + C * N * 2            # weight (bf16)
                        + N * 4                # bias
                        + M * N * 4))          # output (f32)

    out = pl.pallas_call(
        fused_kernel,
        out_shape=jax.ShapeDtypeStruct((M, N), jnp.float32),
        grid_spec=pltpu.PrefetchScalarGridSpec(
            num_scalar_prefetch=0,
            grid=grid,
            in_specs=[
                pl.BlockSpec((M, C), lambda j: (0, 0)),   # x1 (full, resident)
                pl.BlockSpec((M, C), lambda j: (0, 0)),   # x2 (full, resident)
                pl.BlockSpec((1, C), lambda j: (0, 0)),   # gamma
                pl.BlockSpec((1, C), lambda j: (0, 0)),   # beta
                pl.BlockSpec((C, tn), lambda j: (0, j)),  # weight tile (bf16)
                pl.BlockSpec((1, tn), lambda j: (0, j)),  # bias tile
            ],
            out_specs=pl.BlockSpec((M, tn), lambda j: (0, j)),
        ),
        compiler_params=pltpu.CompilerParams(
            dimension_semantics=("parallel",)),
        cost_estimate=cost,
    )(x1f, x2f, gamma2, beta2, w_bf16, b2)

    return out.reshape(B, H, W_, N)


def reference(x1, x2, gamma, beta, w, b):
    x = x1.astype(jnp.float32) + x2.astype(jnp.float32)
    mean = jnp.mean(x, axis=-1, keepdims=True)
    var = jnp.mean((x - mean) ** 2, axis=-1, keepdims=True)
    xn = (x - mean) / jnp.sqrt(var + EPS)
    y = xn * gamma + beta
    z = jnp.einsum("bhwc,cn->bhwn", y, w) + b
    return z * 0.5 * (1.0 + lax.erf(z / math.sqrt(2.0)))


if __name__ == "__main__":
    key = jax.random.PRNGKey(0)
    k1, k2, kw, kb = jax.random.split(key, 4)

    B, H, W_, C, N = 1, 14, 14, 512, 2048

    x134 = jax.random.normal(k1, (B, H, W_, C), dtype=jnp.float32)
    x148 = jax.random.normal(k2, (B, H, W_, C), dtype=jnp.float32)

    # LayerNorm params (PyTorch default init: weight=1, bias=0)
    gamma = jnp.ones((C,), dtype=jnp.float32)
    beta = jnp.zeros((C,), dtype=jnp.float32)

    # Linear params, deterministic init (kaiming-uniform-ish bound like torch)
    bound = 1.0 / math.sqrt(C)
    w_t = jax.random.uniform(kw, (C, N), minval=-bound, maxval=bound,
                             dtype=jnp.float32)   # (in, out) = W.T of torch
    bias = jax.random.uniform(kb, (N,), minval=-bound, maxval=bound,
                              dtype=jnp.float32)

    out = add_layernorm_linear_gelu(x134, x148, gamma, beta, w_t, bias)
    out = jax.block_until_ready(out)

    ref = reference(x134, x148, gamma, beta, w_t, bias)
    assert out.shape == (B, H, W_, N)
    # bf16 MXU operands (K=512, f32 accumulate) dominate the error budget
    # (~1e-3..1e-2 abs); the A&S erf adds only ~1.5e-7.
    assert jnp.allclose(out, ref, atol=5e-2, rtol=5e-2), "mismatch vs reference"

    print("KERNEL_OK")
</pallas_src>

<mosaic_0001>
module attributes {stable_mosaic.version = 11 : i64} {
  func.func @fused_kernel(%arg0: i32, %arg1: memref<196x512xf32, #tpu.memory_space<vmem>>, %arg2: memref<196x512xf32, #tpu.memory_space<vmem>>, %arg3: memref<1x512xf32, #tpu.memory_space<vmem>>, %arg4: memref<1x512xf32, #tpu.memory_space<vmem>>, %arg5: memref<512x512xbf16, #tpu.memory_space<vmem>>, %arg6: memref<1x512xf32, #tpu.memory_space<vmem>>, %arg7: memref<196x512xf32, #tpu.memory_space<vmem>>) attributes {dimension_semantics = [#tpu.dimension_semantics<parallel>], iteration_bounds = array<i64: 4>, scalar_prefetch = 0 : i64, scratch_operands = 0 : i64, tpu.core_type = #tpu.core_type<tc>, window_params = [{pipeline_mode = #tpu.pipeline_mode<synchronous>, transform_indices = @transform_0, window_bounds = array<i64: 196, 512>}, {pipeline_mode = #tpu.pipeline_mode<synchronous>, transform_indices = @transform_1, window_bounds = array<i64: 196, 512>}, {pipeline_mode = #tpu.pipeline_mode<synchronous>, transform_indices = @transform_2, window_bounds = array<i64: 1, 512>}, {pipeline_mode = #tpu.pipeline_mode<synchronous>, transform_indices = @transform_3, window_bounds = array<i64: 1, 512>}, {transform_indices = @transform_4, window_bounds = array<i64: 512, 512>}, {transform_indices = @transform_5, window_bounds = array<i64: 1, 512>}, {transform_indices = @transform_6, window_bounds = array<i64: 196, 512>}]} {
    %c0 = arith.constant 0 : index
    %c0_0 = arith.constant 0 : index
    %0 = vector.load %arg1[%c0, %c0_0] : memref<196x512xf32, #tpu.memory_space<vmem>>, vector<196x512xf32>
    %c0_1 = arith.constant 0 : index
    %c0_2 = arith.constant 0 : index
    %1 = vector.load %arg2[%c0_1, %c0_2] : memref<196x512xf32, #tpu.memory_space<vmem>>, vector<196x512xf32>
    %2 = arith.addf %0, %1 : vector<196x512xf32>
    %cst = arith.constant dense<0.000000e+00> : vector<196xf32>
    %3 = vector.multi_reduction <add>, %2, %cst [1] : vector<196x512xf32> to vector<196xf32>
    %4 = vector.shape_cast %3 : vector<196xf32> to vector<196x1xf32>
    %cst_3 = arith.constant 5.120000e+02 : f32
    %5 = vector.broadcast %cst_3 : f32 to vector<196x1xf32>
    %6 = arith.divf %4, %5 : vector<196x1xf32>
    %7 = vector.broadcast %6 : vector<196x1xf32> to vector<196x512xf32>
    %8 = arith.subf %2, %7 : vector<196x512xf32>
    %9 = arith.mulf %8, %8 : vector<196x512xf32>
    %cst_4 = arith.constant dense<0.000000e+00> : vector<196xf32>
    %10 = vector.multi_reduction <add>, %9, %cst_4 [1] : vector<196x512xf32> to vector<196xf32>
    %11 = vector.shape_cast %10 : vector<196xf32> to vector<196x1xf32>
    %cst_5 = arith.constant 5.120000e+02 : f32
    %12 = vector.broadcast %cst_5 : f32 to vector<196x1xf32>
    %13 = arith.divf %11, %12 : vector<196x1xf32>
    %cst_6 = arith.constant 9.99999974E-6 : f32
    %14 = vector.broadcast %cst_6 : f32 to vector<196x1xf32>
    %15 = arith.addf %13, %14 : vector<196x1xf32>
    %16 = math.rsqrt %15 : vector<196x1xf32>
    %17 = vector.broadcast %16 : vector<196x1xf32> to vector<196x512xf32>
    %18 = arith.mulf %8, %17 : vector<196x512xf32>
    %c0_7 = arith.constant 0 : index
    %c0_8 = arith.constant 0 : index
    %19 = vector.load %arg3[%c0_7, %c0_8] : memref<1x512xf32, #tpu.memory_space<vmem>>, vector<1x512xf32>
    %20 = vector.broadcast %19 : vector<1x512xf32> to vector<196x512xf32>
    %21 = arith.mulf %18, %20 : vector<196x512xf32>
    %c0_9 = arith.constant 0 : index
    %c0_10 = arith.constant 0 : index
    %22 = vector.load %arg4[%c0_9, %c0_10] : memref<1x512xf32, #tpu.memory_space<vmem>>, vector<1x512xf32>
    %23 = vector.broadcast %22 : vector<1x512xf32> to vector<196x512xf32>
    %24 = arith.addf %21, %23 : vector<196x512xf32>
    %25 = arith.truncf %24 : vector<196x512xf32> to vector<196x512xbf16>
    %c0_11 = arith.constant 0 : index
    %c0_12 = arith.constant 0 : index
    %26 = vector.load %arg5[%c0_11, %c0_12] : memref<512x512xbf16, #tpu.memory_space<vmem>>, vector<512x512xbf16>
    %cst_13 = arith.constant dense<0.000000e+00> : vector<196x512xf32>
    %27 = tpu.matmul %25, %26, %cst_13 {dimension_numbers = #tpu.dot_dimension_numbers<[1], [0], [0], [1], [0, 0, 1, 1], [], []>} : vector<196x512xbf16>, vector<512x512xbf16>, vector<196x512xf32> -> vector<196x512xf32>
    %c0_14 = arith.constant 0 : index
    %c0_15 = arith.constant 0 : index
    %28 = vector.load %arg6[%c0_14, %c0_15] : memref<1x512xf32, #tpu.memory_space<vmem>>, vector<1x512xf32>
    %29 = vector.broadcast %28 : vector<1x512xf32> to vector<196x512xf32>
    %30 = arith.addf %27, %29 : vector<196x512xf32>
    %cst_16 = arith.constant 0.707106769 : f32
    %31 = vector.broadcast %cst_16 : f32 to vector<196x512xf32>
    %32 = arith.mulf %30, %31 : vector<196x512xf32>
    %33 = math.absf %32 : vector<196x512xf32>
    %cst_17 = arith.constant 0.327591091 : f32
    %34 = vector.broadcast %cst_17 : f32 to vector<196x512xf32>
    %35 = arith.mulf %34, %33 : vector<196x512xf32>
    %cst_18 = arith.constant 1.000000e+00 : f32
    %36 = vector.broadcast %cst_18 : f32 to vector<196x512xf32>
    %37 = arith.addf %36, %35 : vector<196x512xf32>
    %38 = tpu.reciprocal %37 {approx = true} : vector<196x512xf32> -> vector<196x512xf32>
    %cst_19 = arith.constant 1.06140542 : f32
    %39 = vector.broadcast %cst_19 : f32 to vector<196x512xf32>
    %40 = arith.mulf %39, %38 : vector<196x512xf32>
    %cst_20 = arith.constant -1.45315206 : f32
    %41 = vector.broadcast %cst_20 : f32 to vector<196x512xf32>
    %42 = arith.addf %40, %41 : vector<196x512xf32>
    %43 = arith.mulf %42, %38 : vector<196x512xf32>
    %cst_21 = arith.constant 1.42141378 : f32
    %44 = vector.broadcast %cst_21 : f32 to vector<196x512xf32>
    %45 = arith.addf %43, %44 : vector<196x512xf32>
    %46 = arith.mulf %45, %38 : vector<196x512xf32>
    %cst_22 = arith.constant -0.284496725 : f32
    %47 = vector.broadcast %cst_22 : f32 to vector<196x512xf32>
    %48 = arith.addf %46, %47 : vector<196x512xf32>
    %49 = arith.mulf %48, %38 : vector<196x512xf32>
    %cst_23 = arith.constant 0.254829586 : f32
    %50 = vector.broadcast %cst_23 : f32 to vector<196x512xf32>
    %51 = arith.addf %49, %50 : vector<196x512xf32>
    %52 = arith.mulf %51, %38 : vector<196x512xf32>
    %53 = arith.mulf %33, %33 : vector<196x512xf32>
    %cst_24 = arith.constant 0.000000e+00 : f32
    %54 = vector.broadcast %cst_24 : f32 to vector<196x512xf32>
    %55 = arith.subf %54, %53 : vector<196x512xf32>
    %56 = math.exp %55 : vector<196x512xf32>
    %57 = arith.mulf %52, %56 : vector<196x512xf32>
    %cst_25 = arith.constant 1.000000e+00 : f32
    %58 = vector.broadcast %cst_25 : f32 to vector<196x512xf32>
    %59 = arith.subf %58, %57 : vector<196x512xf32>
    %cst_26 = arith.constant 0.000000e+00 : f32
    %60 = vector.broadcast %cst_26 : f32 to vector<196x512xf32>
    %61 = arith.cmpf olt, %32, %60 : vector<196x512xf32>
    %cst_27 = arith.constant 0.000000e+00 : f32
    %62 = vector.broadcast %cst_27 : f32 to vector<196x512xf32>
    %63 = arith.subf %62, %59 : vector<196x512xf32>
    %64 = arith.select %61, %63, %59 : vector<196x512xi1>, vector<196x512xf32>
    %cst_28 = arith.constant 5.000000e-01 : f32
    %65 = vector.broadcast %cst_28 : f32 to vector<196x512xf32>
    %66 = arith.mulf %65, %30 : vector<196x512xf32>
    %cst_29 = arith.constant 1.000000e+00 : f32
    %67 = vector.broadcast %cst_29 : f32 to vector<196x512xf32>
    %68 = arith.addf %67, %64 : vector<196x512xf32>
    %69 = arith.mulf %66, %68 : vector<196x512xf32>
    %c0_30 = arith.constant 0 : index
    %c0_31 = arith.constant 0 : index
    %70 = vector.load %arg7[%c0_30, %c0_31] : memref<196x512xf32, #tpu.memory_space<vmem>>, vector<196x512xf32>
    tpu.vector_store %arg7[%c0_30, %c0_31], %69 {strides = array<i32>} : memref<196x512xf32, #tpu.memory_space<vmem>>, vector<196x512xf32>,
    return
  }
  func.func @transform_0(%arg0: i32) -> (i32, i32) {
    %c0_i32 = arith.constant 0 : i32
    %c0_i32_0 = arith.constant 0 : i32
    %c0_i32_1 = arith.constant 0 : i32
    return %c0_i32, %c0_i32_0 : i32, i32
  }
  func.func @transform_1(%arg0: i32) -> (i32, i32) {
    %c0_i32 = arith.constant 0 : i32
    %c0_i32_0 = arith.constant 0 : i32
    %c0_i32_1 = arith.constant 0 : i32
    return %c0_i32, %c0_i32_0 : i32, i32
  }
  func.func @transform_2(%arg0: i32) -> (i32, i32) {
    %c0_i32 = arith.constant 0 : i32
    %c0_i32_0 = arith.constant 0 : i32
    %c0_i32_1 = arith.constant 0 : i32
    return %c0_i32, %c0_i32_0 : i32, i32
  }
  func.func @transform_3(%arg0: i32) -> (i32, i32) {
    %c0_i32 = arith.constant 0 : i32
    %c0_i32_0 = arith.constant 0 : i32
    %c0_i32_1 = arith.constant 0 : i32
    return %c0_i32, %c0_i32_0 : i32, i32
  }
  func.func @transform_4(%arg0: i32) -> (i32, i32) {
    %c0_i32 = arith.constant 0 : i32
    %c0_i32_0 = arith.constant 0 : i32
    return %c0_i32, %arg0 : i32, i32
  }
  func.func @transform_5(%arg0: i32) -> (i32, i32) {
    %c0_i32 = arith.constant 0 : i32
    %c0_i32_0 = arith.constant 0 : i32
    return %c0_i32, %arg0 : i32, i32
  }
  func.func @transform_6(%arg0: i32) -> (i32, i32) {
    %c0_i32 = arith.constant 0 : i32
    %c0_i32_0 = arith.constant 0 : i32
    return %c0_i32, %arg0 : i32, i32
  }
}

</mosaic_0001>

<llo_original>
// kernel: tpu_custom_call.1
$region0: #{tpu_custom_call.1}
  #allocation0 [shape = 'u32[]', space=smem, size = 0x4, offset = 0x4, fixed_abs, tag = 'smem constant byte address 0x4 - core index']
  #allocation1 [shape = 'u32[72,128]{1,0:T(1,128)}', space=vmem, size = 0x9000, scoped, tag = 'internal scratch']
  %s0 = inlined_call_operand.hbm [shape: f32[196,512], index: 0, kind: input, shape index: {}]
  %s1 = inlined_call_operand.hbm [shape: f32[196,512], index: 1, kind: input, shape index: {}]
  %s2 = inlined_call_operand.hbm [shape: f32[1,512], index: 2, kind: input, shape index: {}]
  %s3 = inlined_call_operand.hbm [shape: f32[1,512], index: 3, kind: input, shape index: {}]
  %s4 = inlined_call_operand.hbm [shape: bf16[512,2048], index: 4, kind: input, shape index: {}]
  %s5 = inlined_call_operand.hbm [shape: f32[1,2048], index: 5, kind: input, shape index: {}]
  %s6 = inlined_call_operand.hbm [shape: f32[196,2048], index: 6, kind: output, shape index: {}]
  %s7 = sld [smem:[#allocation0]]
  $region81: #{tpu_custom_call.1} parent=0
    _
  %s9 = ssub.s32 1, %s7
  %s10 = scalar_select 0, %s9, %s7
  $region1: #{tpu_custom_call.1} parent=0
    #allocation2 [shape = 'u8[409600]{0}', space=vmem, size = 0x64000, scoped, tag = 'input window, operand 0, single buffered']
    #allocation3 [shape = 's32[2]{0}', space=sflag, size = 0x8, scoped, tag = 'scoped memory for tpu_custom_call.1']
    #allocation4 [shape = 's32[2]{0}', space=sflag, size = 0x8, scoped, tag = 'scoped memory for tpu_custom_call.1']
    #allocation5 [shape = 'u8[409600]{0}', space=vmem, size = 0x64000, scoped, tag = 'input window, operand 1, single buffered']
    #allocation6 [shape = 's32[1]{0}', space=sflag, size = 0x4, scoped, tag = 'scoped memory for tpu_custom_call.1']
    #allocation7 [shape = 'u8[2048]{0}', space=vmem, size = 0x800, scoped, tag = 'input window, operand 2, single buffered']
    #allocation8 [shape = 'u8[2048]{0}', space=vmem, size = 0x800, scoped, tag = 'input window, operand 3, single buffered']
    #allocation9 [shape = 's32[1]{0}', space=sflag, size = 0x4, scoped, tag = 'scoped memory for tpu_custom_call.1']
    #allocation10 [shape = 'u8[1048576]{0}', space=vmem, size = 0x100000, scoped, tag = 'input window, operand 4']
    #allocation11 [shape = 'u8[4096]{0}', space=vmem, size = 0x1000, scoped, tag = 'input window, operand 5']
    #allocation12 [shape = 'u8[819200]{0}', space=vmem, size = 0xc8000, scoped, tag = 'output window, operand 0']
    %11 = vsyncpa [#allocation3], 0
    %12 = vsyncpa [#allocation6], 0
    %13 = vsyncpa [#allocation9], 0
    %14 = vsyncpa [#allocation4], 0
    %s15 = scalar_lea.sflag [#allocation4], 1
    %16 = vsyncpa %s15, 0
    loop: start=0, step=1, limit=6
    $region2: #{tpu_custom_call.1} parent=1 // loop_pre_header
      _
    $region3: #{tpu_custom_call.1} parent=1 // loop_header
      %s18 = sphi 0, %s22
      %p19 = scmp.ge.s32.totalorder %s18, 6
      %s26 = sphi 0, %s26
      %s28 = sphi 0, %s26
      %s29 = sphi 0, %s28
      %s43 = sphi 0, %s29
      %s47 = sphi 0, %s47
      %s49 = sphi 0, %s47
      %s50 = sphi 0, %s49
      %s64 = sphi 0, %s50
      %s68 = sphi 0, %s68
      %s70 = sphi 0, %s68
      %s71 = sphi 0, %s70
      %s85 = sphi 0, %s71
      %s89 = sphi 0, %s89
      %s91 = sphi 0, %s89
      %s92 = sphi 0, %s91
      %s106 = sphi 0, %s92
      %s112 = sphi 0, %s114
      %s115 = sphi 0, %s112
      %s116 = sphi 0, %s115
      %s132 = sphi 0, %s116
      %s138 = sphi 0, %s140
      %s141 = sphi 0, %s138
      %s142 = sphi 0, %s141
      %s158 = sphi 0, %s142
      %s164 = sphi 0, %s166
      %s167 = sphi 0, %s164
      %s168 = sphi 0, %s167
      %s184 = sphi 0, %s168
    $region4: #{tpu_custom_call.1} parent=1 // loop_header_branch
      %21 = sbr.rel (%p19) target = $region8
    $region5: #{tpu_custom_call.1} parent=1 // loop_body
      %s23 = ssub.s32 %s18, 1
      %s24 = ssub.s32 %s18, 2
      %s25 = sadd.s32 %s18, 1
      %s27 = sadd.s32 %s26, 1
      %p30 = scmp.eq.s32.totalorder %s18, 3
      %p31 = scmp.ne.s32.totalorder %s26, %s28
      %p32 = scmp.eq.s32.totalorder %s18, 0
      %p33 = por %p31, %p32
      %p34 = scmp.ne.s32.totalorder %s26, %s28
      %p35 = scmp.eq.s32.totalorder %s23, 3
      %p36 = por %p34, %p35
      %p37 = scmp.ne.s32.totalorder %s28, %s29
      %p38 = scmp.eq.s32.totalorder %s23, 0
      %p39 = por %p37, %p38
      %p40 = scmp.ne.s32.totalorder %s28, %s29
      %p41 = scmp.eq.s32.totalorder %s24, 3
      %p42 = por %p40, %p41
      %p44 = scmp.ne.s32.totalorder %s29, %s43
      %p45 = scmp.eq.s32.totalorder %s24, 0
      %p46 = por %p44, %p45
      %s48 = sadd.s32 %s47, 1
      %p51 = scmp.eq.s32.totalorder %s18, 3
      %p52 = scmp.ne.s32.totalorder %s47, %s49
      %p53 = scmp.eq.s32.totalorder %s18, 0
      %p54 = por %p52, %p53
      %p55 = scmp.ne.s32.totalorder %s47, %s49
      %p56 = scmp.eq.s32.totalorder %s23, 3
      %p57 = por %p55, %p56
      %p58 = scmp.ne.s32.totalorder %s49, %s50
      %p59 = scmp.eq.s32.totalorder %s23, 0
      %p60 = por %p58, %p59
      %p61 = scmp.ne.s32.totalorder %s49, %s50
      %p62 = scmp.eq.s32.totalorder %s24, 3
      %p63 = por %p61, %p62
      %p65 = scmp.ne.s32.totalorder %s50, %s64
      %p66 = scmp.eq.s32.totalorder %s24, 0
      %p67 = por %p65, %p66
      %s69 = sadd.s32 %s68, 1
      %p72 = scmp.eq.s32.totalorder %s18, 3
      %p73 = scmp.ne.s32.totalorder %s68, %s70
      %p74 = scmp.eq.s32.totalorder %s18, 0
      %p75 = por %p73, %p74
      %p76 = scmp.ne.s32.totalorder %s68, %s70
      %p77 = scmp.eq.s32.totalorder %s23, 3
      %p78 = por %p76, %p77
      %p79 = scmp.ne.s32.totalorder %s70, %s71
      %p80 = scmp.eq.s32.totalorder %s23, 0
      %p81 = por %p79, %p80
      %p82 = scmp.ne.s32.totalorder %s70, %s71
      %p83 = scmp.eq.s32.totalorder %s24, 3
      %p84 = por %p82, %p83
      %p86 = scmp.ne.s32.totalorder %s71, %s85
      %p87 = scmp.eq.s32.totalorder %s24, 0
      %p88 = por %p86, %p87
      %s90 = sadd.s32 %s89, 1
      %p93 = scmp.eq.s32.totalorder %s18, 3
      %p94 = scmp.ne.s32.totalorder %s89, %s91
      %p95 = scmp.eq.s32.totalorder %s18, 0
      %p96 = por %p94, %p95
      %p97 = scmp.ne.s32.totalorder %s89, %s91
      %p98 = scmp.eq.s32.totalorder %s23, 3
      %p99 = por %p97, %p98
      %p100 = scmp.ne.s32.totalorder %s91, %s92
      %p101 = scmp.eq.s32.totalorder %s23, 0
      %p102 = por %p100, %p101
      %p103 = scmp.ne.s32.totalorder %s91, %s92
      %p104 = scmp.eq.s32.totalorder %s24, 3
      %p105 = por %p103, %p104
      %p107 = scmp.ne.s32.totalorder %s92, %s106
      %p108 = scmp.eq.s32.totalorder %s24, 0
      %p109 = por %p107, %p108
      %s110 = ssub.s32 %s18, %s25
      %p111 = scmp.eq.s32.totalorder %s110, 0
      %s113 = sadd.s32 %s112, 1
      %s114 = scalar_select %p111, %s112, %s113
      %p117 = pneg %p111
      %p118 = scmp.eq.s32.totalorder %s18, 3
      %p119 = por %p117, %p118
      %p120 = scmp.ne.s32.totalorder %s112, %s115
      %p121 = scmp.eq.s32.totalorder %s18, 0
      %p122 = por %p120, %p121
      %p123 = scmp.ne.s32.totalorder %s112, %s115
      %p124 = scmp.eq.s32.totalorder %s23, 3
      %p125 = por %p123, %p124
      %p126 = scmp.ne.s32.totalorder %s115, %s116
      %p127 = scmp.eq.s32.totalorder %s23, 0
      %p128 = por %p126, %p127
      %p129 = scmp.ne.s32.totalorder %s115, %s116
      %p130 = scmp.eq.s32.totalorder %s24, 3
      %p131 = por %p129, %p130
      %p133 = scmp.ne.s32.totalorder %s116, %s132
      %p134 = scmp.eq.s32.totalorder %s24, 0
      %p135 = por %p133, %p134
      %s136 = ssub.s32 %s18, %s25
      %p137 = scmp.eq.s32.totalorder %s136, 0
      %s139 = sadd.s32 %s138, 1
      %s140 = scalar_select %p137, %s138, %s139
      %p143 = pneg %p137
      %p144 = scmp.eq.s32.totalorder %s18, 3
      %p145 = por %p143, %p144
      %p146 = scmp.ne.s32.totalorder %s138, %s141
      %p147 = scmp.eq.s32.totalorder %s18, 0
      %p148 = por %p146, %p147
      %p149 = scmp.ne.s32.totalorder %s138, %s141
      %p150 = scmp.eq.s32.totalorder %s23, 3
      %p151 = por %p149, %p150
      %p152 = scmp.ne.s32.totalorder %s141, %s142
      %p153 = scmp.eq.s32.totalorder %s23, 0
      %p154 = por %p152, %p153
      %p155 = scmp.ne.s32.totalorder %s141, %s142
      %p156 = scmp.eq.s32.totalorder %s24, 3
      %p157 = por %p155, %p156
      %p159 = scmp.ne.s32.totalorder %s142, %s158
      %p160 = scmp.eq.s32.totalorder %s24, 0
      %p161 = por %p159, %p160
      %s162 = ssub.s32 %s18, %s25
      %p163 = scmp.eq.s32.totalorder %s162, 0
      %s165 = sadd.s32 %s164, 1
      %s166 = scalar_select %p163, %s164, %s165
      %p169 = pneg %p163
      %p170 = scmp.eq.s32.totalorder %s18, 3
      %p171 = por %p169, %p170
      %p172 = scmp.ne.s32.totalorder %s164, %s167
      %p173 = scmp.eq.s32.totalorder %s18, 0
      %p174 = por %p172, %p173
      %p175 = scmp.ne.s32.totalorder %s164, %s167
      %p176 = scmp.eq.s32.totalorder %s23, 3
      %p177 = por %p175, %p176
      %p178 = scmp.ne.s32.totalorder %s167, %s168
      %p179 = scmp.eq.s32.totalorder %s23, 0
      %p180 = por %p178, %p179
      %p181 = scmp.ne.s32.totalorder %s167, %s168
      %p182 = scmp.eq.s32.totalorder %s24, 3
      %p183 = por %p181, %p182
      %p185 = scmp.ne.s32.totalorder %s168, %s184
      %p186 = scmp.eq.s32.totalorder %s24, 0
      %p187 = por %p185, %p186
      %p188 = scmp.le.s32.totalorder 1, %s18
      %p189 = scmp.lt.s32.totalorder %s18, 5
      %p190 = pnand %p188, %p189
      %p191 = pneg %p190
      // Predicated region
      $region9: #{tpu_custom_call.1} parent=5 // pred_check
        _
      $region10: #{tpu_custom_call.1} parent=5 // pred_check_branch
        %193 = sbr.rel (%p190) target = $region12
      $region11: #{tpu_custom_call.1} parent=5 // pred_region
        %s194 = ssub.s32 %s18, 1
        // Predicated region
        $region13: #{tpu_custom_call.1} parent=11 // pred_check
          %p195 = pneg %p39
        $region14: #{tpu_custom_call.1} parent=11 // pred_check_branch
          %197 = sbr.rel (%p195) target = $region16
        $region15: #{tpu_custom_call.1} parent=11 // pred_region
          %199 = vsyncadd [#allocation3], 0
          %s200 = sshll.u32 %s0, 4
          %s201 = int_to_ptr.hbm [resolvable:$true] %s200
          %s202 = sshll.u32 [#allocation2], 4
          %s203 = int_to_ptr.vmem [resolvable:$true] %s202
          %208 = dma.hbm_to_vmem [thread:$0]  %s201, 12800, %s203, [#allocation3], 512, 512, 32
        $region16: #{tpu_custom_call.1} parent=11 // pred_fallthru
          _
        // Predicated region
        $region17: #{tpu_custom_call.1} parent=11 // pred_check
          %p209 = pneg %p60
        $region18: #{tpu_custom_call.1} parent=11 // pred_check_branch
          %211 = sbr.rel (%p209) target = $region20
        $region19: #{tpu_custom_call.1} parent=11 // pred_region
          %213 = vsyncadd [#allocation6], 0
          %s214 = sshll.u32 %s1, 4
          %s215 = int_to_ptr.hbm [resolvable:$true] %s214
          %s216 = sshll.u32 [#allocation5], 4
          %s217 = int_to_ptr.vmem [resolvable:$true] %s216
          %222 = dma.hbm_to_vmem [thread:$0]  %s215, 12800, %s217, [#allocation6], 512, 512, 32
        $region20: #{tpu_custom_call.1} parent=11 // pred_fallthru
          _
        // Predicated region
        $region21: #{tpu_custom_call.1} parent=11 // pred_check
          %p223 = pneg %p81
        $region22: #{tpu_custom_call.1} parent=11 // pred_check_branch
          %225 = sbr.rel (%p223) target = $region24
        $region23: #{tpu_custom_call.1} parent=11 // pred_region
          %227 = vsyncadd [#allocation6], 0
          %s229 = sshll.u32 %s2, 4
          %s230 = int_to_ptr.hbm [resolvable:$true] %s229
          %s231 = sshll.u32 [#allocation7], 4
          %s232 = int_to_ptr.vmem [resolvable:$true] %s231
          %234 = dma.hbm_to_vmem [thread:$0]  %s230, 64, %s232, [#allocation6]
        $region24: #{tpu_custom_call.1} parent=11 // pred_fallthru
          _
        // Predicated region
        $region25: #{tpu_custom_call.1} parent=11 // pred_check
          %p235 = pneg %p102
        $region26: #{tpu_custom_call.1} parent=11 // pred_check_branch
          %237 = sbr.rel (%p235) target = $region28
        $region27: #{tpu_custom_call.1} parent=11 // pred_region
          %239 = vsyncadd [#allocation9], 0
          %s241 = sshll.u32 %s3, 4
          %s242 = int_to_ptr.hbm [resolvable:$true] %s241
          %s243 = sshll.u32 [#allocation8], 4
          %s244 = int_to_ptr.vmem [resolvable:$true] %s243
          %246 = dma.hbm_to_vmem [thread:$0]  %s242, 64, %s244, [#allocation9]
        $region28: #{tpu_custom_call.1} parent=11 // pred_fallthru
          _
      $region12: #{tpu_custom_call.1} parent=5 // pred_fallthru
        _
      %p247 = scmp.lt.s32.totalorder %s18, 4
      // Predicated region
      $region29: #{tpu_custom_call.1} parent=5 // pred_check
        %p248 = pneg %p247
      $region30: #{tpu_custom_call.1} parent=5 // pred_check_branch
        %250 = sbr.rel (%p248) target = $region32
      $region31: #{tpu_custom_call.1} parent=5 // pred_region
        // Predicated region
        $region33: #{tpu_custom_call.1} parent=31 // pred_check
          %p251 = pneg %p122
        $region34: #{tpu_custom_call.1} parent=31 // pred_check_branch
          %253 = sbr.rel (%p251) target = $region36
        $region35: #{tpu_custom_call.1} parent=31 // pred_region
          %s254 = sand.u32 %s18, 1
          %s255 = scalar_lea.sflag [#allocation3], %s254
          %s256 = sand.u32 %s112, 1
          %s257 = smul.addr %s256, 1024
          %s258 = scalar_lea.vmem [#allocation10], %s257
          %s259 = smul.u32 4, %s18
          %261 = vsyncadd %s255, 0
          %s262 = smul.addr %s259, 4
          %s263 = scalar_lea.hbm %s4, %s262
          %s264 = sshll.u32 %s263, 4
          %s265 = int_to_ptr.hbm [resolvable:$true] %s264
          %s266 = sshll.u32 %s258, 4
          %s267 = int_to_ptr.vmem [resolvable:$true] %s266
          %272 = dma.hbm_to_vmem [thread:$0]  %s265, 16384, %s267, %s255, 1024, 256, 16
        $region36: #{tpu_custom_call.1} parent=31 // pred_fallthru
          _
        // Predicated region
        $region37: #{tpu_custom_call.1} parent=31 // pred_check
          %p273 = pneg %p148
        $region38: #{tpu_custom_call.1} parent=31 // pred_check_branch
          %275 = sbr.rel (%p273) target = $region40
        $region39: #{tpu_custom_call.1} parent=31 // pred_region
          %s276 = sand.u32 %s18, 1
          %s277 = scalar_lea.sflag [#allocation3], %s276
          %s278 = sand.u32 %s138, 1
          %s279 = smul.addr %s278, 4
          %s280 = scalar_lea.vmem [#allocation11], %s279
          %s281 = smul.u32 4, %s18
          %283 = vsyncadd %s277, 0
          %s284 = scalar_lea.hbm %s5, %s281
          %s286 = sshll.u32 %s284, 4
          %s287 = int_to_ptr.hbm [resolvable:$true] %s286
          %s288 = sshll.u32 %s280, 4
          %s289 = int_to_ptr.vmem [resolvable:$true] %s288
          %291 = dma.hbm_to_vmem [thread:$0]  %s287, 64, %s289, %s277
        $region40: #{tpu_custom_call.1} parent=31 // pred_fallthru
          _
      $region32: #{tpu_custom_call.1} parent=5 // pred_fallthru
        _
      %p292 = scmp.le.s32.totalorder 1, %s18
      %p293 = scmp.lt.s32.totalorder %s18, 5
      %p294 = pnand %p292, %p293
      %p295 = pneg %p294
      // Predicated region
      $region41: #{tpu_custom_call.1} parent=5 // pred_check
        _
      $region42: #{tpu_custom_call.1} parent=5 // pred_check_branch
        %297 = sbr.rel (%p294) target = $region44
      $region43: #{tpu_custom_call.1} parent=5 // pred_region
        %s298 = ssub.s32 %s18, 1
        // Predicated region
        $region45: #{tpu_custom_call.1} parent=43 // pred_check
          %p299 = pneg %p39
        $region46: #{tpu_custom_call.1} parent=43 // pred_check_branch
          %301 = sbr.rel (%p299) target = $region48
        $region47: #{tpu_custom_call.1} parent=43 // pred_region
          %303 = dma.done [#allocation3], 12800
        $region48: #{tpu_custom_call.1} parent=43 // pred_fallthru
          _
        // Predicated region
        $region49: #{tpu_custom_call.1} parent=43 // pred_check
          %p304 = pneg %p60
        $region50: #{tpu_custom_call.1} parent=43 // pred_check_branch
          %306 = sbr.rel (%p304) target = $region52
        $region51: #{tpu_custom_call.1} parent=43 // pred_region
          %308 = dma.done [#allocation6], 12800
        $region52: #{tpu_custom_call.1} parent=43 // pred_fallthru
          _
        // Predicated region
        $region53: #{tpu_custom_call.1} parent=43 // pred_check
          %p309 = pneg %p81
        $region54: #{tpu_custom_call.1} parent=43 // pred_check_branch
          %311 = sbr.rel (%p309) target = $region56
        $region55: #{tpu_custom_call.1} parent=43 // pred_region
          %313 = dma.done [#allocation6], 64
        $region56: #{tpu_custom_call.1} parent=43 // pred_fallthru
          _
        // Predicated region
        $region57: #{tpu_custom_call.1} parent=43 // pred_check
          %p314 = pneg %p102
        $region58: #{tpu_custom_call.1} parent=43 // pred_check_branch
          %316 = sbr.rel (%p314) target = $region60
        $region59: #{tpu_custom_call.1} parent=43 // pred_region
          %318 = dma.done [#allocation9], 64
        $region60: #{tpu_custom_call.1} parent=43 // pred_fallthru
          _
        %s319 = sand.u32 %s23, 1
        %s320 = scalar_lea.sflag [#allocation3], %s319
        %s321 = sand.u32 %s115, 1
        %s322 = smul.addr %s321, 1024
        %s323 = scalar_lea.vmem [#allocation10], %s322
        // Predicated region
        $region61: #{tpu_custom_call.1} parent=43 // pred_check
          %p324 = pneg %p128
        $region62: #{tpu_custom_call.1} parent=43 // pred_check_branch
          %326 = sbr.rel (%p324) target = $region64
        $region63: #{tpu_custom_call.1} parent=43 // pred_region
          %328 = dma.done %s320, 16384
        $region64: #{tpu_custom_call.1} parent=43 // pred_fallthru
          _
        %s329 = sand.u32 %s23, 1
        %s330 = scalar_lea.sflag [#allocation3], %s329
        %s331 = sand.u32 %s141, 1
        %s332 = smul.addr %s331, 4
        %s333 = scalar_lea.vmem [#allocation11], %s332
        // Predicated region
        $region65: #{tpu_custom_call.1} parent=43 // pred_check
          %p334 = pneg %p154
        $region66: #{tpu_custom_call.1} parent=43 // pred_check_branch
          %336 = sbr.rel (%p334) target = $region68
        $region67: #{tpu_custom_call.1} parent=43 // pred_region
          %338 = dma.done %s330, 64
        $region68: #{tpu_custom_call.1} parent=43 // pred_fallthru
          _
        %p339 = pneg %p39
        %p340 = pneg %p36
        %p341 = pneg %p60
        %p342 = pneg %p57
        %p343 = pneg %p81
        %p344 = pneg %p78
        %p345 = pneg %p102
        %p346 = pneg %p99
        %s347 = sand.u32 %s23, 1
        %s348 = scalar_lea.sflag [#allocation3], %s347
        %s349 = sand.u32 %s115, 1
        %s350 = smul.addr %s349, 1024
        %s351 = scalar_lea.vmem [#allocation10], %s350
        %p352 = pneg %p128
        %p353 = pneg %p125
        %s354 = sand.u32 %s23, 1
        %s355 = scalar_lea.sflag [#allocation3], %s354
        %s356 = sand.u32 %s141, 1
        %s357 = smul.addr %s356, 4
        %s358 = scalar_lea.vmem [#allocation11], %s357
        %p359 = pneg %p154
        %p360 = pneg %p151
        %p361 = pneg %p180
        %p362 = pneg %p177
        %s363 = sand.u32 %s167, 1
        %s364 = scalar_lea.sflag [#allocation4], %s363
        %s365 = sand.u32 %s167, 1
        %s366 = smul.addr %s365, 800
        %s367 = scalar_lea.vmem [#allocation12], %s366
        %s368 = smul.u32 4, %s23
        %s369 = smul.u32 4, %s23
        %s370 = smul.u32 4, %s23
        %v371 = vld [vmem:[#allocation2] sm:$0xff]
        %v372 = vld [vmem:[#allocation2 + $0x8] sm:$0xff]
        %v373 = vld [vmem:[#allocation2 + $0x10] sm:$0xff]
        %v374 = vld [vmem:[#allocation2 + $0x18] sm:$0xff]
        %v375 = vld [vmem:[#allocation2 + $0x20] sm:$0xff]
        %v376 = vld [vmem:[#allocation2 + $0x28] sm:$0xff]
        %v377 = vld [vmem:[#allocation2 + $0x30] sm:$0xff]
        %v378 = vld [vmem:[#allocation2 + $0x38] sm:$0xff]
        %v379 = vld [vmem:[#allocation2 + $0x40] sm:$0xff]
        %v380 = vld [vmem:[#allocation2 + $0x48] sm:$0xff]
        %v381 = vld [vmem:[#allocation2 + $0x50] sm:$0xff]
        %v382 = vld [vmem:[#allocation2 + $0x58] sm:$0xff]
        %v383 = vld [vmem:[#allocation2 + $0x60] sm:$0xff]
        %v384 = vld [vmem:[#allocation2 + $0x68] sm:$0xff]
        %v385 = vld [vmem:[#allocation2 + $0x70] sm:$0xff]
        %v386 = vld [vmem:[#allocation2 + $0x78] sm:$0xff]
        %v387 = vld [vmem:[#allocation2 + $0x80] sm:$0xff]
        %v388 = vld [vmem:[#allocation2 + $0x88] sm:$0xff]
        %v389 = vld [vmem:[#allocation2 + $0x90] sm:$0xff]
        %v390 = vld [vmem:[#allocation2 + $0x98] sm:$0xff]
        %v391 = vld [vmem:[#allocation2 + $0xa0] sm:$0xff]
        %v392 = vld [vmem:[#allocation2 + $0xa8] sm:$0xff]
        %v393 = vld [vmem:[#allocation2 + $0xb0] sm:$0xff]
        %v394 = vld [vmem:[#allocation2 + $0xb8] sm:$0xff]
        %v395 = vld [vmem:[#allocation2 + $0xc0] sm:$0xff]
        %v396 = vld [vmem:[#allocation2 + $0xc8] sm:$0xff]
        %v397 = vld [vmem:[#allocation2 + $0xd0] sm:$0xff]
        %v398 = vld [vmem:[#allocation2 + $0xd8] sm:$0xff]
        %v399 = vld [vmem:[#allocation2 + $0xe0] sm:$0xff]
        %v400 = vld [vmem:[#allocation2 + $0xe8] sm:$0xff]
        %v401 = vld [vmem:[#allocation2 + $0xf0] sm:$0xff]
        %v402 = vld [vmem:[#allocation2 + $0xf8] sm:$0xff]
        %v403 = vld [vmem:[#allocation2 + $0x100] sm:$0xff]
        %v404 = vld [vmem:[#allocation2 + $0x108] sm:$0xff]
        %v405 = vld [vmem:[#allocation2 + $0x110] sm:$0xff]
        %v406 = vld [vmem:[#allocation2 + $0x118] sm:$0xff]
        %v407 = vld [vmem:[#allocation2 + $0x120] sm:$0xff]
        %v408 = vld [vmem:[#allocation2 + $0x128] sm:$0xff]
        %v409 = vld [vmem:[#allocation2 + $0x130] sm:$0xff]
        %v410 = vld [vmem:[#allocation2 + $0x138] sm:$0xff]
        %v411 = vld [vmem:[#allocation2 + $0x140] sm:$0xff]
        %v412 = vld [vmem:[#allocation2 + $0x148] sm:$0xff]
        %v413 = vld [vmem:[#allocation2 + $0x150] sm:$0xff]
        %v414 = vld [vmem:[#allocation2 + $0x158] sm:$0xff]
        %v415 = vld [vmem:[#allocation2 + $0x160] sm:$0xff]
        %v416 = vld [vmem:[#allocation2 + $0x168] sm:$0xff]
        %v417 = vld [vmem:[#allocation2 + $0x170] sm:$0xff]
        %v418 = vld [vmem:[#allocation2 + $0x178] sm:$0xff]
        %v419 = vld [vmem:[#allocation2 + $0x180] sm:$0xff]
        %v420 = vld [vmem:[#allocation2 + $0x188] sm:$0xff]
        %v421 = vld [vmem:[#allocation2 + $0x190] sm:$0xff]
        %v422 = vld [vmem:[#allocation2 + $0x198] sm:$0xff]
        %v423 = vld [vmem:[#allocation2 + $0x1a0] sm:$0xff]
        %v424 = vld [vmem:[#allocation2 + $0x1a8] sm:$0xff]
        %v425 = vld [vmem:[#allocation2 + $0x1b0] sm:$0xff]
        %v426 = vld [vmem:[#allocation2 + $0x1b8] sm:$0xff]
        %v427 = vld [vmem:[#allocation2 + $0x1c0] sm:$0xff]
        %v428 = vld [vmem:[#allocation2 + $0x1c8] sm:$0xff]
        %v429 = vld [vmem:[#allocation2 + $0x1d0] sm:$0xff]
        %v430 = vld [vmem:[#allocation2 + $0x1d8] sm:$0xff]
        %v431 = vld [vmem:[#allocation2 + $0x1e0] sm:$0xff]
        %v432 = vld [vmem:[#allocation2 + $0x1e8] sm:$0xff]
        %v433 = vld [vmem:[#allocation2 + $0x1f0] sm:$0xff]
        %v434 = vld [vmem:[#allocation2 + $0x1f8] sm:$0xff]
        %v435 = vld [vmem:[#allocation2 + $0x200] sm:$0xff]
        %v436 = vld [vmem:[#allocation2 + $0x208] sm:$0xff]
        %v437 = vld [vmem:[#allocation2 + $0x210] sm:$0xff]
        %v438 = vld [vmem:[#allocation2 + $0x218] sm:$0xff]
        %v439 = vld [vmem:[#allocation2 + $0x220] sm:$0xff]
        %v440 = vld [vmem:[#allocation2 + $0x228] sm:$0xff]
        %v441 = vld [vmem:[#allocation2 + $0x230] sm:$0xff]
        %v442 = vld [vmem:[#allocation2 + $0x238] sm:$0xff]
        %v443 = vld [vmem:[#allocation2 + $0x240] sm:$0xff]
        %v444 = vld [vmem:[#allocation2 + $0x248] sm:$0xff]
        %v445 = vld [vmem:[#allocation2 + $0x250] sm:$0xff]
        %v446 = vld [vmem:[#allocation2 + $0x258] sm:$0xff]
        %v447 = vld [vmem:[#allocation2 + $0x260] sm:$0xff]
        %v448 = vld [vmem:[#allocation2 + $0x268] sm:$0xff]
        %v449 = vld [vmem:[#allocation2 + $0x270] sm:$0xff]
        %v450 = vld [vmem:[#allocation2 + $0x278] sm:$0xff]
        %v451 = vld [vmem:[#allocation2 + $0x280] sm:$0xff]
        %v452 = vld [vmem:[#allocation2 + $0x288] sm:$0xff]
        %v453 = vld [vmem:[#allocation2 + $0x290] sm:$0xff]
        %v454 = vld [vmem:[#allocation2 + $0x298] sm:$0xff]
        %v455 = vld [vmem:[#allocation2 + $0x2a0] sm:$0xff]
        %v456 = vld [vmem:[#allocation2 + $0x2a8] sm:$0xff]
        %v457 = vld [vmem:[#allocation2 + $0x2b0] sm:$0xff]
        %v458 = vld [vmem:[#allocation2 + $0x2b8] sm:$0xff]
        %v459 = vld [vmem:[#allocation2 + $0x2c0] sm:$0xff]
        %v460 = vld [vmem:[#allocation2 + $0x2c8] sm:$0xff]
        %v461 = vld [vmem:[#allocation2 + $0x2d0] sm:$0xff]
        %v462 = vld [vmem:[#allocation2 + $0x2d8] sm:$0xff]
        %v463 = vld [vmem:[#allocation2 + $0x2e0] sm:$0xff]
        %v464 = vld [vmem:[#allocation2 + $0x2e8] sm:$0xff]
        %v465 = vld [vmem:[#allocation2 + $0x2f0] sm:$0xff]
        %v466 = vld [vmem:[#allocation2 + $0x2f8] sm:$0xff]
        %v467 = vld [vmem:[#allocation2 + $0x300] sm:$0xf]
        %v468 = vld [vmem:[#allocation2 + $0x308] sm:$0xf]
        %v469 = vld [vmem:[#allocation2 + $0x310] sm:$0xf]
        %v470 = vld [vmem:[#allocation2 + $0x318] sm:$0xf]
        %v471 = vld [vmem:[#allocation5] sm:$0xff]
        %v472 = vld [vmem:[#allocation5 + $0x8] sm:$0xff]
        %v473 = vld [vmem:[#allocation5 + $0x10] sm:$0xff]
        %v474 = vld [vmem:[#allocation5 + $0x18] sm:$0xff]
        %v475 = vld [vmem:[#allocation5 + $0x20] sm:$0xff]
        %v476 = vld [vmem:[#allocation5 + $0x28] sm:$0xff]
        %v477 = vld [vmem:[#allocation5 + $0x30] sm:$0xff]
        %v478 = vld [vmem:[#allocation5 + $0x38] sm:$0xff]
        %v479 = vld [vmem:[#allocation5 + $0x40] sm:$0xff]
        %v480 = vld [vmem:[#allocation5 + $0x48] sm:$0xff]
        %v481 = vld [vmem:[#allocation5 + $0x50] sm:$0xff]
        %v482 = vld [vmem:[#allocation5 + $0x58] sm:$0xff]
        %v483 = vld [vmem:[#allocation5 + $0x60] sm:$0xff]
        %v484 = vld [vmem:[#allocation5 + $0x68] sm:$0xff]
        %v485 = vld [vmem:[#allocation5 + $0x70] sm:$0xff]
        %v486 = vld [vmem:[#allocation5 + $0x78] sm:$0xff]
        %v487 = vld [vmem:[#allocation5 + $0x80] sm:$0xff]
        %v488 = vld [vmem:[#allocation5 + $0x88] sm:$0xff]
        %v489 = vld [vmem:[#allocation5 + $0x90] sm:$0xff]
        %v490 = vld [vmem:[#allocation5 + $0x98] sm:$0xff]
        %v491 = vld [vmem:[#allocation5 + $0xa0] sm:$0xff]
        %v492 = vld [vmem:[#allocation5 + $0xa8] sm:$0xff]
        %v493 = vld [vmem:[#allocation5 + $0xb0] sm:$0xff]
        %v494 = vld [vmem:[#allocation5 + $0xb8] sm:$0xff]
        %v495 = vld [vmem:[#allocation5 + $0xc0] sm:$0xff]
        %v496 = vld [vmem:[#allocation5 + $0xc8] sm:$0xff]
        %v497 = vld [vmem:[#allocation5 + $0xd0] sm:$0xff]
        %v498 = vld [vmem:[#allocation5 + $0xd8] sm:$0xff]
        %v499 = vld [vmem:[#allocation5 + $0xe0] sm:$0xff]
        %v500 = vld [vmem:[#allocation5 + $0xe8] sm:$0xff]
        %v501 = vld [vmem:[#allocation5 + $0xf0] sm:$0xff]
        %v502 = vld [vmem:[#allocation5 + $0xf8] sm:$0xff]
        %v503 = vld [vmem:[#allocation5 + $0x100] sm:$0xff]
        %v504 = vld [vmem:[#allocation5 + $0x108] sm:$0xff]
        %v505 = vld [vmem:[#allocation5 + $0x110] sm:$0xff]
        %v506 = vld [vmem:[#allocation5 + $0x118] sm:$0xff]
        %v507 = vld [vmem:[#allocation5 + $0x120] sm:$0xff]
        %v508 = vld [vmem:[#allocation5 + $0x128] sm:$0xff]
        %v509 = vld [vmem:[#allocation5 + $0x130] sm:$0xff]
        %v510 = vld [vmem:[#allocation5 + $0x138] sm:$0xff]
        %v511 = vld [vmem:[#allocation5 + $0x140] sm:$0xff]
        %v512 = vld [vmem:[#allocation5 + $0x148] sm:$0xff]
        %v513 = vld [vmem:[#allocation5 + $0x150] sm:$0xff]
        %v514 = vld [vmem:[#allocation5 + $0x158] sm:$0xff]
        %v515 = vld [vmem:[#allocation5 + $0x160] sm:$0xff]
        %v516 = vld [vmem:[#allocation5 + $0x168] sm:$0xff]
        %v517 = vld [vmem:[#allocation5 + $0x170] sm:$0xff]
        %v518 = vld [vmem:[#allocation5 + $0x178] sm:$0xff]
        %v519 = vld [vmem:[#allocation5 + $0x180] sm:$0xff]
        %v520 = vld [vmem:[#allocation5 + $0x188] sm:$0xff]
        %v521 = vld [vmem:[#allocation5 + $0x190] sm:$0xff]
        %v522 = vld [vmem:[#allocation5 + $0x198] sm:$0xff]
        %v523 = vld [vmem:[#allocation5 + $0x1a0] sm:$0xff]
        %v524 = vld [vmem:[#allocation5 + $0x1a8] sm:$0xff]
        %v525 = vld [vmem:[#allocation5 + $0x1b0] sm:$0xff]
        %v526 = vld [vmem:[#allocation5 + $0x1b8] sm:$0xff]
        %v527 = vld [vmem:[#allocation5 + $0x1c0] sm:$0xff]
        %v528 = vld [vmem:[#allocation5 + $0x1c8] sm:$0xff]
        %v529 = vld [vmem:[#allocation5 + $0x1d0] sm:$0xff]
        %v530 = vld [vmem:[#allocation5 + $0x1d8] sm:$0xff]
        %v531 = vld [vmem:[#allocation5 + $0x1e0] sm:$0xff]
        %v532 = vld [vmem:[#allocation5 + $0x1e8] sm:$0xff]
        %v533 = vld [vmem:[#allocation5 + $0x1f0] sm:$0xff]
        %v534 = vld [vmem:[#allocation5 + $0x1f8] sm:$0xff]
        %v535 = vld [vmem:[#allocation5 + $0x200] sm:$0xff]
        %v536 = vld [vmem:[#allocation5 + $0x208] sm:$0xff]
        %v537 = vld [vmem:[#allocation5 + $0x210] sm:$0xff]
        %v538 = vld [vmem:[#allocation5 + $0x218] sm:$0xff]
        %v539 = vld [vmem:[#allocation5 + $0x220] sm:$0xff]
        %v540 = vld [vmem:[#allocation5 + $0x228] sm:$0xff]
        %v541 = vld [vmem:[#allocation5 + $0x230] sm:$0xff]
        %v542 = vld [vmem:[#allocation5 + $0x238] sm:$0xff]
        %v543 = vld [vmem:[#allocation5 + $0x240] sm:$0xff]
        %v544 = vld [vmem:[#allocation5 + $0x248] sm:$0xff]
        %v545 = vld [vmem:[#allocation5 + $0x250] sm:$0xff]
        %v546 = vld [vmem:[#allocation5 + $0x258] sm:$0xff]
        %v547 = vld [vmem:[#allocation5 + $0x260] sm:$0xff]
        %v548 = vld [vmem:[#allocation5 + $0x268] sm:$0xff]
        %v549 = vld [vmem:[#allocation5 + $0x270] sm:$0xff]
        %v550 = vld [vmem:[#allocation5 + $0x278] sm:$0xff]
        %v551 = vld [vmem:[#allocation5 + $0x280] sm:$0xff]
        %v552 = vld [vmem:[#allocation5 + $0x288] sm:$0xff]
        %v553 = vld [vmem:[#allocation5 + $0x290] sm:$0xff]
        %v554 = vld [vmem:[#allocation5 + $0x298] sm:$0xff]
        %v555 = vld [vmem:[#allocation5 + $0x2a0] sm:$0xff]
        %v556 = vld [vmem:[#allocation5 + $0x2a8] sm:$0xff]
        %v557 = vld [vmem:[#allocation5 + $0x2b0] sm:$0xff]
        %v558 = vld [vmem:[#allocation5 + $0x2b8] sm:$0xff]
        %v559 = vld [vmem:[#allocation5 + $0x2c0] sm:$0xff]
        %v560 = vld [vmem:[#allocation5 + $0x2c8] sm:$0xff]
        %v561 = vld [vmem:[#allocation5 + $0x2d0] sm:$0xff]
        %v562 = vld [vmem:[#allocation5 + $0x2d8] sm:$0xff]
        %v563 = vld [vmem:[#allocation5 + $0x2e0] sm:$0xff]
        %v564 = vld [vmem:[#allocation5 + $0x2e8] sm:$0xff]
        %v565 = vld [vmem:[#allocation5 + $0x2f0] sm:$0xff]
        %v566 = vld [vmem:[#allocation5 + $0x2f8] sm:$0xff]
        %v567 = vld [vmem:[#allocation5 + $0x300] sm:$0xf]
        %v568 = vld [vmem:[#allocation5 + $0x308] sm:$0xf]
        %v569 = vld [vmem:[#allocation5 + $0x310] sm:$0xf]
        %v570 = vld [vmem:[#allocation5 + $0x318] sm:$0xf]
        %v571 = vadd.f32 %v371, %v471
        %v572 = vadd.f32 %v372, %v472
        %v573 = vadd.f32 %v373, %v473
        %v574 = vadd.f32 %v374, %v474
        %v575 = vadd.f32 %v375, %v475
        %v576 = vadd.f32 %v376, %v476
        %v577 = vadd.f32 %v377, %v477
        %v578 = vadd.f32 %v378, %v478
        %v579 = vadd.f32 %v379, %v479
        %v580 = vadd.f32 %v380, %v480
        %v581 = vadd.f32 %v381, %v481
        %v582 = vadd.f32 %v382, %v482
        %v583 = vadd.f32 %v383, %v483
        %v584 = vadd.f32 %v384, %v484
        %v585 = vadd.f32 %v385, %v485
        %v586 = vadd.f32 %v386, %v486
        %v587 = vadd.f32 %v387, %v487
        %v588 = vadd.f32 %v388, %v488
        %v589 = vadd.f32 %v389, %v489
        %v590 = vadd.f32 %v390, %v490
        %v591 = vadd.f32 %v391, %v491
        %v592 = vadd.f32 %v392, %v492
        %v593 = vadd.f32 %v393, %v493
        %v594 = vadd.f32 %v394, %v494
        %v595 = vadd.f32 %v395, %v495
        %v596 = vadd.f32 %v396, %v496
        %v597 = vadd.f32 %v397, %v497
        %v598 = vadd.f32 %v398, %v498
        %v599 = vadd.f32 %v399, %v499
        %v600 = vadd.f32 %v400, %v500
        %v601 = vadd.f32 %v401, %v501
        %v602 = vadd.f32 %v402, %v502
        %v603 = vadd.f32 %v403, %v503
        %v604 = vadd.f32 %v404, %v504
        %v605 = vadd.f32 %v405, %v505
        %v606 = vadd.f32 %v406, %v506
        %v607 = vadd.f32 %v407, %v507
        %v608 = vadd.f32 %v408, %v508
        %v609 = vadd.f32 %v409, %v509
        %v610 = vadd.f32 %v410, %v510
        %v611 = vadd.f32 %v411, %v511
        %v612 = vadd.f32 %v412, %v512
        %v613 = vadd.f32 %v413, %v513
        %v614 = vadd.f32 %v414, %v514
        %v615 = vadd.f32 %v415, %v515
        %v616 = vadd.f32 %v416, %v516
        %v617 = vadd.f32 %v417, %v517
        %v618 = vadd.f32 %v418, %v518
        %v619 = vadd.f32 %v419, %v519
        %v620 = vadd.f32 %v420, %v520
        %v621 = vadd.f32 %v421, %v521
        %v622 = vadd.f32 %v422, %v522
        %v623 = vadd.f32 %v423, %v523
        %v624 = vadd.f32 %v424, %v524
        %v625 = vadd.f32 %v425, %v525
        %v626 = vadd.f32 %v426, %v526
        %v627 = vadd.f32 %v427, %v527
        %v628 = vadd.f32 %v428, %v528
        %v629 = vadd.f32 %v429, %v529
        %v630 = vadd.f32 %v430, %v530
        %v631 = vadd.f32 %v431, %v531
        %v632 = vadd.f32 %v432, %v532
        %v633 = vadd.f32 %v433, %v533
        %v634 = vadd.f32 %v434, %v534
        %v635 = vadd.f32 %v435, %v535
        %v636 = vadd.f32 %v436, %v536
        %v637 = vadd.f32 %v437, %v537
        %v638 = vadd.f32 %v438, %v538
        %v639 = vadd.f32 %v439, %v539
        %v640 = vadd.f32 %v440, %v540
        %v641 = vadd.f32 %v441, %v541
        %v642 = vadd.f32 %v442, %v542
        %v643 = vadd.f32 %v443, %v543
        %v644 = vadd.f32 %v444, %v544
        %v645 = vadd.f32 %v445, %v545
        %v646 = vadd.f32 %v446, %v546
        %v647 = vadd.f32 %v447, %v547
        %v648 = vadd.f32 %v448, %v548
        %v649 = vadd.f32 %v449, %v549
        %v650 = vadd.f32 %v450, %v550
        %v651 = vadd.f32 %v451, %v551
        %v652 = vadd.f32 %v452, %v552
        %v653 = vadd.f32 %v453, %v553
        %v654 = vadd.f32 %v454, %v554
        %v655 = vadd.f32 %v455, %v555
        %v656 = vadd.f32 %v456, %v556
        %v657 = vadd.f32 %v457, %v557
        %v658 = vadd.f32 %v458, %v558
        %v659 = vadd.f32 %v459, %v559
        %v660 = vadd.f32 %v460, %v560
        %v661 = vadd.f32 %v461, %v561
        %v662 = vadd.f32 %v462, %v562
        %v663 = vadd.f32 %v463, %v563
        %v664 = vadd.f32 %v464, %v564
        %v665 = vadd.f32 %v465, %v565
        %v666 = vadd.f32 %v466, %v566
        %v667 = vadd.f32 %v467, %v567
        %v668 = vadd.f32 %v468, %v568
        %v669 = vadd.f32 %v469, %v569
        %v670 = vadd.f32 %v470, %v570
        %v671 = vadd.f32 %v571, %v572
        %v672 = vadd.f32 %v671, %v573
        %v673 = vadd.f32 %v672, %v574
        %674 = vadd.xlane.f32.xlu0 %v673
        %v675 = vpop.xlane.xlu0 %674
        %v676 = vadd.f32 %v575, %v576
        %v677 = vadd.f32 %v676, %v577
        %v678 = vadd.f32 %v677, %v578
        %679 = vadd.xlane.f32.xlu0 %v678
        %v680 = vpop.xlane.xlu0 %679
        %v681 = vadd.f32 %v579, %v580
        %v682 = vadd.f32 %v681, %v581
        %v683 = vadd.f32 %v682, %v582
        %684 = vadd.xlane.f32.xlu0 %v683
        %v685 = vpop.xlane.xlu0 %684
        %v686 = vadd.f32 %v583, %v584
        %v687 = vadd.f32 %v686, %v585
        %v688 = vadd.f32 %v687, %v586
        %689 = vadd.xlane.f32.xlu0 %v688
        %v690 = vpop.xlane.xlu0 %689
        %v691 = vadd.f32 %v587, %v588
        %v692 = vadd.f32 %v691, %v589
        %v693 = vadd.f32 %v692, %v590
        %694 = vadd.xlane.f32.xlu0 %v693
        %v695 = vpop.xlane.xlu0 %694
        %v696 = vadd.f32 %v591, %v592
        %v697 = vadd.f32 %v696, %v593
        %v698 = vadd.f32 %v697, %v594
        %699 = vadd.xlane.f32.xlu0 %v698
        %v700 = vpop.xlane.xlu0 %699
        %v701 = vadd.f32 %v595, %v596
        %v702 = vadd.f32 %v701, %v597
        %v703 = vadd.f32 %v702, %v598
        %704 = vadd.xlane.f32.xlu0 %v703
        %v705 = vpop.xlane.xlu0 %704
        %v706 = vadd.f32 %v599, %v600
        %v707 = vadd.f32 %v706, %v601
        %v708 = vadd.f32 %v707, %v602
        %709 = vadd.xlane.f32.xlu0 %v708
        %v710 = vpop.xlane.xlu0 %709
        %v711 = vadd.f32 %v603, %v604
        %v712 = vadd.f32 %v711, %v605
        %v713 = vadd.f32 %v712, %v606
        %714 = vadd.xlane.f32.xlu0 %v713
        %v715 = vpop.xlane.xlu0 %714
        %v716 = vadd.f32 %v607, %v608
        %v717 = vadd.f32 %v716, %v609
        %v718 = vadd.f32 %v717, %v610
        %719 = vadd.xlane.f32.xlu0 %v718
        %v720 = vpop.xlane.xlu0 %719
        %v721 = vadd.f32 %v611, %v612
        %v722 = vadd.f32 %v721, %v613
        %v723 = vadd.f32 %v722, %v614
        %724 = vadd.xlane.f32.xlu0 %v723
        %v725 = vpop.xlane.xlu0 %724
        %v726 = vadd.f32 %v615, %v616
        %v727 = vadd.f32 %v726, %v617
        %v728 = vadd.f32 %v727, %v618
        %729 = vadd.xlane.f32.xlu0 %v728
        %v730 = vpop.xlane.xlu0 %729
        %v731 = vadd.f32 %v619, %v620
        %v732 = vadd.f32 %v731, %v621
        %v733 = vadd.f32 %v732, %v622
        %734 = vadd.xlane.f32.xlu0 %v733
        %v735 = vpop.xlane.xlu0 %734
        %v736 = vadd.f32 %v623, %v624
        %v737 = vadd.f32 %v736, %v625
        %v738 = vadd.f32 %v737, %v626
        %739 = vadd.xlane.f32.xlu0 %v738
        %v740 = vpop.xlane.xlu0 %739
        %v741 = vadd.f32 %v627, %v628
        %v742 = vadd.f32 %v741, %v629
        %v743 = vadd.f32 %v742, %v630
        %744 = vadd.xlane.f32.xlu0 %v743
        %v745 = vpop.xlane.xlu0 %744
        %v746 = vadd.f32 %v631, %v632
        %v747 = vadd.f32 %v746, %v633
        %v748 = vadd.f32 %v747, %v634
        %749 = vadd.xlane.f32.xlu0 %v748
        %v750 = vpop.xlane.xlu0 %749
        %v751 = vadd.f32 %v635, %v636
        %v752 = vadd.f32 %v751, %v637
        %v753 = vadd.f32 %v752, %v638
        %754 = vadd.xlane.f32.xlu0 %v753
        %v755 = vpop.xlane.xlu0 %754
        %v756 = vadd.f32 %v639, %v640
        %v757 = vadd.f32 %v756, %v641
        %v758 = vadd.f32 %v757, %v642
        %759 = vadd.xlane.f32.xlu0 %v758
        %v760 = vpop.xlane.xlu0 %759
        %v761 = vadd.f32 %v643, %v644
        %v762 = vadd.f32 %v761, %v645
        %v763 = vadd.f32 %v762, %v646
        %764 = vadd.xlane.f32.xlu0 %v763
        %v765 = vpop.xlane.xlu0 %764
        %v766 = vadd.f32 %v647, %v648
        %v767 = vadd.f32 %v766, %v649
        %v768 = vadd.f32 %v767, %v650
        %769 = vadd.xlane.f32.xlu0 %v768
        %v770 = vpop.xlane.xlu0 %769
        %v771 = vadd.f32 %v651, %v652
        %v772 = vadd.f32 %v771, %v653
        %v773 = vadd.f32 %v772, %v654
        %774 = vadd.xlane.f32.xlu0 %v773
        %v775 = vpop.xlane.xlu0 %774
        %v776 = vadd.f32 %v655, %v656
        %v777 = vadd.f32 %v776, %v657
        %v778 = vadd.f32 %v777, %v658
        %779 = vadd.xlane.f32.xlu0 %v778
        %v780 = vpop.xlane.xlu0 %779
        %v781 = vadd.f32 %v659, %v660
        %v782 = vadd.f32 %v781, %v661
        %v783 = vadd.f32 %v782, %v662
        %784 = vadd.xlane.f32.xlu0 %v783
        %v785 = vpop.xlane.xlu0 %784
        %v786 = vadd.f32 %v663, %v664
        %v787 = vadd.f32 %v786, %v665
        %v788 = vadd.f32 %v787, %v666
        %789 = vadd.xlane.f32.xlu0 %v788
        %v790 = vpop.xlane.xlu0 %789
        %vm791 = vcmask 1043456
        %v792 = vsel %vm791, %v667, 0.0
        %v793 = vsel %vm791, %v668, 0.0
        %v794 = vadd.f32 %v792, %v793
        %v795 = vsel %vm791, %v669, 0.0
        %v796 = vadd.f32 %v794, %v795
        %v797 = vsel %vm791, %v670, 0.0
        %v798 = vadd.f32 %v796, %v797
        %799 = vadd.xlane.f32.xlu0 %v798
        %v800 = vpop.xlane.xlu0 %799
        %v801 = vrcp.pop 512.0
        %v802 = vmul.f32 512.0, %v801
        %v803 = vsub.f32 1.0, %v802
        %v804 = vmul.f32 %v801, %v803
        %v805 = vadd.f32 %v801, %v804
        %vm806 = vweird.f32 %v801
        %v807 = vsel %vm806, %v801, %v805
        %v808 = vmul.f32 %v675, %v807
        %v809 = vmul.f32 %v680, %v807
        %v810 = vmul.f32 %v685, %v807
        %v811 = vmul.f32 %v690, %v807
        %v812 = vmul.f32 %v695, %v807
        %v813 = vmul.f32 %v700, %v807
        %v814 = vmul.f32 %v705, %v807
        %v815 = vmul.f32 %v710, %v807
        %v816 = vmul.f32 %v715, %v807
        %v817 = vmul.f32 %v720, %v807
        %v818 = vmul.f32 %v725, %v807
        %v819 = vmul.f32 %v730, %v807
        %v820 = vmul.f32 %v735, %v807
        %v821 = vmul.f32 %v740, %v807
        %v822 = vmul.f32 %v745, %v807
        %v823 = vmul.f32 %v750, %v807
        %v824 = vmul.f32 %v755, %v807
        %v825 = vmul.f32 %v760, %v807
        %v826 = vmul.f32 %v765, %v807
        %v827 = vmul.f32 %v770, %v807
        %v828 = vmul.f32 %v775, %v807
        %v829 = vmul.f32 %v780, %v807
        %v830 = vmul.f32 %v785, %v807
        %v831 = vmul.f32 %v790, %v807
        %v832 = vmul.f32 %v800, %v807
        %v833 = vsub.f32 %v571, %v808
        %v834 = vsub.f32 %v572, %v808
        %v835 = vsub.f32 %v573, %v808
        %v836 = vsub.f32 %v574, %v808
        %v837 = vsub.f32 %v575, %v809
        %v838 = vsub.f32 %v576, %v809
        %v839 = vsub.f32 %v577, %v809
        %v840 = vsub.f32 %v578, %v809
        %v841 = vsub.f32 %v579, %v810
        %v842 = vsub.f32 %v580, %v810
        %v843 = vsub.f32 %v581, %v810
        %v844 = vsub.f32 %v582, %v810
        %v845 = vsub.f32 %v583, %v811
        %v846 = vsub.f32 %v584, %v811
        %v847 = vsub.f32 %v585, %v811
        %v848 = vsub.f32 %v586, %v811
        %v849 = vsub.f32 %v587, %v812
        %v850 = vsub.f32 %v588, %v812
        %v851 = vsub.f32 %v589, %v812
        %v852 = vsub.f32 %v590, %v812
        %v853 = vsub.f32 %v591, %v813
        %v854 = vsub.f32 %v592, %v813
        %v855 = vsub.f32 %v593, %v813
        %v856 = vsub.f32 %v594, %v813
        %v857 = vsub.f32 %v595, %v814
        %v858 = vsub.f32 %v596, %v814
        %v859 = vsub.f32 %v597, %v814
        %v860 = vsub.f32 %v598, %v814
        %v861 = vsub.f32 %v599, %v815
        %v862 = vsub.f32 %v600, %v815
        %v863 = vsub.f32 %v601, %v815
        %v864 = vsub.f32 %v602, %v815
        %v865 = vsub.f32 %v603, %v816
        %v866 = vsub.f32 %v604, %v816
        %v867 = vsub.f32 %v605, %v816
        %v868 = vsub.f32 %v606, %v816
        %v869 = vsub.f32 %v607, %v817
        %v870 = vsub.f32 %v608, %v817
        %v871 = vsub.f32 %v609, %v817
        %v872 = vsub.f32 %v610, %v817
        %v873 = vsub.f32 %v611, %v818
        %v874 = vsub.f32 %v612, %v818
        %v875 = vsub.f32 %v613, %v818
        %v876 = vsub.f32 %v614, %v818
        %v877 = vsub.f32 %v615, %v819
        %v878 = vsub.f32 %v616, %v819
        %v879 = vsub.f32 %v617, %v819
        %v880 = vsub.f32 %v618, %v819
        %v881 = vsub.f32 %v619, %v820
        %v882 = vsub.f32 %v620, %v820
        %v883 = vsub.f32 %v621, %v820
        %v884 = vsub.f32 %v622, %v820
        %v885 = vsub.f32 %v623, %v821
        %v886 = vsub.f32 %v624, %v821
        %v887 = vsub.f32 %v625, %v821
        %v888 = vsub.f32 %v626, %v821
        %v889 = vsub.f32 %v627, %v822
        %v890 = vsub.f32 %v628, %v822
        %v891 = vsub.f32 %v629, %v822
        %v892 = vsub.f32 %v630, %v822
        %v893 = vsub.f32 %v631, %v823
        %v894 = vsub.f32 %v632, %v823
        %v895 = vsub.f32 %v633, %v823
        %v896 = vsub.f32 %v634, %v823
        %v897 = vsub.f32 %v635, %v824
        %v898 = vsub.f32 %v636, %v824
        %v899 = vsub.f32 %v637, %v824
        %v900 = vsub.f32 %v638, %v824
        %v901 = vsub.f32 %v639, %v825
        %v902 = vsub.f32 %v640, %v825
        %v903 = vsub.f32 %v641, %v825
        %v904 = vsub.f32 %v642, %v825
        %v905 = vsub.f32 %v643, %v826
        %v906 = vsub.f32 %v644, %v826
        %v907 = vsub.f32 %v645, %v826
        %v908 = vsub.f32 %v646, %v826
        %v909 = vsub.f32 %v647, %v827
        %v910 = vsub.f32 %v648, %v827
        %v911 = vsub.f32 %v649, %v827
        %v912 = vsub.f32 %v650, %v827
        %v913 = vsub.f32 %v651, %v828
        %v914 = vsub.f32 %v652, %v828
        %v915 = vsub.f32 %v653, %v828
        %v916 = vsub.f32 %v654, %v828
        %v917 = vsub.f32 %v655, %v829
        %v918 = vsub.f32 %v656, %v829
        %v919 = vsub.f32 %v657, %v829
        %v920 = vsub.f32 %v658, %v829
        %v921 = vsub.f32 %v659, %v830
        %v922 = vsub.f32 %v660, %v830
        %v923 = vsub.f32 %v661, %v830
        %v924 = vsub.f32 %v662, %v830
        %v925 = vsub.f32 %v663, %v831
        %v926 = vsub.f32 %v664, %v831
        %v927 = vsub.f32 %v665, %v831
        %v928 = vsub.f32 %v666, %v831
        %v929 = vsub.f32 %v667, %v832
        %v930 = vsub.f32 %v668, %v832
        %v931 = vsub.f32 %v669, %v832
        %v932 = vsub.f32 %v670, %v832
        %v933 = vmul.f32 %v833, %v833
        %v934 = vmul.f32 %v834, %v834
        %v935 = vmul.f32 %v835, %v835
        %v936 = vmul.f32 %v836, %v836
        %v937 = vmul.f32 %v837, %v837
        %v938 = vmul.f32 %v838, %v838
        %v939 = vmul.f32 %v839, %v839
        %v940 = vmul.f32 %v840, %v840
        %v941 = vmul.f32 %v841, %v841
        %v942 = vmul.f32 %v842, %v842
        %v943 = vmul.f32 %v843, %v843
        %v944 = vmul.f32 %v844, %v844
        %v945 = vmul.f32 %v845, %v845
        %v946 = vmul.f32 %v846, %v846
        %v947 = vmul.f32 %v847, %v847
        %v948 = vmul.f32 %v848, %v848
        %v949 = vmul.f32 %v849, %v849
        %v950 = vmul.f32 %v850, %v850
        %v951 = vmul.f32 %v851, %v851
        %v952 = vmul.f32 %v852, %v852
        %v953 = vmul.f32 %v853, %v853
        %v954 = vmul.f32 %v854, %v854
        %v955 = vmul.f32 %v855, %v855
        %v956 = vmul.f32 %v856, %v856
        %v957 = vmul.f32 %v857, %v857
        %v958 = vmul.f32 %v858, %v858
        %v959 = vmul.f32 %v859, %v859
        %v960 = vmul.f32 %v860, %v860
        %v961 = vmul.f32 %v861, %v861
        %v962 = vmul.f32 %v862, %v862
        %v963 = vmul.f32 %v863, %v863
        %v964 = vmul.f32 %v864, %v864
        %v965 = vmul.f32 %v865, %v865
        %v966 = vmul.f32 %v866, %v866
        %v967 = vmul.f32 %v867, %v867
        %v968 = vmul.f32 %v868, %v868
        %v969 = vmul.f32 %v869, %v869
        %v970 = vmul.f32 %v870, %v870
        %v971 = vmul.f32 %v871, %v871
        %v972 = vmul.f32 %v872, %v872
        %v973 = vmul.f32 %v873, %v873
        %v974 = vmul.f32 %v874, %v874
        %v975 = vmul.f32 %v875, %v875
        %v976 = vmul.f32 %v876, %v876
        %v977 = vmul.f32 %v877, %v877
        %v978 = vmul.f32 %v878, %v878
        %v979 = vmul.f32 %v879, %v879
        %v980 = vmul.f32 %v880, %v880
        %v981 = vmul.f32 %v881, %v881
        %v982 = vmul.f32 %v882, %v882
        %v983 = vmul.f32 %v883, %v883
        %v984 = vmul.f32 %v884, %v884
        %v985 = vmul.f32 %v885, %v885
        %v986 = vmul.f32 %v886, %v886
        %v987 = vmul.f32 %v887, %v887
        %v988 = vmul.f32 %v888, %v888
        %v989 = vmul.f32 %v889, %v889
        %v990 = vmul.f32 %v890, %v890
        %v991 = vmul.f32 %v891, %v891
        %v992 = vmul.f32 %v892, %v892
        %v993 = vmul.f32 %v893, %v893
        %v994 = vmul.f32 %v894, %v894
        %v995 = vmul.f32 %v895, %v895
        %v996 = vmul.f32 %v896, %v896
        %v997 = vmul.f32 %v897, %v897
        %v998 = vmul.f32 %v898, %v898
        %v999 = vmul.f32 %v899, %v899
        %v1000 = vmul.f32 %v900, %v900
        %v1001 = vmul.f32 %v901, %v901
        %v1002 = vmul.f32 %v902, %v902
        %v1003 = vmul.f32 %v903, %v903
        %v1004 = vmul.f32 %v904, %v904
        %v1005 = vmul.f32 %v905, %v905
        %v1006 = vmul.f32 %v906, %v906
        %v1007 = vmul.f32 %v907, %v907
        %v1008 = vmul.f32 %v908, %v908
        %v1009 = vmul.f32 %v909, %v909
        %v1010 = vmul.f32 %v910, %v910
        %v1011 = vmul.f32 %v911, %v911
        %v1012 = vmul.f32 %v912, %v912
        %v1013 = vmul.f32 %v913, %v913
        %v1014 = vmul.f32 %v914, %v914
        %v1015 = vmul.f32 %v915, %v915
        %v1016 = vmul.f32 %v916, %v916
        %v1017 = vmul.f32 %v917, %v917
        %v1018 = vmul.f32 %v918, %v918
        %v1019 = vmul.f32 %v919, %v919
        %v1020 = vmul.f32 %v920, %v920
        %v1021 = vmul.f32 %v921, %v921
        %v1022 = vmul.f32 %v922, %v922
        %v1023 = vmul.f32 %v923, %v923
        %v1024 = vmul.f32 %v924, %v924
        %v1025 = vmul.f32 %v925, %v925
        %v1026 = vmul.f32 %v926, %v926
        %v1027 = vmul.f32 %v927, %v927
        %v1028 = vmul.f32 %v928, %v928
        %v1029 = vmul.f32 %v929, %v929
        %v1030 = vmul.f32 %v930, %v930
        %v1031 = vmul.f32 %v931, %v931
        %v1032 = vmul.f32 %v932, %v932
        %v1033 = vadd.f32 %v933, %v934
        %v1034 = vadd.f32 %v1033, %v935
        %v1035 = vadd.f32 %v1034, %v936
        %1036 = vadd.xlane.f32.xlu0 %v1035
        %v1037 = vpop.xlane.xlu0 %1036
        %v1038 = vadd.f32 %v937, %v938
        %v1039 = vadd.f32 %v1038, %v939
        %v1040 = vadd.f32 %v1039, %v940
        %1041 = vadd.xlane.f32.xlu0 %v1040
        %v1042 = vpop.xlane.xlu0 %1041
        %v1043 = vadd.f32 %v941, %v942
        %v1044 = vadd.f32 %v1043, %v943
        %v1045 = vadd.f32 %v1044, %v944
        %1046 = vadd.xlane.f32.xlu0 %v1045
        %v1047 = vpop.xlane.xlu0 %1046
        %v1048 = vadd.f32 %v945, %v946
        %v1049 = vadd.f32 %v1048, %v947
        %v1050 = vadd.f32 %v1049, %v948
        %1051 = vadd.xlane.f32.xlu0 %v1050
        %v1052 = vpop.xlane.xlu0 %1051
        %v1053 = vadd.f32 %v949, %v950
        %v1054 = vadd.f32 %v1053, %v951
        %v1055 = vadd.f32 %v1054, %v952
        %1056 = vadd.xlane.f32.xlu0 %v1055
        %v1057 = vpop.xlane.xlu0 %1056
        %v1058 = vadd.f32 %v953, %v954
        %v1059 = vadd.f32 %v1058, %v955
        %v1060 = vadd.f32 %v1059, %v956
        %1061 = vadd.xlane.f32.xlu0 %v1060
        %v1062 = vpop.xlane.xlu0 %1061
        %v1063 = vadd.f32 %v957, %v958
        %v1064 = vadd.f32 %v1063, %v959
        %v1065 = vadd.f32 %v1064, %v960
        %1066 = vadd.xlane.f32.xlu0 %v1065
        %v1067 = vpop.xlane.xlu0 %1066
        %v1068 = vadd.f32 %v961, %v962
        %v1069 = vadd.f32 %v1068, %v963
        %v1070 = vadd.f32 %v1069, %v964
        %1071 = vadd.xlane.f32.xlu0 %v1070
        %v1072 = vpop.xlane.xlu0 %1071
        %v1073 = vadd.f32 %v965, %v966
        %v1074 = vadd.f32 %v1073, %v967
        %v1075 = vadd.f32 %v1074, %v968
        %1076 = vadd.xlane.f32.xlu0 %v1075
        %v1077 = vpop.xlane.xlu0 %1076
        %v1078 = vadd.f32 %v969, %v970
        %v1079 = vadd.f32 %v1078, %v971
        %v1080 = vadd.f32 %v1079, %v972
        %1081 = vadd.xlane.f32.xlu0 %v1080
        %v1082 = vpop.xlane.xlu0 %1081
        %v1083 = vadd.f32 %v973, %v974
        %v1084 = vadd.f32 %v1083, %v975
        %v1085 = vadd.f32 %v1084, %v976
        %1086 = vadd.xlane.f32.xlu0 %v1085
        %v1087 = vpop.xlane.xlu0 %1086
        %v1088 = vadd.f32 %v977, %v978
        %v1089 = vadd.f32 %v1088, %v979
        %v1090 = vadd.f32 %v1089, %v980
        %1091 = vadd.xlane.f32.xlu0 %v1090
        %v1092 = vpop.xlane.xlu0 %1091
        %v1093 = vadd.f32 %v981, %v982
        %v1094 = vadd.f32 %v1093, %v983
        %v1095 = vadd.f32 %v1094, %v984
        %1096 = vadd.xlane.f32.xlu0 %v1095
        %v1097 = vpop.xlane.xlu0 %1096
        %v1098 = vadd.f32 %v985, %v986
        %v1099 = vadd.f32 %v1098, %v987
        %v1100 = vadd.f32 %v1099, %v988
        %1101 = vadd.xlane.f32.xlu0 %v1100
        %v1102 = vpop.xlane.xlu0 %1101
        %v1103 = vadd.f32 %v989, %v990
        %v1104 = vadd.f32 %v1103, %v991
        %v1105 = vadd.f32 %v1104, %v992
        %1106 = vadd.xlane.f32.xlu0 %v1105
        %v1107 = vpop.xlane.xlu0 %1106
        %v1108 = vadd.f32 %v993, %v994
        %v1109 = vadd.f32 %v1108, %v995
        %v1110 = vadd.f32 %v1109, %v996
        %1111 = vadd.xlane.f32.xlu0 %v1110
        %v1112 = vpop.xlane.xlu0 %1111
        %v1113 = vadd.f32 %v997, %v998
        %v1114 = vadd.f32 %v1113, %v999
        %v1115 = vadd.f32 %v1114, %v1000
        %1116 = vadd.xlane.f32.xlu0 %v1115
        %v1117 = vpop.xlane.xlu0 %1116
        %v1118 = vadd.f32 %v1001, %v1002
        %v1119 = vadd.f32 %v1118, %v1003
        %v1120 = vadd.f32 %v1119, %v1004
        %1121 = vadd.xlane.f32.xlu0 %v1120
        %v1122 = vpop.xlane.xlu0 %1121
        %v1123 = vadd.f32 %v1005, %v1006
        %v1124 = vadd.f32 %v1123, %v1007
        %v1125 = vadd.f32 %v1124, %v1008
        %1126 = vadd.xlane.f32.xlu0 %v1125
        %v1127 = vpop.xlane.xlu0 %1126
        %v1128 = vadd.f32 %v1009, %v1010
        %v1129 = vadd.f32 %v1128, %v1011
        %v1130 = vadd.f32 %v1129, %v1012
        %1131 = vadd.xlane.f32.xlu0 %v1130
        %v1132 = vpop.xlane.xlu0 %1131
        %v1133 = vadd.f32 %v1013, %v1014
        %v1134 = vadd.f32 %v1133, %v1015
        %v1135 = vadd.f32 %v1134, %v1016
        %1136 = vadd.xlane.f32.xlu0 %v1135
        %v1137 = vpop.xlane.xlu0 %1136
        %v1138 = vadd.f32 %v1017, %v1018
        %v1139 = vadd.f32 %v1138, %v1019
        %v1140 = vadd.f32 %v1139, %v1020
        %1141 = vadd.xlane.f32.xlu0 %v1140
        %v1142 = vpop.xlane.xlu0 %1141
        %v1143 = vadd.f32 %v1021, %v1022
        %v1144 = vadd.f32 %v1143, %v1023
        %v1145 = vadd.f32 %v1144, %v1024
        %1146 = vadd.xlane.f32.xlu0 %v1145
        %v1147 = vpop.xlane.xlu0 %1146
        %v1148 = vadd.f32 %v1025, %v1026
        %v1149 = vadd.f32 %v1148, %v1027
        %v1150 = vadd.f32 %v1149, %v1028
        %1151 = vadd.xlane.f32.xlu0 %v1150
        %v1152 = vpop.xlane.xlu0 %1151
        %v1153 = vsel %vm791, %v1029, 0.0
        %v1154 = vsel %vm791, %v1030, 0.0
        %v1155 = vadd.f32 %v1153, %v1154
        %v1156 = vsel %vm791, %v1031, 0.0
        %v1157 = vadd.f32 %v1155, %v1156
        %v1158 = vsel %vm791, %v1032, 0.0
        %v1159 = vadd.f32 %v1157, %v1158
        %1160 = vadd.xlane.f32.xlu0 %v1159
        %v1161 = vpop.xlane.xlu0 %1160
        %v1162 = vmul.f32 %v1037, %v807
        %v1163 = vmul.f32 %v1042, %v807
        %v1164 = vmul.f32 %v1047, %v807
        %v1165 = vmul.f32 %v1052, %v807
        %v1166 = vmul.f32 %v1057, %v807
        %v1167 = vmul.f32 %v1062, %v807
        %v1168 = vmul.f32 %v1067, %v807
        %v1169 = vmul.f32 %v1072, %v807
        %v1170 = vmul.f32 %v1077, %v807
        %v1171 = vmul.f32 %v1082, %v807
        %v1172 = vmul.f32 %v1087, %v807
        %v1173 = vmul.f32 %v1092, %v807
        %v1174 = vmul.f32 %v1097, %v807
        %v1175 = vmul.f32 %v1102, %v807
        %v1176 = vmul.f32 %v1107, %v807
        %v1177 = vmul.f32 %v1112, %v807
        %v1178 = vmul.f32 %v1117, %v807
        %v1179 = vmul.f32 %v1122, %v807
        %v1180 = vmul.f32 %v1127, %v807
        %v1181 = vmul.f32 %v1132, %v807
        %v1182 = vmul.f32 %v1137, %v807
        %v1183 = vmul.f32 %v1142, %v807
        %v1184 = vmul.f32 %v1147, %v807
        %v1185 = vmul.f32 %v1152, %v807
        %v1186 = vmul.f32 %v1161, %v807
        %v1187 = vadd.f32 %v1162, 1e-05
        %v1188 = vadd.f32 %v1163, 1e-05
        %v1189 = vadd.f32 %v1164, 1e-05
        %v1190 = vadd.f32 %v1165, 1e-05
        %v1191 = vadd.f32 %v1166, 1e-05
        %v1192 = vadd.f32 %v1167, 1e-05
        %v1193 = vadd.f32 %v1168, 1e-05
        %v1194 = vadd.f32 %v1169, 1e-05
        %v1195 = vadd.f32 %v1170, 1e-05
        %v1196 = vadd.f32 %v1171, 1e-05
        %v1197 = vadd.f32 %v1172, 1e-05
        %v1198 = vadd.f32 %v1173, 1e-05
        %v1199 = vadd.f32 %v1174, 1e-05
        %v1200 = vadd.f32 %v1175, 1e-05
        %v1201 = vadd.f32 %v1176, 1e-05
        %v1202 = vadd.f32 %v1177, 1e-05
        %v1203 = vadd.f32 %v1178, 1e-05
        %v1204 = vadd.f32 %v1179, 1e-05
        %v1205 = vadd.f32 %v1180, 1e-05
        %v1206 = vadd.f32 %v1181, 1e-05
        %v1207 = vadd.f32 %v1182, 1e-05
        %v1208 = vadd.f32 %v1183, 1e-05
        %v1209 = vadd.f32 %v1184, 1e-05
        %v1210 = vadd.f32 %v1185, 1e-05
        %v1211 = vadd.f32 %v1186, 1e-05
        %v1212 = vrsqrt.pop %v1187
        %v1213 = vmul.f32 %v1212, %v1187
        %v1214 = vmul.f32 %v1213, %v1212
        %v1215 = vmul.f32 0.5, %v1214
        %v1216 = vsub.f32 1.5, %v1215
        %v1217 = vmul.f32 %v1212, %v1216
        %vm1218 = vweird.f32 %v1187
        %vm1219 = vweird.f32 %v1212
        %vm1220 = vmor %vm1218, %vm1219
        %v1221 = vsel %vm1220, %v1212, %v1217
        %v1222 = vrsqrt.pop %v1188
        %v1223 = vmul.f32 %v1222, %v1188
        %v1224 = vmul.f32 %v1223, %v1222
        %v1225 = vmul.f32 0.5, %v1224
        %v1226 = vsub.f32 1.5, %v1225
        %v1227 = vmul.f32 %v1222, %v1226
        %vm1228 = vweird.f32 %v1188
        %vm1229 = vweird.f32 %v1222
        %vm1230 = vmor %vm1228, %vm1229
        %v1231 = vsel %vm1230, %v1222, %v1227
        %v1232 = vrsqrt.pop %v1189
        %v1233 = vmul.f32 %v1232, %v1189
        %v1234 = vmul.f32 %v1233, %v1232
        %v1235 = vmul.f32 0.5, %v1234
        %v1236 = vsub.f32 1.5, %v1235
        %v1237 = vmul.f32 %v1232, %v1236
        %vm1238 = vweird.f32 %v1189
        %vm1239 = vweird.f32 %v1232
        %vm1240 = vmor %vm1238, %vm1239
        %v1241 = vsel %vm1240, %v1232, %v1237
        %v1242 = vrsqrt.pop %v1190
        %v1243 = vmul.f32 %v1242, %v1190
        %v1244 = vmul.f32 %v1243, %v1242
        %v1245 = vmul.f32 0.5, %v1244
        %v1246 = vsub.f32 1.5, %v1245
        %v1247 = vmul.f32 %v1242, %v1246
        %vm1248 = vweird.f32 %v1190
        %vm1249 = vweird.f32 %v1242
        %vm1250 = vmor %vm1248, %vm1249
        %v1251 = vsel %vm1250, %v1242, %v1247
        %v1252 = vrsqrt.pop %v1191
        %v1253 = vmul.f32 %v1252, %v1191
        %v1254 = vmul.f32 %v1253, %v1252
        %v1255 = vmul.f32 0.5, %v1254
        %v1256 = vsub.f32 1.5, %v1255
        %v1257 = vmul.f32 %v1252, %v1256
        %vm1258 = vweird.f32 %v1191
        %vm1259 = vweird.f32 %v1252
        %vm1260 = vmor %vm1258, %vm1259
        %v1261 = vsel %vm1260, %v1252, %v1257
        %v1262 = vrsqrt.pop %v1192
        %v1263 = vmul.f32 %v1262, %v1192
        %v1264 = vmul.f32 %v1263, %v1262
        %v1265 = vmul.f32 0.5, %v1264
        %v1266 = vsub.f32 1.5, %v1265
        %v1267 = vmul.f32 %v1262, %v1266
        %vm1268 = vweird.f32 %v1192
        %vm1269 = vweird.f32 %v1262
        %vm1270 = vmor %vm1268, %vm1269
        %v1271 = vsel %vm1270, %v1262, %v1267
        %v1272 = vrsqrt.pop %v1193
        %v1273 = vmul.f32 %v1272, %v1193
        %v1274 = vmul.f32 %v1273, %v1272
        %v1275 = vmul.f32 0.5, %v1274
        %v1276 = vsub.f32 1.5, %v1275
        %v1277 = vmul.f32 %v1272, %v1276
        %vm1278 = vweird.f32 %v1193
        %vm1279 = vweird.f32 %v1272
        %vm1280 = vmor %vm1278, %vm1279
        %v1281 = vsel %vm1280, %v1272, %v1277
        %v1282 = vrsqrt.pop %v1194
        %v1283 = vmul.f32 %v1282, %v1194
        %v1284 = vmul.f32 %v1283, %v1282
        %v1285 = vmul.f32 0.5, %v1284
        %v1286 = vsub.f32 1.5, %v1285
        %v1287 = vmul.f32 %v1282, %v1286
        %vm1288 = vweird.f32 %v1194
        %vm1289 = vweird.f32 %v1282
        %vm1290 = vmor %vm1288, %vm1289
        %v1291 = vsel %vm1290, %v1282, %v1287
        %v1292 = vrsqrt.pop %v1195
        %v1293 = vmul.f32 %v1292, %v1195
        %v1294 = vmul.f32 %v1293, %v1292
        %v1295 = vmul.f32 0.5, %v1294
        %v1296 = vsub.f32 1.5, %v1295
        %v1297 = vmul.f32 %v1292, %v1296
        %vm1298 = vweird.f32 %v1195
        %vm1299 = vweird.f32 %v1292
        %vm1300 = vmor %vm1298, %vm1299
        %v1301 = vsel %vm1300, %v1292, %v1297
        %v1302 = vrsqrt.pop %v1196
        %v1303 = vmul.f32 %v1302, %v1196
        %v1304 = vmul.f32 %v1303, %v1302
        %v1305 = vmul.f32 0.5, %v1304
        %v1306 = vsub.f32 1.5, %v1305
        %v1307 = vmul.f32 %v1302, %v1306
        %vm1308 = vweird.f32 %v1196
        %vm1309 = vweird.f32 %v1302
        %vm1310 = vmor %vm1308, %vm1309
        %v1311 = vsel %vm1310, %v1302, %v1307
        %v1312 = vrsqrt.pop %v1197
        %v1313 = vmul.f32 %v1312, %v1197
        %v1314 = vmul.f32 %v1313, %v1312
        %v1315 = vmul.f32 0.5, %v1314
        %v1316 = vsub.f32 1.5, %v1315
        %v1317 = vmul.f32 %v1312, %v1316
        %vm1318 = vweird.f32 %v1197
        %vm1319 = vweird.f32 %v1312
        %vm1320 = vmor %vm1318, %vm1319
        %v1321 = vsel %vm1320, %v1312, %v1317
        %v1322 = vrsqrt.pop %v1198
        %v1323 = vmul.f32 %v1322, %v1198
        %v1324 = vmul.f32 %v1323, %v1322
        %v1325 = vmul.f32 0.5, %v1324
        %v1326 = vsub.f32 1.5, %v1325
        %v1327 = vmul.f32 %v1322, %v1326
        %vm1328 = vweird.f32 %v1198
        %vm1329 = vweird.f32 %v1322
        %vm1330 = vmor %vm1328, %vm1329
        %v1331 = vsel %vm1330, %v1322, %v1327
        %v1332 = vrsqrt.pop %v1199
        %v1333 = vmul.f32 %v1332, %v1199
        %v1334 = vmul.f32 %v1333, %v1332
        %v1335 = vmul.f32 0.5, %v1334
        %v1336 = vsub.f32 1.5, %v1335
        %v1337 = vmul.f32 %v1332, %v1336
        %vm1338 = vweird.f32 %v1199
        %vm1339 = vweird.f32 %v1332
        %vm1340 = vmor %vm1338, %vm1339
        %v1341 = vsel %vm1340, %v1332, %v1337
        %v1342 = vrsqrt.pop %v1200
        %v1343 = vmul.f32 %v1342, %v1200
        %v1344 = vmul.f32 %v1343, %v1342
        %v1345 = vmul.f32 0.5, %v1344
        %v1346 = vsub.f32 1.5, %v1345
        %v1347 = vmul.f32 %v1342, %v1346
        %vm1348 = vweird.f32 %v1200
        %vm1349 = vweird.f32 %v1342
        %vm1350 = vmor %vm1348, %vm1349
        %v1351 = vsel %vm1350, %v1342, %v1347
        %v1352 = vrsqrt.pop %v1201
        %v1353 = vmul.f32 %v1352, %v1201
        %v1354 = vmul.f32 %v1353, %v1352
        %v1355 = vmul.f32 0.5, %v1354
        %v1356 = vsub.f32 1.5, %v1355
        %v1357 = vmul.f32 %v1352, %v1356
        %vm1358 = vweird.f32 %v1201
        %vm1359 = vweird.f32 %v1352
        %vm1360 = vmor %vm1358, %vm1359
        %v1361 = vsel %vm1360, %v1352, %v1357
        %v1362 = vrsqrt.pop %v1202
        %v1363 = vmul.f32 %v1362, %v1202
        %v1364 = vmul.f32 %v1363, %v1362
        %v1365 = vmul.f32 0.5, %v1364
        %v1366 = vsub.f32 1.5, %v1365
        %v1367 = vmul.f32 %v1362, %v1366
        %vm1368 = vweird.f32 %v1202
        %vm1369 = vweird.f32 %v1362
        %vm1370 = vmor %vm1368, %vm1369
        %v1371 = vsel %vm1370, %v1362, %v1367
        %v1372 = vrsqrt.pop %v1203
        %v1373 = vmul.f32 %v1372, %v1203
        %v1374 = vmul.f32 %v1373, %v1372
        %v1375 = vmul.f32 0.5, %v1374
        %v1376 = vsub.f32 1.5, %v1375
        %v1377 = vmul.f32 %v1372, %v1376
        %vm1378 = vweird.f32 %v1203
        %vm1379 = vweird.f32 %v1372
        %vm1380 = vmor %vm1378, %vm1379
        %v1381 = vsel %vm1380, %v1372, %v1377
        %v1382 = vrsqrt.pop %v1204
        %v1383 = vmul.f32 %v1382, %v1204
        %v1384 = vmul.f32 %v1383, %v1382
        %v1385 = vmul.f32 0.5, %v1384
        %v1386 = vsub.f32 1.5, %v1385
        %v1387 = vmul.f32 %v1382, %v1386
        %vm1388 = vweird.f32 %v1204
        %vm1389 = vweird.f32 %v1382
        %vm1390 = vmor %vm1388, %vm1389
        %v1391 = vsel %vm1390, %v1382, %v1387
        %v1392 = vrsqrt.pop %v1205
        %v1393 = vmul.f32 %v1392, %v1205
        %v1394 = vmul.f32 %v1393, %v1392
        %v1395 = vmul.f32 0.5, %v1394
        %v1396 = vsub.f32 1.5, %v1395
        %v1397 = vmul.f32 %v1392, %v1396
        %vm1398 = vweird.f32 %v1205
        %vm1399 = vweird.f32 %v1392
        %vm1400 = vmor %vm1398, %vm1399
        %v1401 = vsel %vm1400, %v1392, %v1397
        %v1402 = vrsqrt.pop %v1206
        %v1403 = vmul.f32 %v1402, %v1206
        %v1404 = vmul.f32 %v1403, %v1402
        %v1405 = vmul.f32 0.5, %v1404
        %v1406 = vsub.f32 1.5, %v1405
        %v1407 = vmul.f32 %v1402, %v1406
        %vm1408 = vweird.f32 %v1206
        %vm1409 = vweird.f32 %v1402
        %vm1410 = vmor %vm1408, %vm1409
        %v1411 = vsel %vm1410, %v1402, %v1407
        %v1412 = vrsqrt.pop %v1207
        %v1413 = vmul.f32 %v1412, %v1207
        %v1414 = vmul.f32 %v1413, %v1412
        %v1415 = vmul.f32 0.5, %v1414
        %v1416 = vsub.f32 1.5, %v1415
        %v1417 = vmul.f32 %v1412, %v1416
        %vm1418 = vweird.f32 %v1207
        %vm1419 = vweird.f32 %v1412
        %vm1420 = vmor %vm1418, %vm1419
        %v1421 = vsel %vm1420, %v1412, %v1417
        %v1422 = vrsqrt.pop %v1208
        %v1423 = vmul.f32 %v1422, %v1208
        %v1424 = vmul.f32 %v1423, %v1422
        %v1425 = vmul.f32 0.5, %v1424
        %v1426 = vsub.f32 1.5, %v1425
        %v1427 = vmul.f32 %v1422, %v1426
        %vm1428 = vweird.f32 %v1208
        %vm1429 = vweird.f32 %v1422
        %vm1430 = vmor %vm1428, %vm1429
        %v1431 = vsel %vm1430, %v1422, %v1427
        %v1432 = vrsqrt.pop %v1209
        %v1433 = vmul.f32 %v1432, %v1209
        %v1434 = vmul.f32 %v1433, %v1432
        %v1435 = vmul.f32 0.5, %v1434
        %v1436 = vsub.f32 1.5, %v1435
        %v1437 = vmul.f32 %v1432, %v1436
        %vm1438 = vweird.f32 %v1209
        %vm1439 = vweird.f32 %v1432
        %vm1440 = vmor %vm1438, %vm1439
        %v1441 = vsel %vm1440, %v1432, %v1437
        %v1442 = vrsqrt.pop %v1210
        %v1443 = vmul.f32 %v1442, %v1210
        %v1444 = vmul.f32 %v1443, %v1442
        %v1445 = vmul.f32 0.5, %v1444
        %v1446 = vsub.f32 1.5, %v1445
        %v1447 = vmul.f32 %v1442, %v1446
        %vm1448 = vweird.f32 %v1210
        %vm1449 = vweird.f32 %v1442
        %vm1450 = vmor %vm1448, %vm1449
        %v1451 = vsel %vm1450, %v1442, %v1447
        %v1452 = vrsqrt.pop %v1211
        %v1453 = vmul.f32 %v1452, %v1211
        %v1454 = vmul.f32 %v1453, %v1452
        %v1455 = vmul.f32 0.5, %v1454
        %v1456 = vsub.f32 1.5, %v1455
        %v1457 = vmul.f32 %v1452, %v1456
        %vm1458 = vweird.f32 %v1211
        %vm1459 = vweird.f32 %v1452
        %vm1460 = vmor %vm1458, %vm1459
        %v1461 = vsel %vm1460, %v1452, %v1457
        %v1462 = vmul.f32 %v833, %v1221
        %v1463 = vmul.f32 %v834, %v1221
        %v1464 = vmul.f32 %v835, %v1221
        %v1465 = vmul.f32 %v836, %v1221
        %v1466 = vmul.f32 %v837, %v1231
        %v1467 = vmul.f32 %v838, %v1231
        %v1468 = vmul.f32 %v839, %v1231
        %v1469 = vmul.f32 %v840, %v1231
        %v1470 = vmul.f32 %v841, %v1241
        %v1471 = vmul.f32 %v842, %v1241
        %v1472 = vmul.f32 %v843, %v1241
        %v1473 = vmul.f32 %v844, %v1241
        %v1474 = vmul.f32 %v845, %v1251
        %v1475 = vmul.f32 %v846, %v1251
        %v1476 = vmul.f32 %v847, %v1251
        %v1477 = vmul.f32 %v848, %v1251
        %v1478 = vmul.f32 %v849, %v1261
        %v1479 = vmul.f32 %v850, %v1261
        %v1480 = vmul.f32 %v851, %v1261
        %v1481 = vmul.f32 %v852, %v1261
        %v1482 = vmul.f32 %v853, %v1271
        %v1483 = vmul.f32 %v854, %v1271
        %v1484 = vmul.f32 %v855, %v1271
        %v1485 = vmul.f32 %v856, %v1271
        %v1486 = vmul.f32 %v857, %v1281
        %v1487 = vmul.f32 %v858, %v1281
        %v1488 = vmul.f32 %v859, %v1281
        %v1489 = vmul.f32 %v860, %v1281
        %v1490 = vmul.f32 %v861, %v1291
        %v1491 = vmul.f32 %v862, %v1291
        %v1492 = vmul.f32 %v863, %v1291
        %v1493 = vmul.f32 %v864, %v1291
        %v1494 = vmul.f32 %v865, %v1301
        %v1495 = vmul.f32 %v866, %v1301
        %v1496 = vmul.f32 %v867, %v1301
        %v1497 = vmul.f32 %v868, %v1301
        %v1498 = vmul.f32 %v869, %v1311
        %v1499 = vmul.f32 %v870, %v1311
        %v1500 = vmul.f32 %v871, %v1311
        %v1501 = vmul.f32 %v872, %v1311
        %v1502 = vmul.f32 %v873, %v1321
        %v1503 = vmul.f32 %v874, %v1321
        %v1504 = vmul.f32 %v875, %v1321
        %v1505 = vmul.f32 %v876, %v1321
        %v1506 = vmul.f32 %v877, %v1331
        %v1507 = vmul.f32 %v878, %v1331
        %v1508 = vmul.f32 %v879, %v1331
        %v1509 = vmul.f32 %v880, %v1331
        %v1510 = vmul.f32 %v881, %v1341
        %v1511 = vmul.f32 %v882, %v1341
        %v1512 = vmul.f32 %v883, %v1341
        %v1513 = vmul.f32 %v884, %v1341
        %v1514 = vmul.f32 %v885, %v1351
        %v1515 = vmul.f32 %v886, %v1351
        %v1516 = vmul.f32 %v887, %v1351
        %v1517 = vmul.f32 %v888, %v1351
        %v1518 = vmul.f32 %v889, %v1361
        %v1519 = vmul.f32 %v890, %v1361
        %v1520 = vmul.f32 %v891, %v1361
        %v1521 = vmul.f32 %v892, %v1361
        %v1522 = vmul.f32 %v893, %v1371
        %v1523 = vmul.f32 %v894, %v1371
        %v1524 = vmul.f32 %v895, %v1371
        %v1525 = vmul.f32 %v896, %v1371
        %v1526 = vmul.f32 %v897, %v1381
        %v1527 = vmul.f32 %v898, %v1381
        %v1528 = vmul.f32 %v899, %v1381
        %v1529 = vmul.f32 %v900, %v1381
        %v1530 = vmul.f32 %v901, %v1391
        %v1531 = vmul.f32 %v902, %v1391
        %v1532 = vmul.f32 %v903, %v1391
        %v1533 = vmul.f32 %v904, %v1391
        %v1534 = vmul.f32 %v905, %v1401
        %v1535 = vmul.f32 %v906, %v1401
        %v1536 = vmul.f32 %v907, %v1401
        %v1537 = vmul.f32 %v908, %v1401
        %v1538 = vmul.f32 %v909, %v1411
        %v1539 = vmul.f32 %v910, %v1411
        %v1540 = vmul.f32 %v911, %v1411
        %v1541 = vmul.f32 %v912, %v1411
        %v1542 = vmul.f32 %v913, %v1421
        %v1543 = vmul.f32 %v914, %v1421
        %v1544 = vmul.f32 %v915, %v1421
        %v1545 = vmul.f32 %v916, %v1421
        %v1546 = vmul.f32 %v917, %v1431
        %v1547 = vmul.f32 %v918, %v1431
        %v1548 = vmul.f32 %v919, %v1431
        %v1549 = vmul.f32 %v920, %v1431
        %v1550 = vmul.f32 %v921, %v1441
        %v1551 = vmul.f32 %v922, %v1441
        %v1552 = vmul.f32 %v923, %v1441
        %v1553 = vmul.f32 %v924, %v1441
        %v1554 = vmul.f32 %v925, %v1451
        %v1555 = vmul.f32 %v926, %v1451
        %v1556 = vmul.f32 %v927, %v1451
        %v1557 = vmul.f32 %v928, %v1451
        %v1558 = vmul.f32 %v929, %v1461
        %v1559 = vmul.f32 %v930, %v1461
        %v1560 = vmul.f32 %v931, %v1461
        %v1561 = vmul.f32 %v932, %v1461
        %v1562 = vld [vmem:[#allocation7] sm:$0xf]
        %v1564 = vperm.slane %v1562, 0
        %v1565 = vperm.slane %v1562, 1
        %v1566 = vperm.slane %v1562, 2
        %v1567 = vperm.slane %v1562, 3
        %v1572 = vmul.f32 %v1462, %v1564
        %v1573 = vmul.f32 %v1463, %v1565
        %v1574 = vmul.f32 %v1464, %v1566
        %v1575 = vmul.f32 %v1465, %v1567
        %v1576 = vmul.f32 %v1466, %v1564
        %v1577 = vmul.f32 %v1467, %v1565
        %v1578 = vmul.f32 %v1468, %v1566
        %v1579 = vmul.f32 %v1469, %v1567
        %v1580 = vmul.f32 %v1470, %v1564
        %v1581 = vmul.f32 %v1471, %v1565
        %v1582 = vmul.f32 %v1472, %v1566
        %v1583 = vmul.f32 %v1473, %v1567
        %v1584 = vmul.f32 %v1474, %v1564
        %v1585 = vmul.f32 %v1475, %v1565
        %v1586 = vmul.f32 %v1476, %v1566
        %v1587 = vmul.f32 %v1477, %v1567
        %v1588 = vmul.f32 %v1478, %v1564
        %v1589 = vmul.f32 %v1479, %v1565
        %v1590 = vmul.f32 %v1480, %v1566
        %v1591 = vmul.f32 %v1481, %v1567
        %v1592 = vmul.f32 %v1482, %v1564
        %v1593 = vmul.f32 %v1483, %v1565
        %v1594 = vmul.f32 %v1484, %v1566
        %v1595 = vmul.f32 %v1485, %v1567
        %v1596 = vmul.f32 %v1486, %v1564
        %v1597 = vmul.f32 %v1487, %v1565
        %v1598 = vmul.f32 %v1488, %v1566
        %v1599 = vmul.f32 %v1489, %v1567
        %v1600 = vmul.f32 %v1490, %v1564
        %v1601 = vmul.f32 %v1491, %v1565
        %v1602 = vmul.f32 %v1492, %v1566
        %v1603 = vmul.f32 %v1493, %v1567
        %v1604 = vmul.f32 %v1494, %v1564
        %v1605 = vmul.f32 %v1495, %v1565
        %v1606 = vmul.f32 %v1496, %v1566
        %v1607 = vmul.f32 %v1497, %v1567
        %v1608 = vmul.f32 %v1498, %v1564
        %v1609 = vmul.f32 %v1499, %v1565
        %v1610 = vmul.f32 %v1500, %v1566
        %v1611 = vmul.f32 %v1501, %v1567
        %v1612 = vmul.f32 %v1502, %v1564
        %v1613 = vmul.f32 %v1503, %v1565
        %v1614 = vmul.f32 %v1504, %v1566
        %v1615 = vmul.f32 %v1505, %v1567
        %v1616 = vmul.f32 %v1506, %v1564
        %v1617 = vmul.f32 %v1507, %v1565
        %v1618 = vmul.f32 %v1508, %v1566
        %v1619 = vmul.f32 %v1509, %v1567
        %v1620 = vmul.f32 %v1510, %v1564
        %v1621 = vmul.f32 %v1511, %v1565
        %v1622 = vmul.f32 %v1512, %v1566
        %v1623 = vmul.f32 %v1513, %v1567
        %v1624 = vmul.f32 %v1514, %v1564
        %v1625 = vmul.f32 %v1515, %v1565
        %v1626 = vmul.f32 %v1516, %v1566
        %v1627 = vmul.f32 %v1517, %v1567
        %v1628 = vmul.f32 %v1518, %v1564
        %v1629 = vmul.f32 %v1519, %v1565
        %v1630 = vmul.f32 %v1520, %v1566
        %v1631 = vmul.f32 %v1521, %v1567
        %v1632 = vmul.f32 %v1522, %v1564
        %v1633 = vmul.f32 %v1523, %v1565
        %v1634 = vmul.f32 %v1524, %v1566
        %v1635 = vmul.f32 %v1525, %v1567
        %v1636 = vmul.f32 %v1526, %v1564
        %v1637 = vmul.f32 %v1527, %v1565
        %v1638 = vmul.f32 %v1528, %v1566
        %v1639 = vmul.f32 %v1529, %v1567
        %v1640 = vmul.f32 %v1530, %v1564
        %v1641 = vmul.f32 %v1531, %v1565
        %v1642 = vmul.f32 %v1532, %v1566
        %v1643 = vmul.f32 %v1533, %v1567
        %v1644 = vmul.f32 %v1534, %v1564
        %v1645 = vmul.f32 %v1535, %v1565
        %v1646 = vmul.f32 %v1536, %v1566
        %v1647 = vmul.f32 %v1537, %v1567
        %v1648 = vmul.f32 %v1538, %v1564
        %v1649 = vmul.f32 %v1539, %v1565
        %v1650 = vmul.f32 %v1540, %v1566
        %v1651 = vmul.f32 %v1541, %v1567
        %v1652 = vmul.f32 %v1542, %v1564
        %v1653 = vmul.f32 %v1543, %v1565
        %v1654 = vmul.f32 %v1544, %v1566
        %v1655 = vmul.f32 %v1545, %v1567
        %v1656 = vmul.f32 %v1546, %v1564
        %v1657 = vmul.f32 %v1547, %v1565
        %v1658 = vmul.f32 %v1548, %v1566
        %v1659 = vmul.f32 %v1549, %v1567
        %v1660 = vmul.f32 %v1550, %v1564
        %v1661 = vmul.f32 %v1551, %v1565
        %v1662 = vmul.f32 %v1552, %v1566
        %v1663 = vmul.f32 %v1553, %v1567
        %v1664 = vmul.f32 %v1554, %v1564
        %v1665 = vmul.f32 %v1555, %v1565
        %v1666 = vmul.f32 %v1556, %v1566
        %v1667 = vmul.f32 %v1557, %v1567
        %v1668 = vmul.f32 %v1558, %v1564
        %v1669 = vmul.f32 %v1559, %v1565
        %v1670 = vmul.f32 %v1560, %v1566
        %v1671 = vmul.f32 %v1561, %v1567
        %v1672 = vld [vmem:[#allocation8] sm:$0xf]
        %v1674 = vperm.slane %v1672, 0
        %v1675 = vperm.slane %v1672, 1
        %v1676 = vperm.slane %v1672, 2
        %v1677 = vperm.slane %v1672, 3
        %v1682 = vadd.f32 %v1572, %v1674
        %v1683 = vadd.f32 %v1573, %v1675
        %v1684 = vadd.f32 %v1574, %v1676
        %v1685 = vadd.f32 %v1575, %v1677
        %v1686 = vadd.f32 %v1576, %v1674
        %v1687 = vadd.f32 %v1577, %v1675
        %v1688 = vadd.f32 %v1578, %v1676
        %v1689 = vadd.f32 %v1579, %v1677
        %v1690 = vadd.f32 %v1580, %v1674
        %v1691 = vadd.f32 %v1581, %v1675
        %v1692 = vadd.f32 %v1582, %v1676
        %v1693 = vadd.f32 %v1583, %v1677
        %v1694 = vadd.f32 %v1584, %v1674
        %v1695 = vadd.f32 %v1585, %v1675
        %v1696 = vadd.f32 %v1586, %v1676
        %v1697 = vadd.f32 %v1587, %v1677
        %v1698 = vadd.f32 %v1588, %v1674
        %v1699 = vadd.f32 %v1589, %v1675
        %v1700 = vadd.f32 %v1590, %v1676
        %v1701 = vadd.f32 %v1591, %v1677
        %v1702 = vadd.f32 %v1592, %v1674
        %v1703 = vadd.f32 %v1593, %v1675
        %v1704 = vadd.f32 %v1594, %v1676
        %v1705 = vadd.f32 %v1595, %v1677
        %v1706 = vadd.f32 %v1596, %v1674
        %v1707 = vadd.f32 %v1597, %v1675
        %v1708 = vadd.f32 %v1598, %v1676
        %v1709 = vadd.f32 %v1599, %v1677
        %v1710 = vadd.f32 %v1600, %v1674
        %v1711 = vadd.f32 %v1601, %v1675
        %v1712 = vadd.f32 %v1602, %v1676
        %v1713 = vadd.f32 %v1603, %v1677
        %v1714 = vadd.f32 %v1604, %v1674
        %v1715 = vadd.f32 %v1605, %v1675
        %v1716 = vadd.f32 %v1606, %v1676
        %v1717 = vadd.f32 %v1607, %v1677
        %v1718 = vadd.f32 %v1608, %v1674
        %v1719 = vadd.f32 %v1609, %v1675
        %v1720 = vadd.f32 %v1610, %v1676
        %v1721 = vadd.f32 %v1611, %v1677
        %v1722 = vadd.f32 %v1612, %v1674
        %v1723 = vadd.f32 %v1613, %v1675
        %v1724 = vadd.f32 %v1614, %v1676
        %v1725 = vadd.f32 %v1615, %v1677
        %v1726 = vadd.f32 %v1616, %v1674
        %v1727 = vadd.f32 %v1617, %v1675
        %v1728 = vadd.f32 %v1618, %v1676
        %v1729 = vadd.f32 %v1619, %v1677
        %v1730 = vadd.f32 %v1620, %v1674
        %v1731 = vadd.f32 %v1621, %v1675
        %v1732 = vadd.f32 %v1622, %v1676
        %v1733 = vadd.f32 %v1623, %v1677
        %v1734 = vadd.f32 %v1624, %v1674
        %v1735 = vadd.f32 %v1625, %v1675
        %v1736 = vadd.f32 %v1626, %v1676
        %v1737 = vadd.f32 %v1627, %v1677
        %v1738 = vadd.f32 %v1628, %v1674
        %v1739 = vadd.f32 %v1629, %v1675
        %v1740 = vadd.f32 %v1630, %v1676
        %v1741 = vadd.f32 %v1631, %v1677
        %v1742 = vadd.f32 %v1632, %v1674
        %v1743 = vadd.f32 %v1633, %v1675
        %v1744 = vadd.f32 %v1634, %v1676
        %v1745 = vadd.f32 %v1635, %v1677
        %v1746 = vadd.f32 %v1636, %v1674
        %v1747 = vadd.f32 %v1637, %v1675
        %v1748 = vadd.f32 %v1638, %v1676
        %v1749 = vadd.f32 %v1639, %v1677
        %v1750 = vadd.f32 %v1640, %v1674
        %v1751 = vadd.f32 %v1641, %v1675
        %v1752 = vadd.f32 %v1642, %v1676
        %v1753 = vadd.f32 %v1643, %v1677
        %v1754 = vadd.f32 %v1644, %v1674
        %v1755 = vadd.f32 %v1645, %v1675
        %v1756 = vadd.f32 %v1646, %v1676
        %v1757 = vadd.f32 %v1647, %v1677
        %v1758 = vadd.f32 %v1648, %v1674
        %v1759 = vadd.f32 %v1649, %v1675
        %v1760 = vadd.f32 %v1650, %v1676
        %v1761 = vadd.f32 %v1651, %v1677
        %v1762 = vadd.f32 %v1652, %v1674
        %v1763 = vadd.f32 %v1653, %v1675
        %v1764 = vadd.f32 %v1654, %v1676
        %v1765 = vadd.f32 %v1655, %v1677
        %v1766 = vadd.f32 %v1656, %v1674
        %v1767 = vadd.f32 %v1657, %v1675
        %v1768 = vadd.f32 %v1658, %v1676
        %v1769 = vadd.f32 %v1659, %v1677
        %v1770 = vadd.f32 %v1660, %v1674
        %v1771 = vadd.f32 %v1661, %v1675
        %v1772 = vadd.f32 %v1662, %v1676
        %v1773 = vadd.f32 %v1663, %v1677
        %v1774 = vadd.f32 %v1664, %v1674
        %v1775 = vadd.f32 %v1665, %v1675
        %v1776 = vadd.f32 %v1666, %v1676
        %v1777 = vadd.f32 %v1667, %v1677
        %v1778 = vadd.f32 %v1668, %v1674
        %v1779 = vadd.f32 %v1669, %v1675
        %v1780 = vadd.f32 %v1670, %v1676
        %v1781 = vadd.f32 %v1671, %v1677
        %v1782 = vpack.c.bf16 %v1686, %v1682
        %v1783 = vpack.c.bf16 %v1687, %v1683
        %v1784 = vpack.c.bf16 %v1688, %v1684
        %v1785 = vpack.c.bf16 %v1689, %v1685
        %v1786 = vpack.c.bf16 %v1694, %v1690
        %v1787 = vpack.c.bf16 %v1695, %v1691
        %v1788 = vpack.c.bf16 %v1696, %v1692
        %v1789 = vpack.c.bf16 %v1697, %v1693
        %v1790 = vpack.c.bf16 %v1702, %v1698
        %v1791 = vpack.c.bf16 %v1703, %v1699
        %v1792 = vpack.c.bf16 %v1704, %v1700
        %v1793 = vpack.c.bf16 %v1705, %v1701
        %v1794 = vpack.c.bf16 %v1710, %v1706
        %v1795 = vpack.c.bf16 %v1711, %v1707
        %v1796 = vpack.c.bf16 %v1712, %v1708
        %v1797 = vpack.c.bf16 %v1713, %v1709
        %v1798 = vpack.c.bf16 %v1718, %v1714
        %v1799 = vpack.c.bf16 %v1719, %v1715
        %v1800 = vpack.c.bf16 %v1720, %v1716
        %v1801 = vpack.c.bf16 %v1721, %v1717
        %v1802 = vpack.c.bf16 %v1726, %v1722
        %v1803 = vpack.c.bf16 %v1727, %v1723
        %v1804 = vpack.c.bf16 %v1728, %v1724
        %v1805 = vpack.c.bf16 %v1729, %v1725
        %v1806 = vpack.c.bf16 %v1734, %v1730
        %v1807 = vpack.c.bf16 %v1735, %v1731
        %v1808 = vpack.c.bf16 %v1736, %v1732
        %v1809 = vpack.c.bf16 %v1737, %v1733
        %v1810 = vpack.c.bf16 %v1742, %v1738
        %v1811 = vpack.c.bf16 %v1743, %v1739
        %v1812 = vpack.c.bf16 %v1744, %v1740
        %v1813 = vpack.c.bf16 %v1745, %v1741
        %v1814 = vpack.c.bf16 %v1750, %v1746
        %v1815 = vpack.c.bf16 %v1751, %v1747
        %v1816 = vpack.c.bf16 %v1752, %v1748
        %v1817 = vpack.c.bf16 %v1753, %v1749
        %v1818 = vpack.c.bf16 %v1758, %v1754
        %v1819 = vpack.c.bf16 %v1759, %v1755
        %v1820 = vpack.c.bf16 %v1760, %v1756
        %v1821 = vpack.c.bf16 %v1761, %v1757
        %v1822 = vpack.c.bf16 %v1766, %v1762
        %v1823 = vpack.c.bf16 %v1767, %v1763
        %v1824 = vpack.c.bf16 %v1768, %v1764
        %v1825 = vpack.c.bf16 %v1769, %v1765
        %v1826 = vpack.c.bf16 %v1774, %v1770
        %v1827 = vpack.c.bf16 %v1775, %v1771
        %v1828 = vpack.c.bf16 %v1776, %v1772
        %v1829 = vpack.c.bf16 %v1777, %v1773
        %v1830 = vpack.c.bf16 %v1778, %v1778
        %v1831 = vpack.c.bf16 %v1779, %v1779
        %v1832 = vpack.c.bf16 %v1780, %v1780
        %v1833 = vpack.c.bf16 %v1781, %v1781
        %v1834 = vld [vmem:[%s323] sm:$0xff]
        %v1835 = vld [vmem:[%s323 + $0x8] sm:$0xff]
        %v1836 = vld [vmem:[%s323 + $0x10] sm:$0xff]
        %v1837 = vld [vmem:[%s323 + $0x18] sm:$0xff]
        %v1838 = vld [vmem:[%s323 + $0x20] sm:$0xff]
        %v1839 = vld [vmem:[%s323 + $0x28] sm:$0xff]
        %v1840 = vld [vmem:[%s323 + $0x30] sm:$0xff]
        %v1841 = vld [vmem:[%s323 + $0x38] sm:$0xff]
        %v1842 = vld [vmem:[%s323 + $0x40] sm:$0xff]
        %v1843 = vld [vmem:[%s323 + $0x48] sm:$0xff]
        %v1844 = vld [vmem:[%s323 + $0x50] sm:$0xff]
        %v1845 = vld [vmem:[%s323 + $0x58] sm:$0xff]
        %v1846 = vld [vmem:[%s323 + $0x60] sm:$0xff]
        %v1847 = vld [vmem:[%s323 + $0x68] sm:$0xff]
        %v1848 = vld [vmem:[%s323 + $0x70] sm:$0xff]
        %v1849 = vld [vmem:[%s323 + $0x78] sm:$0xff]
        %v1850 = vld [vmem:[%s323 + $0x80] sm:$0xff]
        %v1851 = vld [vmem:[%s323 + $0x88] sm:$0xff]
        %v1852 = vld [vmem:[%s323 + $0x90] sm:$0xff]
        %v1853 = vld [vmem:[%s323 + $0x98] sm:$0xff]
        %v1854 = vld [vmem:[%s323 + $0xa0] sm:$0xff]
        %v1855 = vld [vmem:[%s323 + $0xa8] sm:$0xff]
        %v1856 = vld [vmem:[%s323 + $0xb0] sm:$0xff]
        %v1857 = vld [vmem:[%s323 + $0xb8] sm:$0xff]
        %v1858 = vld [vmem:[%s323 + $0xc0] sm:$0xff]
        %v1859 = vld [vmem:[%s323 + $0xc8] sm:$0xff]
        %v1860 = vld [vmem:[%s323 + $0xd0] sm:$0xff]
        %v1861 = vld [vmem:[%s323 + $0xd8] sm:$0xff]
        %v1862 = vld [vmem:[%s323 + $0xe0] sm:$0xff]
        %v1863 = vld [vmem:[%s323 + $0xe8] sm:$0xff]
        %v1864 = vld [vmem:[%s323 + $0xf0] sm:$0xff]
        %v1865 = vld [vmem:[%s323 + $0xf8] sm:$0xff]
        %v1866 = vld [vmem:[%s323 + $0x100] sm:$0xff]
        %v1867 = vld [vmem:[%s323 + $0x108] sm:$0xff]
        %v1868 = vld [vmem:[%s323 + $0x110] sm:$0xff]
        %v1869 = vld [vmem:[%s323 + $0x118] sm:$0xff]
        %v1870 = vld [vmem:[%s323 + $0x120] sm:$0xff]
        %v1871 = vld [vmem:[%s323 + $0x128] sm:$0xff]
        %v1872 = vld [vmem:[%s323 + $0x130] sm:$0xff]
        %v1873 = vld [vmem:[%s323 + $0x138] sm:$0xff]
        %v1874 = vld [vmem:[%s323 + $0x140] sm:$0xff]
        %v1875 = vld [vmem:[%s323 + $0x148] sm:$0xff]
        %v1876 = vld [vmem:[%s323 + $0x150] sm:$0xff]
        %v1877 = vld [vmem:[%s323 + $0x158] sm:$0xff]
        %v1878 = vld [vmem:[%s323 + $0x160] sm:$0xff]
        %v1879 = vld [vmem:[%s323 + $0x168] sm:$0xff]
        %v1880 = vld [vmem:[%s323 + $0x170] sm:$0xff]
        %v1881 = vld [vmem:[%s323 + $0x178] sm:$0xff]
        %v1882 = vld [vmem:[%s323 + $0x180] sm:$0xff]
        %v1883 = vld [vmem:[%s323 + $0x188] sm:$0xff]
        %v1884 = vld [vmem:[%s323 + $0x190] sm:$0xff]
        %v1885 = vld [vmem:[%s323 + $0x198] sm:$0xff]
        %v1886 = vld [vmem:[%s323 + $0x1a0] sm:$0xff]
        %v1887 = vld [vmem:[%s323 + $0x1a8] sm:$0xff]
        %v1888 = vld [vmem:[%s323 + $0x1b0] sm:$0xff]
        %v1889 = vld [vmem:[%s323 + $0x1b8] sm:$0xff]
        %v1890 = vld [vmem:[%s323 + $0x1c0] sm:$0xff]
        %v1891 = vld [vmem:[%s323 + $0x1c8] sm:$0xff]
        %v1892 = vld [vmem:[%s323 + $0x1d0] sm:$0xff]
        %v1893 = vld [vmem:[%s323 + $0x1d8] sm:$0xff]
        %v1894 = vld [vmem:[%s323 + $0x1e0] sm:$0xff]
        %v1895 = vld [vmem:[%s323 + $0x1e8] sm:$0xff]
        %v1896 = vld [vmem:[%s323 + $0x1f0] sm:$0xff]
        %v1897 = vld [vmem:[%s323 + $0x1f8] sm:$0xff]
        %v1898 = vld [vmem:[%s323 + $0x200] sm:$0xff]
        %v1899 = vld [vmem:[%s323 + $0x208] sm:$0xff]
        %v1900 = vld [vmem:[%s323 + $0x210] sm:$0xff]
        %v1901 = vld [vmem:[%s323 + $0x218] sm:$0xff]
        %v1902 = vld [vmem:[%s323 + $0x220] sm:$0xff]
        %v1903 = vld [vmem:[%s323 + $0x228] sm:$0xff]
        %v1904 = vld [vmem:[%s323 + $0x230] sm:$0xff]
        %v1905 = vld [vmem:[%s323 + $0x238] sm:$0xff]
        %v1906 = vld [vmem:[%s323 + $0x240] sm:$0xff]
        %v1907 = vld [vmem:[%s323 + $0x248] sm:$0xff]
        %v1908 = vld [vmem:[%s323 + $0x250] sm:$0xff]
        %v1909 = vld [vmem:[%s323 + $0x258] sm:$0xff]
        %v1910 = vld [vmem:[%s323 + $0x260] sm:$0xff]
        %v1911 = vld [vmem:[%s323 + $0x268] sm:$0xff]
        %v1912 = vld [vmem:[%s323 + $0x270] sm:$0xff]
        %v1913 = vld [vmem:[%s323 + $0x278] sm:$0xff]
        %v1914 = vld [vmem:[%s323 + $0x280] sm:$0xff]
        %v1915 = vld [vmem:[%s323 + $0x288] sm:$0xff]
        %v1916 = vld [vmem:[%s323 + $0x290] sm:$0xff]
        %v1917 = vld [vmem:[%s323 + $0x298] sm:$0xff]
        %v1918 = vld [vmem:[%s323 + $0x2a0] sm:$0xff]
        %v1919 = vld [vmem:[%s323 + $0x2a8] sm:$0xff]
        %v1920 = vld [vmem:[%s323 + $0x2b0] sm:$0xff]
        %v1921 = vld [vmem:[%s323 + $0x2b8] sm:$0xff]
        %v1922 = vld [vmem:[%s323 + $0x2c0] sm:$0xff]
        %v1923 = vld [vmem:[%s323 + $0x2c8] sm:$0xff]
        %v1924 = vld [vmem:[%s323 + $0x2d0] sm:$0xff]
        %v1925 = vld [vmem:[%s323 + $0x2d8] sm:$0xff]
        %v1926 = vld [vmem:[%s323 + $0x2e0] sm:$0xff]
        %v1927 = vld [vmem:[%s323 + $0x2e8] sm:$0xff]
        %v1928 = vld [vmem:[%s323 + $0x2f0] sm:$0xff]
        %v1929 = vld [vmem:[%s323 + $0x2f8] sm:$0xff]
        %v1930 = vld [vmem:[%s323 + $0x300] sm:$0xff]
        %v1931 = vld [vmem:[%s323 + $0x308] sm:$0xff]
        %v1932 = vld [vmem:[%s323 + $0x310] sm:$0xff]
        %v1933 = vld [vmem:[%s323 + $0x318] sm:$0xff]
        %v1934 = vld [vmem:[%s323 + $0x320] sm:$0xff]
        %v1935 = vld [vmem:[%s323 + $0x328] sm:$0xff]
        %v1936 = vld [vmem:[%s323 + $0x330] sm:$0xff]
        %v1937 = vld [vmem:[%s323 + $0x338] sm:$0xff]
        %v1938 = vld [vmem:[%s323 + $0x340] sm:$0xff]
        %v1939 = vld [vmem:[%s323 + $0x348] sm:$0xff]
        %v1940 = vld [vmem:[%s323 + $0x350] sm:$0xff]
        %v1941 = vld [vmem:[%s323 + $0x358] sm:$0xff]
        %v1942 = vld [vmem:[%s323 + $0x360] sm:$0xff]
        %v1943 = vld [vmem:[%s323 + $0x368] sm:$0xff]
        %v1944 = vld [vmem:[%s323 + $0x370] sm:$0xff]
        %v1945 = vld [vmem:[%s323 + $0x378] sm:$0xff]
        %v1946 = vld [vmem:[%s323 + $0x380] sm:$0xff]
        %v1947 = vld [vmem:[%s323 + $0x388] sm:$0xff]
        %v1948 = vld [vmem:[%s323 + $0x390] sm:$0xff]
        %v1949 = vld [vmem:[%s323 + $0x398] sm:$0xff]
        %v1950 = vld [vmem:[%s323 + $0x3a0] sm:$0xff]
        %v1951 = vld [vmem:[%s323 + $0x3a8] sm:$0xff]
        %v1952 = vld [vmem:[%s323 + $0x3b0] sm:$0xff]
        %v1953 = vld [vmem:[%s323 + $0x3b8] sm:$0xff]
        %v1954 = vld [vmem:[%s323 + $0x3c0] sm:$0xff]
        %v1955 = vld [vmem:[%s323 + $0x3c8] sm:$0xff]
        %v1956 = vld [vmem:[%s323 + $0x3d0] sm:$0xff]
        %v1957 = vld [vmem:[%s323 + $0x3d8] sm:$0xff]
        %v1958 = vld [vmem:[%s323 + $0x3e0] sm:$0xff]
        %v1959 = vld [vmem:[%s323 + $0x3e8] sm:$0xff]
        %v1960 = vld [vmem:[%s323 + $0x3f0] sm:$0xff]
        %v1961 = vld [vmem:[%s323 + $0x3f8] sm:$0xff]
        %v1962 = vld [vmem:[%s333] sm:$0xf]
        %v1964 = vperm.slane %v1962, 0
        %v1965 = vperm.slane %v1962, 1
        %v1966 = vperm.slane %v1962, 2
        %v1967 = vperm.slane %v1962, 3
        %v2100 = vunpack.c.l.b16 %v1834
        %v2101 = vunpack.c.h.b16 %v1834
        %v2102 = vunpack.c.l.b16 %v1835
        %v2103 = vunpack.c.h.b16 %v1835
        %v2104 = vunpack.c.l.b16 %v1836
        %v2105 = vunpack.c.h.b16 %v1836
        %v2106 = vunpack.c.l.b16 %v1837
        %v2107 = vunpack.c.h.b16 %v1837
        %v2108 = vunpack.c.l.b16 %v1838
        %v2109 = vunpack.c.h.b16 %v1838
        %v2110 = vunpack.c.l.b16 %v1839
        %v2111 = vunpack.c.h.b16 %v1839
        %v2112 = vunpack.c.l.b16 %v1840
        %v2113 = vunpack.c.h.b16 %v1840
        %v2114 = vunpack.c.l.b16 %v1841
        %v2115 = vunpack.c.h.b16 %v1841
        %v2116 = vunpack.c.l.b16 %v1842
        %v2117 = vunpack.c.h.b16 %v1842
        %v2118 = vunpack.c.l.b16 %v1843
        %v2119 = vunpack.c.h.b16 %v1843
        %v2120 = vunpack.c.l.b16 %v1844
        %v2121 = vunpack.c.h.b16 %v1844
        %v2122 = vunpack.c.l.b16 %v1845
        %v2123 = vunpack.c.h.b16 %v1845
        %v2124 = vunpack.c.l.b16 %v1846
        %v2125 = vunpack.c.h.b16 %v1846
        %v2126 = vunpack.c.l.b16 %v1847
        %v2127 = vunpack.c.h.b16 %v1847
        %v2128 = vunpack.c.l.b16 %v1848
        %v2129 = vunpack.c.h.b16 %v1848
        %v2130 = vunpack.c.l.b16 %v1849
        %v2131 = vunpack.c.h.b16 %v1849
        %v2132 = vunpack.c.l.b16 %v1850
        %v2133 = vunpack.c.h.b16 %v1850
        %v2134 = vunpack.c.l.b16 %v1851
        %v2135 = vunpack.c.h.b16 %v1851
        %v2136 = vunpack.c.l.b16 %v1852
        %v2137 = vunpack.c.h.b16 %v1852
        %v2138 = vunpack.c.l.b16 %v1853
        %v2139 = vunpack.c.h.b16 %v1853
        %v2140 = vunpack.c.l.b16 %v1854
        %v2141 = vunpack.c.h.b16 %v1854
        %v2142 = vunpack.c.l.b16 %v1855
        %v2143 = vunpack.c.h.b16 %v1855
        %v2144 = vunpack.c.l.b16 %v1856
        %v2145 = vunpack.c.h.b16 %v1856
        %v2146 = vunpack.c.l.b16 %v1857
        %v2147 = vunpack.c.h.b16 %v1857
        %v2148 = vunpack.c.l.b16 %v1858
        %v2149 = vunpack.c.h.b16 %v1858
        %v2150 = vunpack.c.l.b16 %v1859
        %v2151 = vunpack.c.h.b16 %v1859
        %v2152 = vunpack.c.l.b16 %v1860
        %v2153 = vunpack.c.h.b16 %v1860
        %v2154 = vunpack.c.l.b16 %v1861
        %v2155 = vunpack.c.h.b16 %v1861
        %v2156 = vunpack.c.l.b16 %v1862
        %v2157 = vunpack.c.h.b16 %v1862
        %v2158 = vunpack.c.l.b16 %v1863
        %v2159 = vunpack.c.h.b16 %v1863
        %v2160 = vunpack.c.l.b16 %v1864
        %v2161 = vunpack.c.h.b16 %v1864
        %v2162 = vunpack.c.l.b16 %v1865
        %v2163 = vunpack.c.h.b16 %v1865
        %v2164 = vunpack.c.l.b16 %v1866
        %v2165 = vunpack.c.h.b16 %v1866
        %v2166 = vunpack.c.l.b16 %v1867
        %v2167 = vunpack.c.h.b16 %v1867
        %v2168 = vunpack.c.l.b16 %v1868
        %v2169 = vunpack.c.h.b16 %v1868
        %v2170 = vunpack.c.l.b16 %v1869
        %v2171 = vunpack.c.h.b16 %v1869
        %v2172 = vunpack.c.l.b16 %v1870
        %v2173 = vunpack.c.h.b16 %v1870
        %v2174 = vunpack.c.l.b16 %v1871
        %v2175 = vunpack.c.h.b16 %v1871
        %v2176 = vunpack.c.l.b16 %v1872
        %v2177 = vunpack.c.h.b16 %v1872
        %v2178 = vunpack.c.l.b16 %v1873
        %v2179 = vunpack.c.h.b16 %v1873
        %v2180 = vunpack.c.l.b16 %v1874
        %v2181 = vunpack.c.h.b16 %v1874
        %v2182 = vunpack.c.l.b16 %v1875
        %v2183 = vunpack.c.h.b16 %v1875
        %v2184 = vunpack.c.l.b16 %v1876
        %v2185 = vunpack.c.h.b16 %v1876
        %v2186 = vunpack.c.l.b16 %v1877
        %v2187 = vunpack.c.h.b16 %v1877
        %v2188 = vunpack.c.l.b16 %v1878
        %v2189 = vunpack.c.h.b16 %v1878
        %v2190 = vunpack.c.l.b16 %v1879
        %v2191 = vunpack.c.h.b16 %v1879
        %v2192 = vunpack.c.l.b16 %v1880
        %v2193 = vunpack.c.h.b16 %v1880
        %v2194 = vunpack.c.l.b16 %v1881
        %v2195 = vunpack.c.h.b16 %v1881
        %v2196 = vunpack.c.l.b16 %v1882
        %v2197 = vunpack.c.h.b16 %v1882
        %v2198 = vunpack.c.l.b16 %v1883
        %v2199 = vunpack.c.h.b16 %v1883
        %v2200 = vunpack.c.l.b16 %v1884
        %v2201 = vunpack.c.h.b16 %v1884
        %v2202 = vunpack.c.l.b16 %v1885
        %v2203 = vunpack.c.h.b16 %v1885
        %v2204 = vunpack.c.l.b16 %v1886
        %v2205 = vunpack.c.h.b16 %v1886
        %v2206 = vunpack.c.l.b16 %v1887
        %v2207 = vunpack.c.h.b16 %v1887
        %v2208 = vunpack.c.l.b16 %v1888
        %v2209 = vunpack.c.h.b16 %v1888
        %v2210 = vunpack.c.l.b16 %v1889
        %v2211 = vunpack.c.h.b16 %v1889
        %v2212 = vunpack.c.l.b16 %v1890
        %v2213 = vunpack.c.h.b16 %v1890
        %v2214 = vunpack.c.l.b16 %v1891
        %v2215 = vunpack.c.h.b16 %v1891
        %v2216 = vunpack.c.l.b16 %v1892
        %v2217 = vunpack.c.h.b16 %v1892
        %v2218 = vunpack.c.l.b16 %v1893
        %v2219 = vunpack.c.h.b16 %v1893
        %v2220 = vunpack.c.l.b16 %v1894
        %v2221 = vunpack.c.h.b16 %v1894
        %v2222 = vunpack.c.l.b16 %v1895
        %v2223 = vunpack.c.h.b16 %v1895
        %v2224 = vunpack.c.l.b16 %v1896
        %v2225 = vunpack.c.h.b16 %v1896
        %v2226 = vunpack.c.l.b16 %v1897
        %v2227 = vunpack.c.h.b16 %v1897
        %v2228 = vunpack.c.l.b16 %v1898
        %v2229 = vunpack.c.h.b16 %v1898
        %v2230 = vunpack.c.l.b16 %v1899
        %v2231 = vunpack.c.h.b16 %v1899
        %v2232 = vunpack.c.l.b16 %v1900
        %v2233 = vunpack.c.h.b16 %v1900
        %v2234 = vunpack.c.l.b16 %v1901
        %v2235 = vunpack.c.h.b16 %v1901
        %v2236 = vunpack.c.l.b16 %v1902
        %v2237 = vunpack.c.h.b16 %v1902
        %v2238 = vunpack.c.l.b16 %v1903
        %v2239 = vunpack.c.h.b16 %v1903
        %v2240 = vunpack.c.l.b16 %v1904
        %v2241 = vunpack.c.h.b16 %v1904
        %v2242 = vunpack.c.l.b16 %v1905
        %v2243 = vunpack.c.h.b16 %v1905
        %v2244 = vunpack.c.l.b16 %v1906
        %v2245 = vunpack.c.h.b16 %v1906
        %v2246 = vunpack.c.l.b16 %v1907
        %v2247 = vunpack.c.h.b16 %v1907
        %v2248 = vunpack.c.l.b16 %v1908
        %v2249 = vunpack.c.h.b16 %v1908
        %v2250 = vunpack.c.l.b16 %v1909
        %v2251 = vunpack.c.h.b16 %v1909
        %v2252 = vunpack.c.l.b16 %v1910
        %v2253 = vunpack.c.h.b16 %v1910
        %v2254 = vunpack.c.l.b16 %v1911
        %v2255 = vunpack.c.h.b16 %v1911
        %v2256 = vunpack.c.l.b16 %v1912
        %v2257 = vunpack.c.h.b16 %v1912
        %v2258 = vunpack.c.l.b16 %v1913
        %v2259 = vunpack.c.h.b16 %v1913
        %v2260 = vunpack.c.l.b16 %v1914
        %v2261 = vunpack.c.h.b16 %v1914
        %v2262 = vunpack.c.l.b16 %v1915
        %v2263 = vunpack.c.h.b16 %v1915
        %v2264 = vunpack.c.l.b16 %v1916
        %v2265 = vunpack.c.h.b16 %v1916
        %v2266 = vunpack.c.l.b16 %v1917
        %v2267 = vunpack.c.h.b16 %v1917
        %v2268 = vunpack.c.l.b16 %v1918
        %v2269 = vunpack.c.h.b16 %v1918
        %v2270 = vunpack.c.l.b16 %v1919
        %v2271 = vunpack.c.h.b16 %v1919
        %v2272 = vunpack.c.l.b16 %v1920
        %v2273 = vunpack.c.h.b16 %v1920
        %v2274 = vunpack.c.l.b16 %v1921
        %v2275 = vunpack.c.h.b16 %v1921
        %v2276 = vunpack.c.l.b16 %v1922
        %v2277 = vunpack.c.h.b16 %v1922
        %v2278 = vunpack.c.l.b16 %v1923
        %v2279 = vunpack.c.h.b16 %v1923
        %v2280 = vunpack.c.l.b16 %v1924
        %v2281 = vunpack.c.h.b16 %v1924
        %v2282 = vunpack.c.l.b16 %v1925
        %v2283 = vunpack.c.h.b16 %v1925
        %v2284 = vunpack.c.l.b16 %v1926
        %v2285 = vunpack.c.h.b16 %v1926
        %v2286 = vunpack.c.l.b16 %v1927
        %v2287 = vunpack.c.h.b16 %v1927
        %v2288 = vunpack.c.l.b16 %v1928
        %v2289 = vunpack.c.h.b16 %v1928
        %v2290 = vunpack.c.l.b16 %v1929
        %v2291 = vunpack.c.h.b16 %v1929
        %v2292 = vunpack.c.l.b16 %v1930
        %v2293 = vunpack.c.h.b16 %v1930
        %v2294 = vunpack.c.l.b16 %v1931
        %v2295 = vunpack.c.h.b16 %v1931
        %v2296 = vunpack.c.l.b16 %v1932
        %v2297 = vunpack.c.h.b16 %v1932
        %v2298 = vunpack.c.l.b16 %v1933
        %v2299 = vunpack.c.h.b16 %v1933
        %v2300 = vunpack.c.l.b16 %v1934
        %v2301 = vunpack.c.h.b16 %v1934
        %v2302 = vunpack.c.l.b16 %v1935
        %v2303 = vunpack.c.h.b16 %v1935
        %v2304 = vunpack.c.l.b16 %v1936
        %v2305 = vunpack.c.h.b16 %v1936
        %v2306 = vunpack.c.l.b16 %v1937
        %v2307 = vunpack.c.h.b16 %v1937
        %v2308 = vunpack.c.l.b16 %v1938
        %v2309 = vunpack.c.h.b16 %v1938
        %v2310 = vunpack.c.l.b16 %v1939
        %v2311 = vunpack.c.h.b16 %v1939
        %v2312 = vunpack.c.l.b16 %v1940
        %v2313 = vunpack.c.h.b16 %v1940
        %v2314 = vunpack.c.l.b16 %v1941
        %v2315 = vunpack.c.h.b16 %v1941
        %v2316 = vunpack.c.l.b16 %v1942
        %v2317 = vunpack.c.h.b16 %v1942
        %v2318 = vunpack.c.l.b16 %v1943
        %v2319 = vunpack.c.h.b16 %v1943
        %v2320 = vunpack.c.l.b16 %v1944
        %v2321 = vunpack.c.h.b16 %v1944
        %v2322 = vunpack.c.l.b16 %v1945
        %v2323 = vunpack.c.h.b16 %v1945
        %v2324 = vunpack.c.l.b16 %v1946
        %v2325 = vunpack.c.h.b16 %v1946
        %v2326 = vunpack.c.l.b16 %v1947
        %v2327 = vunpack.c.h.b16 %v1947
        %v2328 = vunpack.c.l.b16 %v1948
        %v2329 = vunpack.c.h.b16 %v1948
        %v2330 = vunpack.c.l.b16 %v1949
        %v2331 = vunpack.c.h.b16 %v1949
        %v2332 = vunpack.c.l.b16 %v1950
        %v2333 = vunpack.c.h.b16 %v1950
        %v2334 = vunpack.c.l.b16 %v1951
        %v2335 = vunpack.c.h.b16 %v1951
        %v2336 = vunpack.c.l.b16 %v1952
        %v2337 = vunpack.c.h.b16 %v1952
        %v2338 = vunpack.c.l.b16 %v1953
        %v2339 = vunpack.c.h.b16 %v1953
        %v2340 = vunpack.c.l.b16 %v1954
        %v2341 = vunpack.c.h.b16 %v1954
        %v2342 = vunpack.c.l.b16 %v1955
        %v2343 = vunpack.c.h.b16 %v1955
        %v2344 = vunpack.c.l.b16 %v1956
        %v2345 = vunpack.c.h.b16 %v1956
        %v2346 = vunpack.c.l.b16 %v1957
        %v2347 = vunpack.c.h.b16 %v1957
        %v2348 = vunpack.c.l.b16 %v1958
        %v2349 = vunpack.c.h.b16 %v1958
        %v2350 = vunpack.c.l.b16 %v1959
        %v2351 = vunpack.c.h.b16 %v1959
        %v2352 = vunpack.c.l.b16 %v1960
        %v2353 = vunpack.c.h.b16 %v1960
        %v2354 = vunpack.c.l.b16 %v1961
        %v2355 = vunpack.c.h.b16 %v1961
        %v2356 = vpack.c.b16 %v2104, %v2100
        %v2357 = vpack.c.b16 %v2105, %v2101
        %v2358 = vpack.c.b16 %v2106, %v2102
        %v2359 = vpack.c.b16 %v2107, %v2103
        %v2360 = vpack.c.b16 %v2112, %v2108
        %v2361 = vpack.c.b16 %v2113, %v2109
        %v2362 = vpack.c.b16 %v2114, %v2110
        %v2363 = vpack.c.b16 %v2115, %v2111
        %v2364 = vpack.c.b16 %v2120, %v2116
        %v2365 = vpack.c.b16 %v2121, %v2117
        %v2366 = vpack.c.b16 %v2122, %v2118
        %v2367 = vpack.c.b16 %v2123, %v2119
        %v2368 = vpack.c.b16 %v2128, %v2124
        %v2369 = vpack.c.b16 %v2129, %v2125
        %v2370 = vpack.c.b16 %v2130, %v2126
        %v2371 = vpack.c.b16 %v2131, %v2127
        %v2372 = vpack.c.b16 %v2136, %v2132
        %v2373 = vpack.c.b16 %v2137, %v2133
        %v2374 = vpack.c.b16 %v2138, %v2134
        %v2375 = vpack.c.b16 %v2139, %v2135
        %v2376 = vpack.c.b16 %v2144, %v2140
        %v2377 = vpack.c.b16 %v2145, %v2141
        %v2378 = vpack.c.b16 %v2146, %v2142
        %v2379 = vpack.c.b16 %v2147, %v2143
        %v2380 = vpack.c.b16 %v2152, %v2148
        %v2381 = vpack.c.b16 %v2153, %v2149
        %v2382 = vpack.c.b16 %v2154, %v2150
        %v2383 = vpack.c.b16 %v2155, %v2151
        %v2384 = vpack.c.b16 %v2160, %v2156
        %v2385 = vpack.c.b16 %v2161, %v2157
        %v2386 = vpack.c.b16 %v2162, %v2158
        %v2387 = vpack.c.b16 %v2163, %v2159
        %v2388 = vpack.c.b16 %v2168, %v2164
        %v2389 = vpack.c.b16 %v2169, %v2165
        %v2390 = vpack.c.b16 %v2170, %v2166
        %v2391 = vpack.c.b16 %v2171, %v2167
        %v2392 = vpack.c.b16 %v2176, %v2172
        %v2393 = vpack.c.b16 %v2177, %v2173
        %v2394 = vpack.c.b16 %v2178, %v2174
        %v2395 = vpack.c.b16 %v2179, %v2175
        %v2396 = vpack.c.b16 %v2184, %v2180
        %v2397 = vpack.c.b16 %v2185, %v2181
        %v2398 = vpack.c.b16 %v2186, %v2182
        %v2399 = vpack.c.b16 %v2187, %v2183
        %v2400 = vpack.c.b16 %v2192, %v2188
        %v2401 = vpack.c.b16 %v2193, %v2189
        %v2402 = vpack.c.b16 %v2194, %v2190
        %v2403 = vpack.c.b16 %v2195, %v2191
        %v2404 = vpack.c.b16 %v2200, %v2196
        %v2405 = vpack.c.b16 %v2201, %v2197
        %v2406 = vpack.c.b16 %v2202, %v2198
        %v2407 = vpack.c.b16 %v2203, %v2199
        %v2408 = vpack.c.b16 %v2208, %v2204
        %v2409 = vpack.c.b16 %v2209, %v2205
        %v2410 = vpack.c.b16 %v2210, %v2206
        %v2411 = vpack.c.b16 %v2211, %v2207
        %v2412 = vpack.c.b16 %v2216, %v2212
        %v2413 = vpack.c.b16 %v2217, %v2213
        %v2414 = vpack.c.b16 %v2218, %v2214
        %v2415 = vpack.c.b16 %v2219, %v2215
        %v2416 = vpack.c.b16 %v2224, %v2220
        %v2417 = vpack.c.b16 %v2225, %v2221
        %v2418 = vpack.c.b16 %v2226, %v2222
        %v2419 = vpack.c.b16 %v2227, %v2223
        %v2420 = vpack.c.b16 %v2232, %v2228
        %v2421 = vpack.c.b16 %v2233, %v2229
        %v2422 = vpack.c.b16 %v2234, %v2230
        %v2423 = vpack.c.b16 %v2235, %v2231
        %v2424 = vpack.c.b16 %v2240, %v2236
        %v2425 = vpack.c.b16 %v2241, %v2237
        %v2426 = vpack.c.b16 %v2242, %v2238
        %v2427 = vpack.c.b16 %v2243, %v2239
        %v2428 = vpack.c.b16 %v2248, %v2244
        %v2429 = vpack.c.b16 %v2249, %v2245
        %v2430 = vpack.c.b16 %v2250, %v2246
        %v2431 = vpack.c.b16 %v2251, %v2247
        %v2432 = vpack.c.b16 %v2256, %v2252
        %v2433 = vpack.c.b16 %v2257, %v2253
        %v2434 = vpack.c.b16 %v2258, %v2254
        %v2435 = vpack.c.b16 %v2259, %v2255
        %v2436 = vpack.c.b16 %v2264, %v2260
        %v2437 = vpack.c.b16 %v2265, %v2261
        %v2438 = vpack.c.b16 %v2266, %v2262
        %v2439 = vpack.c.b16 %v2267, %v2263
        %v2440 = vpack.c.b16 %v2272, %v2268
        %v2441 = vpack.c.b16 %v2273, %v2269
        %v2442 = vpack.c.b16 %v2274, %v2270
        %v2443 = vpack.c.b16 %v2275, %v2271
        %v2444 = vpack.c.b16 %v2280, %v2276
        %v2445 = vpack.c.b16 %v2281, %v2277
        %v2446 = vpack.c.b16 %v2282, %v2278
        %v2447 = vpack.c.b16 %v2283, %v2279
        %v2448 = vpack.c.b16 %v2288, %v2284
        %v2449 = vpack.c.b16 %v2289, %v2285
        %v2450 = vpack.c.b16 %v2290, %v2286
        %v2451 = vpack.c.b16 %v2291, %v2287
        %v2452 = vpack.c.b16 %v2296, %v2292
        %v2453 = vpack.c.b16 %v2297, %v2293
        %v2454 = vpack.c.b16 %v2298, %v2294
        %v2455 = vpack.c.b16 %v2299, %v2295
        %v2456 = vpack.c.b16 %v2304, %v2300
        %v2457 = vpack.c.b16 %v2305, %v2301
        %v2458 = vpack.c.b16 %v2306, %v2302
        %v2459 = vpack.c.b16 %v2307, %v2303
        %v2460 = vpack.c.b16 %v2312, %v2308
        %v2461 = vpack.c.b16 %v2313, %v2309
        %v2462 = vpack.c.b16 %v2314, %v2310
        %v2463 = vpack.c.b16 %v2315, %v2311
        %v2464 = vpack.c.b16 %v2320, %v2316
        %v2465 = vpack.c.b16 %v2321, %v2317
        %v2466 = vpack.c.b16 %v2322, %v2318
        %v2467 = vpack.c.b16 %v2323, %v2319
        %v2468 = vpack.c.b16 %v2328, %v2324
        %v2469 = vpack.c.b16 %v2329, %v2325
        %v2470 = vpack.c.b16 %v2330, %v2326
        %v2471 = vpack.c.b16 %v2331, %v2327
        %v2472 = vpack.c.b16 %v2336, %v2332
        %v2473 = vpack.c.b16 %v2337, %v2333
        %v2474 = vpack.c.b16 %v2338, %v2334
        %v2475 = vpack.c.b16 %v2339, %v2335
        %v2476 = vpack.c.b16 %v2344, %v2340
        %v2477 = vpack.c.b16 %v2345, %v2341
        %v2478 = vpack.c.b16 %v2346, %v2342
        %v2479 = vpack.c.b16 %v2347, %v2343
        %v2480 = vpack.c.b16 %v2352, %v2348
        %v2481 = vpack.c.b16 %v2353, %v2349
        %v2482 = vpack.c.b16 %v2354, %v2350
        %v2483 = vpack.c.b16 %v2355, %v2351
        %2612 = vmatpush.bf16.msra.mxu0 %v2384
        %2613 = vmatpush.bf16.msra.mxu0 %v2380
        %2614 = vmatpush.bf16.msra.mxu0 %v2376
        %2615 = vmatpush.bf16.msra.mxu0 %v2372
        %2616 = vmatpush.bf16.msra.mxu0 %v2368
        %2617 = vmatpush.bf16.msra.mxu0 %v2364
        %2618 = vmatpush.bf16.msra.mxu0 %v2360
        %2619 = vmatpush.bf16.msra.mxu0 %v2356
        %2620 = vmatmul.bf16.gmra.mxu0 %v1782
        %v2621 = vpop.f32.mrf.mxu0
        %v2622 = vadd.f32 %v1964, %v2621
        %v2623 = vpop.f32.mrf.mxu0
        %v2624 = vadd.f32 %v1964, %v2623
        %2625 = vmatmul.bf16.gmra.mxu0 %v1786
        %v2626 = vpop.f32.mrf.mxu0
        %v2627 = vadd.f32 %v1964, %v2626
        %v2628 = vpop.f32.mrf.mxu0
        %v2629 = vadd.f32 %v1964, %v2628
        %2630 = vmatmul.bf16.gmra.mxu0 %v1790
        %v2631 = vpop.f32.mrf.mxu0
        %v2632 = vadd.f32 %v1964, %v2631
        %v2633 = vpop.f32.mrf.mxu0
        %v2634 = vadd.f32 %v1964, %v2633
        %2635 = vmatmul.bf16.gmra.mxu0 %v1794
        %v2636 = vpop.f32.mrf.mxu0
        %v2637 = vadd.f32 %v1964, %v2636
        %v2638 = vpop.f32.mrf.mxu0
        %v2639 = vadd.f32 %v1964, %v2638
        %2640 = vmatmul.bf16.gmra.mxu0 %v1798
        %v2641 = vpop.f32.mrf.mxu0
        %v2642 = vadd.f32 %v1964, %v2641
        %v2643 = vpop.f32.mrf.mxu0
        %v2644 = vadd.f32 %v1964, %v2643
        %2645 = vmatmul.bf16.gmra.mxu0 %v1802
        %v2646 = vpop.f32.mrf.mxu0
        %v2647 = vadd.f32 %v1964, %v2646
        %v2648 = vpop.f32.mrf.mxu0
        %v2649 = vadd.f32 %v1964, %v2648
        %2650 = vmatmul.bf16.gmra.mxu0 %v1806
        %v2651 = vpop.f32.mrf.mxu0
        %v2652 = vadd.f32 %v1964, %v2651
        %v2653 = vpop.f32.mrf.mxu0
        %v2654 = vadd.f32 %v1964, %v2653
        %2655 = vmatmul.bf16.gmra.mxu0 %v1810
        %v2656 = vpop.f32.mrf.mxu0
        %v2657 = vadd.f32 %v1964, %v2656
        %v2658 = vpop.f32.mrf.mxu0
        %v2659 = vadd.f32 %v1964, %v2658
        %2660 = vmatmul.bf16.gmra.mxu0 %v1814
        %v2661 = vpop.f32.mrf.mxu0
        %v2662 = vadd.f32 %v1964, %v2661
        %v2663 = vpop.f32.mrf.mxu0
        %v2664 = vadd.f32 %v1964, %v2663
        %2665 = vmatmul.bf16.gmra.mxu0 %v1818
        %v2666 = vpop.f32.mrf.mxu0
        %v2667 = vadd.f32 %v1964, %v2666
        %v2668 = vpop.f32.mrf.mxu0
        %v2669 = vadd.f32 %v1964, %v2668
        %2670 = vmatmul.bf16.gmra.mxu0 %v1822
        %v2671 = vpop.f32.mrf.mxu0
        %v2672 = vadd.f32 %v1964, %v2671
        %v2673 = vpop.f32.mrf.mxu0
        %v2674 = vadd.f32 %v1964, %v2673
        %2675 = vmatmul.bf16.gmra.mxu0 %v1826
        %v2676 = vpop.f32.mrf.mxu0
        %v2677 = vadd.f32 %v1964, %v2676
        %v2678 = vpop.f32.mrf.mxu0
        %v2679 = vadd.f32 %v1964, %v2678
        %2680 = vmatmul.bf16.gmra.mxu0 %v1830
        %v2681 = vpop.f32.mrf.mxu0
        %v2682 = vadd.f32 %v1964, %v2681
        %v2683 = vpop.f32.mrf.mxu0
        %2684 = vdwg.mxu0
        %2685 = vmatpush.bf16.msra.mxu0 %v2416
        %2686 = vmatpush.bf16.msra.mxu0 %v2412
        %2687 = vmatpush.bf16.msra.mxu0 %v2408
        %2688 = vmatpush.bf16.msra.mxu0 %v2404
        %2689 = vmatpush.bf16.msra.mxu0 %v2400
        %2690 = vmatpush.bf16.msra.mxu0 %v2396
        %2691 = vmatpush.bf16.msra.mxu0 %v2392
        %2692 = vmatpush.bf16.msra.mxu0 %v2388
        %2693 = vmatmul.bf16.gmra.mxu0 %v1783
        %v2694 = vpop.f32.mrf.mxu0
        %v2695 = vadd.f32 %v2622, %v2694
        %v2696 = vpop.f32.mrf.mxu0
        %v2697 = vadd.f32 %v2624, %v2696
        %2698 = vmatmul.bf16.gmra.mxu0 %v1787
        %v2699 = vpop.f32.mrf.mxu0
        %v2700 = vadd.f32 %v2627, %v2699
        %v2701 = vpop.f32.mrf.mxu0
        %v2702 = vadd.f32 %v2629, %v2701
        %2703 = vmatmul.bf16.gmra.mxu0 %v1791
        %v2704 = vpop.f32.mrf.mxu0
        %v2705 = vadd.f32 %v2632, %v2704
        %v2706 = vpop.f32.mrf.mxu0
        %v2707 = vadd.f32 %v2634, %v2706
        %2708 = vmatmul.bf16.gmra.mxu0 %v1795
        %v2709 = vpop.f32.mrf.mxu0
        %v2710 = vadd.f32 %v2637, %v2709
        %v2711 = vpop.f32.mrf.mxu0
        %v2712 = vadd.f32 %v2639, %v2711
        %2713 = vmatmul.bf16.gmra.mxu0 %v1799
        %v2714 = vpop.f32.mrf.mxu0
        %v2715 = vadd.f32 %v2642, %v2714
        %v2716 = vpop.f32.mrf.mxu0
        %v2717 = vadd.f32 %v2644, %v2716
        %2718 = vmatmul.bf16.gmra.mxu0 %v1803
        %v2719 = vpop.f32.mrf.mxu0
        %v2720 = vadd.f32 %v2647, %v2719
        %v2721 = vpop.f32.mrf.mxu0
        %v2722 = vadd.f32 %v2649, %v2721
        %2723 = vmatmul.bf16.gmra.mxu0 %v1807
        %v2724 = vpop.f32.mrf.mxu0
        %v2725 = vadd.f32 %v2652, %v2724
        %v2726 = vpop.f32.mrf.mxu0
        %v2727 = vadd.f32 %v2654, %v2726
        %2728 = vmatmul.bf16.gmra.mxu0 %v1811
        %v2729 = vpop.f32.mrf.mxu0
        %v2730 = vadd.f32 %v2657, %v2729
        %v2731 = vpop.f32.mrf.mxu0
        %v2732 = vadd.f32 %v2659, %v2731
        %2733 = vmatmul.bf16.gmra.mxu0 %v1815
        %v2734 = vpop.f32.mrf.mxu0
        %v2735 = vadd.f32 %v2662, %v2734
        %v2736 = vpop.f32.mrf.mxu0
        %v2737 = vadd.f32 %v2664, %v2736
        %2738 = vmatmul.bf16.gmra.mxu0 %v1819
        %v2739 = vpop.f32.mrf.mxu0
        %v2740 = vadd.f32 %v2667, %v2739
        %v2741 = vpop.f32.mrf.mxu0
        %v2742 = vadd.f32 %v2669, %v2741
        %2743 = vmatmul.bf16.gmra.mxu0 %v1823
        %v2744 = vpop.f32.mrf.mxu0
        %v2745 = vadd.f32 %v2672, %v2744
        %v2746 = vpop.f32.mrf.mxu0
        %v2747 = vadd.f32 %v2674, %v2746
        %2748 = vmatmul.bf16.gmra.mxu0 %v1827
        %v2749 = vpop.f32.mrf.mxu0
        %v2750 = vadd.f32 %v2677, %v2749
        %v2751 = vpop.f32.mrf.mxu0
        %v2752 = vadd.f32 %v2679, %v2751
        %2753 = vmatmul.bf16.gmra.mxu0 %v1831
        %v2754 = vpop.f32.mrf.mxu0
        %v2755 = vadd.f32 %v2682, %v2754
        %v2756 = vpop.f32.mrf.mxu0
        %2757 = vdwg.mxu0
        %2758 = vmatpush.bf16.msra.mxu0 %v2448
        %2759 = vmatpush.bf16.msra.mxu0 %v2444
        %2760 = vmatpush.bf16.msra.mxu0 %v2440
        %2761 = vmatpush.bf16.msra.mxu0 %v2436
        %2762 = vmatpush.bf16.msra.mxu0 %v2432
        %2763 = vmatpush.bf16.msra.mxu0 %v2428
        %2764 = vmatpush.bf16.msra.mxu0 %v2424
        %2765 = vmatpush.bf16.msra.mxu0 %v2420
        %2766 = vmatmul.bf16.gmra.mxu0 %v1784
        %v2767 = vpop.f32.mrf.mxu0
        %v2768 = vadd.f32 %v2695, %v2767
        %v2769 = vpop.f32.mrf.mxu0
        %v2770 = vadd.f32 %v2697, %v2769
        %2771 = vmatmul.bf16.gmra.mxu0 %v1788
        %v2772 = vpop.f32.mrf.mxu0
        %v2773 = vadd.f32 %v2700, %v2772
        %v2774 = vpop.f32.mrf.mxu0
        %v2775 = vadd.f32 %v2702, %v2774
        %2776 = vmatmul.bf16.gmra.mxu0 %v1792
        %v2777 = vpop.f32.mrf.mxu0
        %v2778 = vadd.f32 %v2705, %v2777
        %v2779 = vpop.f32.mrf.mxu0
        %v2780 = vadd.f32 %v2707, %v2779
        %2781 = vmatmul.bf16.gmra.mxu0 %v1796
        %v2782 = vpop.f32.mrf.mxu0
        %v2783 = vadd.f32 %v2710, %v2782
        %v2784 = vpop.f32.mrf.mxu0
        %v2785 = vadd.f32 %v2712, %v2784
        %2786 = vmatmul.bf16.gmra.mxu0 %v1800
        %v2787 = vpop.f32.mrf.mxu0
        %v2788 = vadd.f32 %v2715, %v2787
        %v2789 = vpop.f32.mrf.mxu0
        %v2790 = vadd.f32 %v2717, %v2789
        %2791 = vmatmul.bf16.gmra.mxu0 %v1804
        %v2792 = vpop.f32.mrf.mxu0
        %v2793 = vadd.f32 %v2720, %v2792
        %v2794 = vpop.f32.mrf.mxu0
        %v2795 = vadd.f32 %v2722, %v2794
        %2796 = vmatmul.bf16.gmra.mxu0 %v1808
        %v2797 = vpop.f32.mrf.mxu0
        %v2798 = vadd.f32 %v2725, %v2797
        %v2799 = vpop.f32.mrf.mxu0
        %v2800 = vadd.f32 %v2727, %v2799
        %2801 = vmatmul.bf16.gmra.mxu0 %v1812
        %v2802 = vpop.f32.mrf.mxu0
        %v2803 = vadd.f32 %v2730, %v2802
        %v2804 = vpop.f32.mrf.mxu0
        %v2805 = vadd.f32 %v2732, %v2804
        %2806 = vmatmul.bf16.gmra.mxu0 %v1816
        %v2807 = vpop.f32.mrf.mxu0
        %v2808 = vadd.f32 %v2735, %v2807
        %v2809 = vpop.f32.mrf.mxu0
        %v2810 = vadd.f32 %v2737, %v2809
        %2811 = vmatmul.bf16.gmra.mxu0 %v1820
        %v2812 = vpop.f32.mrf.mxu0
        %v2813 = vadd.f32 %v2740, %v2812
        %v2814 = vpop.f32.mrf.mxu0
        %v2815 = vadd.f32 %v2742, %v2814
        %2816 = vmatmul.bf16.gmra.mxu0 %v1824
        %v2817 = vpop.f32.mrf.mxu0
        %v2818 = vadd.f32 %v2745, %v2817
        %v2819 = vpop.f32.mrf.mxu0
        %v2820 = vadd.f32 %v2747, %v2819
        %2821 = vmatmul.bf16.gmra.mxu0 %v1828
        %v2822 = vpop.f32.mrf.mxu0
        %v2823 = vadd.f32 %v2750, %v2822
        %v2824 = vpop.f32.mrf.mxu0
        %v2825 = vadd.f32 %v2752, %v2824
        %2826 = vmatmul.bf16.gmra.mxu0 %v1832
        %v2827 = vpop.f32.mrf.mxu0
        %v2828 = vadd.f32 %v2755, %v2827
        %v2829 = vpop.f32.mrf.mxu0
        %2830 = vdwg.mxu0
        %2831 = vmatpush.bf16.msra.mxu0 %v2480
        %2832 = vmatpush.bf16.msra.mxu0 %v2476
        %2833 = vmatpush.bf16.msra.mxu0 %v2472
        %2834 = vmatpush.bf16.msra.mxu0 %v2468
        %2835 = vmatpush.bf16.msra.mxu0 %v2464
        %2836 = vmatpush.bf16.msra.mxu0 %v2460
        %2837 = vmatpush.bf16.msra.mxu0 %v2456
        %2838 = vmatpush.bf16.msra.mxu0 %v2452
        %2839 = vmatmul.bf16.gmra.mxu0 %v1785
        %v2840 = vpop.f32.mrf.mxu0
        %v2841 = vadd.f32 %v2768, %v2840
        %v2842 = vpop.f32.mrf.mxu0
        %v2843 = vadd.f32 %v2770, %v2842
        %2844 = vmatmul.bf16.gmra.mxu0 %v1789
        %v2845 = vpop.f32.mrf.mxu0
        %v2846 = vadd.f32 %v2773, %v2845
        %v2847 = vpop.f32.mrf.mxu0
        %v2848 = vadd.f32 %v2775, %v2847
        %2849 = vmatmul.bf16.gmra.mxu0 %v1793
        %v2850 = vpop.f32.mrf.mxu0
        %v2851 = vadd.f32 %v2778, %v2850
        %v2852 = vpop.f32.mrf.mxu0
        %v2853 = vadd.f32 %v2780, %v2852
        %2854 = vmatmul.bf16.gmra.mxu0 %v1797
        %v2855 = vpop.f32.mrf.mxu0
        %v2856 = vadd.f32 %v2783, %v2855
        %v2857 = vpop.f32.mrf.mxu0
        %v2858 = vadd.f32 %v2785, %v2857
        %2859 = vmatmul.bf16.gmra.mxu0 %v1801
        %v2860 = vpop.f32.mrf.mxu0
        %v2861 = vadd.f32 %v2788, %v2860
        %v2862 = vpop.f32.mrf.mxu0
        %v2863 = vadd.f32 %v2790, %v2862
        %2864 = vmatmul.bf16.gmra.mxu0 %v1805
        %v2865 = vpop.f32.mrf.mxu0
        %v2866 = vadd.f32 %v2793, %v2865
        %v2867 = vpop.f32.mrf.mxu0
        %v2868 = vadd.f32 %v2795, %v2867
        %2869 = vmatmul.bf16.gmra.mxu0 %v1809
        %v2870 = vpop.f32.mrf.mxu0
        %v2871 = vadd.f32 %v2798, %v2870
        %v2872 = vpop.f32.mrf.mxu0
        %v2873 = vadd.f32 %v2800, %v2872
        %2874 = vmatmul.bf16.gmra.mxu0 %v1813
        %v2875 = vpop.f32.mrf.mxu0
        %v2876 = vadd.f32 %v2803, %v2875
        %v2877 = vpop.f32.mrf.mxu0
        %v2878 = vadd.f32 %v2805, %v2877
        %2879 = vmatmul.bf16.gmra.mxu0 %v1817
        %v2880 = vpop.f32.mrf.mxu0
        %v2881 = vadd.f32 %v2808, %v2880
        %v2882 = vpop.f32.mrf.mxu0
        %v2883 = vadd.f32 %v2810, %v2882
        %2884 = vmatmul.bf16.gmra.mxu0 %v1821
        %v2885 = vpop.f32.mrf.mxu0
        %v2886 = vadd.f32 %v2813, %v2885
        %v2887 = vpop.f32.mrf.mxu0
        %v2888 = vadd.f32 %v2815, %v2887
        %2889 = vmatmul.bf16.gmra.mxu0 %v1825
        %v2890 = vpop.f32.mrf.mxu0
        %v2891 = vadd.f32 %v2818, %v2890
        %v2892 = vpop.f32.mrf.mxu0
        %v2893 = vadd.f32 %v2820, %v2892
        %2894 = vmatmul.bf16.gmra.mxu0 %v1829
        %v2895 = vpop.f32.mrf.mxu0
        %v2896 = vadd.f32 %v2823, %v2895
        %v2897 = vpop.f32.mrf.mxu0
        %v2898 = vadd.f32 %v2825, %v2897
        %2899 = vmatmul.bf16.gmra.mxu0 %v1833
        %v2900 = vpop.f32.mrf.mxu0
        %v2901 = vadd.f32 %v2828, %v2900
        %v2902 = vpop.f32.mrf.mxu0
        %2903 = vdwg.mxu0
        %2904 = vmatpush.bf16.msra.mxu0 %v2385
        %2905 = vmatpush.bf16.msra.mxu0 %v2381
        %2906 = vmatpush.bf16.msra.mxu0 %v2377
        %2907 = vmatpush.bf16.msra.mxu0 %v2373
        %2908 = vmatpush.bf16.msra.mxu0 %v2369
        %2909 = vmatpush.bf16.msra.mxu0 %v2365
        %2910 = vmatpush.bf16.msra.mxu0 %v2361
        %2911 = vmatpush.bf16.msra.mxu0 %v2357
        %2912 = vmatmul.bf16.gmra.mxu0 %v1782
        %v2913 = vpop.f32.mrf.mxu0
        %v2914 = vadd.f32 %v1965, %v2913
        %v2915 = vpop.f32.mrf.mxu0
        %v2916 = vadd.f32 %v1965, %v2915
        %2917 = vmatmul.bf16.gmra.mxu0 %v1786
        %v2918 = vpop.f32.mrf.mxu0
        %v2919 = vadd.f32 %v1965, %v2918
        %v2920 = vpop.f32.mrf.mxu0
        %v2921 = vadd.f32 %v1965, %v2920
        %2922 = vmatmul.bf16.gmra.mxu0 %v1790
        %v2923 = vpop.f32.mrf.mxu0
        %v2924 = vadd.f32 %v1965, %v2923
        %v2925 = vpop.f32.mrf.mxu0
        %v2926 = vadd.f32 %v1965, %v2925
        %2927 = vmatmul.bf16.gmra.mxu0 %v1794
        %v2928 = vpop.f32.mrf.mxu0
        %v2929 = vadd.f32 %v1965, %v2928
        %v2930 = vpop.f32.mrf.mxu0
        %v2931 = vadd.f32 %v1965, %v2930
        %2932 = vmatmul.bf16.gmra.mxu0 %v1798
        %v2933 = vpop.f32.mrf.mxu0
        %v2934 = vadd.f32 %v1965, %v2933
        %v2935 = vpop.f32.mrf.mxu0
        %v2936 = vadd.f32 %v1965, %v2935
        %2937 = vmatmul.bf16.gmra.mxu0 %v1802
        %v2938 = vpop.f32.mrf.mxu0
        %v2939 = vadd.f32 %v1965, %v2938
        %v2940 = vpop.f32.mrf.mxu0
        %v2941 = vadd.f32 %v1965, %v2940
        %2942 = vmatmul.bf16.gmra.mxu0 %v1806
        %v2943 = vpop.f32.mrf.mxu0
        %v2944 = vadd.f32 %v1965, %v2943
        %v2945 = vpop.f32.mrf.mxu0
        %v2946 = vadd.f32 %v1965, %v2945
        %2947 = vmatmul.bf16.gmra.mxu0 %v1810
        %v2948 = vpop.f32.mrf.mxu0
        %v2949 = vadd.f32 %v1965, %v2948
        %v2950 = vpop.f32.mrf.mxu0
        %v2951 = vadd.f32 %v1965, %v2950
        %2952 = vmatmul.bf16.gmra.mxu0 %v1814
        %v2953 = vpop.f32.mrf.mxu0
        %v2954 = vadd.f32 %v1965, %v2953
        %v2955 = vpop.f32.mrf.mxu0
        %v2956 = vadd.f32 %v1965, %v2955
        %2957 = vmatmul.bf16.gmra.mxu0 %v1818
        %v2958 = vpop.f32.mrf.mxu0
        %v2959 = vadd.f32 %v1965, %v2958
        %v2960 = vpop.f32.mrf.mxu0
        %v2961 = vadd.f32 %v1965, %v2960
        %2962 = vmatmul.bf16.gmra.mxu0 %v1822
        %v2963 = vpop.f32.mrf.mxu0
        %v2964 = vadd.f32 %v1965, %v2963
        %v2965 = vpop.f32.mrf.mxu0
        %v2966 = vadd.f32 %v1965, %v2965
        %2967 = vmatmul.bf16.gmra.mxu0 %v1826
        %v2968 = vpop.f32.mrf.mxu0
        %v2969 = vadd.f32 %v1965, %v2968
        %v2970 = vpop.f32.mrf.mxu0
        %v2971 = vadd.f32 %v1965, %v2970
        %2972 = vmatmul.bf16.gmra.mxu0 %v1830
        %v2973 = vpop.f32.mrf.mxu0
        %v2974 = vadd.f32 %v1965, %v2973
        %v2975 = vpop.f32.mrf.mxu0
        %2976 = vdwg.mxu0
        %2977 = vmatpush.bf16.msra.mxu0 %v2417
        %2978 = vmatpush.bf16.msra.mxu0 %v2413
        %2979 = vmatpush.bf16.msra.mxu0 %v2409
        %2980 = vmatpush.bf16.msra.mxu0 %v2405
        %2981 = vmatpush.bf16.msra.mxu0 %v2401
        %2982 = vmatpush.bf16.msra.mxu0 %v2397
        %2983 = vmatpush.bf16.msra.mxu0 %v2393
        %2984 = vmatpush.bf16.msra.mxu0 %v2389
        %2985 = vmatmul.bf16.gmra.mxu0 %v1783
        %v2986 = vpop.f32.mrf.mxu0
        %v2987 = vadd.f32 %v2914, %v2986
        %v2988 = vpop.f32.mrf.mxu0
        %v2989 = vadd.f32 %v2916, %v2988
        %2990 = vmatmul.bf16.gmra.mxu0 %v1787
        %v2991 = vpop.f32.mrf.mxu0
        %v2992 = vadd.f32 %v2919, %v2991
        %v2993 = vpop.f32.mrf.mxu0
        %v2994 = vadd.f32 %v2921, %v2993
        %2995 = vmatmul.bf16.gmra.mxu0 %v1791
        %v2996 = vpop.f32.mrf.mxu0
        %v2997 = vadd.f32 %v2924, %v2996
        %v2998 = vpop.f32.mrf.mxu0
        %v2999 = vadd.f32 %v2926, %v2998
        %3000 = vmatmul.bf16.gmra.mxu0 %v1795
        %v3001 = vpop.f32.mrf.mxu0
        %v3002 = vadd.f32 %v2929, %v3001
        %v3003 = vpop.f32.mrf.mxu0
        %v3004 = vadd.f32 %v2931, %v3003
        %3005 = vmatmul.bf16.gmra.mxu0 %v1799
        %v3006 = vpop.f32.mrf.mxu0
        %v3007 = vadd.f32 %v2934, %v3006
        %v3008 = vpop.f32.mrf.mxu0
        %v3009 = vadd.f32 %v2936, %v3008
        %3010 = vmatmul.bf16.gmra.mxu0 %v1803
        %v3011 = vpop.f32.mrf.mxu0
        %v3012 = vadd.f32 %v2939, %v3011
        %v3013 = vpop.f32.mrf.mxu0
        %v3014 = vadd.f32 %v2941, %v3013
        %3015 = vmatmul.bf16.gmra.mxu0 %v1807
        %v3016 = vpop.f32.mrf.mxu0
        %v3017 = vadd.f32 %v2944, %v3016
        %v3018 = vpop.f32.mrf.mxu0
        %v3019 = vadd.f32 %v2946, %v3018
        %3020 = vmatmul.bf16.gmra.mxu0 %v1811
        %v3021 = vpop.f32.mrf.mxu0
        %v3022 = vadd.f32 %v2949, %v3021
        %v3023 = vpop.f32.mrf.mxu0
        %v3024 = vadd.f32 %v2951, %v3023
        %3025 = vmatmul.bf16.gmra.mxu0 %v1815
        %v3026 = vpop.f32.mrf.mxu0
        %v3027 = vadd.f32 %v2954, %v3026
        %v3028 = vpop.f32.mrf.mxu0
        %v3029 = vadd.f32 %v2956, %v3028
        %3030 = vmatmul.bf16.gmra.mxu0 %v1819
        %v3031 = vpop.f32.mrf.mxu0
        %v3032 = vadd.f32 %v2959, %v3031
        %v3033 = vpop.f32.mrf.mxu0
        %v3034 = vadd.f32 %v2961, %v3033
        %3035 = vmatmul.bf16.gmra.mxu0 %v1823
        %v3036 = vpop.f32.mrf.mxu0
        %v3037 = vadd.f32 %v2964, %v3036
        %v3038 = vpop.f32.mrf.mxu0
        %v3039 = vadd.f32 %v2966, %v3038
        %3040 = vmatmul.bf16.gmra.mxu0 %v1827
        %v3041 = vpop.f32.mrf.mxu0
        %v3042 = vadd.f32 %v2969, %v3041
        %v3043 = vpop.f32.mrf.mxu0
        %v3044 = vadd.f32 %v2971, %v3043
        %3045 = vmatmul.bf16.gmra.mxu0 %v1831
        %v3046 = vpop.f32.mrf.mxu0
        %v3047 = vadd.f32 %v2974, %v3046
        %v3048 = vpop.f32.mrf.mxu0
        %3049 = vdwg.mxu0
        %3050 = vmatpush.bf16.msra.mxu0 %v2449
        %3051 = vmatpush.bf16.msra.mxu0 %v2445
        %3052 = vmatpush.bf16.msra.mxu0 %v2441
        %3053 = vmatpush.bf16.msra.mxu0 %v2437
        %3054 = vmatpush.bf16.msra.mxu0 %v2433
        %3055 = vmatpush.bf16.msra.mxu0 %v2429
        %3056 = vmatpush.bf16.msra.mxu0 %v2425
        %3057 = vmatpush.bf16.msra.mxu0 %v2421
        %3058 = vmatmul.bf16.gmra.mxu0 %v1784
        %v3059 = vpop.f32.mrf.mxu0
        %v3060 = vadd.f32 %v2987, %v3059
        %v3061 = vpop.f32.mrf.mxu0
        %v3062 = vadd.f32 %v2989, %v3061
        %3063 = vmatmul.bf16.gmra.mxu0 %v1788
        %v3064 = vpop.f32.mrf.mxu0
        %v3065 = vadd.f32 %v2992, %v3064
        %v3066 = vpop.f32.mrf.mxu0
        %v3067 = vadd.f32 %v2994, %v3066
        %3068 = vmatmul.bf16.gmra.mxu0 %v1792
        %v3069 = vpop.f32.mrf.mxu0
        %v3070 = vadd.f32 %v2997, %v3069
        %v3071 = vpop.f32.mrf.mxu0
        %v3072 = vadd.f32 %v2999, %v3071
        %3073 = vmatmul.bf16.gmra.mxu0 %v1796
        %v3074 = vpop.f32.mrf.mxu0
        %v3075 = vadd.f32 %v3002, %v3074
        %v3076 = vpop.f32.mrf.mxu0
        %v3077 = vadd.f32 %v3004, %v3076
        %3078 = vmatmul.bf16.gmra.mxu0 %v1800
        %v3079 = vpop.f32.mrf.mxu0
        %v3080 = vadd.f32 %v3007, %v3079
        %v3081 = vpop.f32.mrf.mxu0
        %v3082 = vadd.f32 %v3009, %v3081
        %3083 = vmatmul.bf16.gmra.mxu0 %v1804
        %v3084 = vpop.f32.mrf.mxu0
        %v3085 = vadd.f32 %v3012, %v3084
        %v3086 = vpop.f32.mrf.mxu0
        %v3087 = vadd.f32 %v3014, %v3086
        %3088 = vmatmul.bf16.gmra.mxu0 %v1808
        %v3089 = vpop.f32.mrf.mxu0
        %v3090 = vadd.f32 %v3017, %v3089
        %v3091 = vpop.f32.mrf.mxu0
        %v3092 = vadd.f32 %v3019, %v3091
        %3093 = vmatmul.bf16.gmra.mxu0 %v1812
        %v3094 = vpop.f32.mrf.mxu0
        %v3095 = vadd.f32 %v3022, %v3094
        %v3096 = vpop.f32.mrf.mxu0
        %v3097 = vadd.f32 %v3024, %v3096
        %3098 = vmatmul.bf16.gmra.mxu0 %v1816
        %v3099 = vpop.f32.mrf.mxu0
        %v3100 = vadd.f32 %v3027, %v3099
        %v3101 = vpop.f32.mrf.mxu0
        %v3102 = vadd.f32 %v3029, %v3101
        %3103 = vmatmul.bf16.gmra.mxu0 %v1820
        %v3104 = vpop.f32.mrf.mxu0
        %v3105 = vadd.f32 %v3032, %v3104
        %v3106 = vpop.f32.mrf.mxu0
        %v3107 = vadd.f32 %v3034, %v3106
        %3108 = vmatmul.bf16.gmra.mxu0 %v1824
        %v3109 = vpop.f32.mrf.mxu0
        %v3110 = vadd.f32 %v3037, %v3109
        %v3111 = vpop.f32.mrf.mxu0
        %v3112 = vadd.f32 %v3039, %v3111
        %3113 = vmatmul.bf16.gmra.mxu0 %v1828
        %v3114 = vpop.f32.mrf.mxu0
        %v3115 = vadd.f32 %v3042, %v3114
        %v3116 = vpop.f32.mrf.mxu0
        %v3117 = vadd.f32 %v3044, %v3116
        %3118 = vmatmul.bf16.gmra.mxu0 %v1832
        %v3119 = vpop.f32.mrf.mxu0
        %v3120 = vadd.f32 %v3047, %v3119
        %v3121 = vpop.f32.mrf.mxu0
        %3122 = vdwg.mxu0
        %3123 = vmatpush.bf16.msra.mxu0 %v2481
        %3124 = vmatpush.bf16.msra.mxu0 %v2477
        %3125 = vmatpush.bf16.msra.mxu0 %v2473
        %3126 = vmatpush.bf16.msra.mxu0 %v2469
        %3127 = vmatpush.bf16.msra.mxu0 %v2465
        %3128 = vmatpush.bf16.msra.mxu0 %v2461
        %3129 = vmatpush.bf16.msra.mxu0 %v2457
        %3130 = vmatpush.bf16.msra.mxu0 %v2453
        %3131 = vmatmul.bf16.gmra.mxu0 %v1785
        %v3132 = vpop.f32.mrf.mxu0
        %v3133 = vadd.f32 %v3060, %v3132
        %v3134 = vpop.f32.mrf.mxu0
        %v3135 = vadd.f32 %v3062, %v3134
        %3136 = vmatmul.bf16.gmra.mxu0 %v1789
        %v3137 = vpop.f32.mrf.mxu0
        %v3138 = vadd.f32 %v3065, %v3137
        %v3139 = vpop.f32.mrf.mxu0
        %v3140 = vadd.f32 %v3067, %v3139
        %3141 = vmatmul.bf16.gmra.mxu0 %v1793
        %v3142 = vpop.f32.mrf.mxu0
        %v3143 = vadd.f32 %v3070, %v3142
        %v3144 = vpop.f32.mrf.mxu0
        %v3145 = vadd.f32 %v3072, %v3144
        %3146 = vmatmul.bf16.gmra.mxu0 %v1797
        %v3147 = vpop.f32.mrf.mxu0
        %v3148 = vadd.f32 %v3075, %v3147
        %v3149 = vpop.f32.mrf.mxu0
        %v3150 = vadd.f32 %v3077, %v3149
        %3151 = vmatmul.bf16.gmra.mxu0 %v1801
        %v3152 = vpop.f32.mrf.mxu0
        %v3153 = vadd.f32 %v3080, %v3152
        %v3154 = vpop.f32.mrf.mxu0
        %v3155 = vadd.f32 %v3082, %v3154
        %3156 = vmatmul.bf16.gmra.mxu0 %v1805
        %v3157 = vpop.f32.mrf.mxu0
        %v3158 = vadd.f32 %v3085, %v3157
        %v3159 = vpop.f32.mrf.mxu0
        %v3160 = vadd.f32 %v3087, %v3159
        %3161 = vmatmul.bf16.gmra.mxu0 %v1809
        %v3162 = vpop.f32.mrf.mxu0
        %v3163 = vadd.f32 %v3090, %v3162
        %v3164 = vpop.f32.mrf.mxu0
        %v3165 = vadd.f32 %v3092, %v3164
        %3166 = vmatmul.bf16.gmra.mxu0 %v1813
        %v3167 = vpop.f32.mrf.mxu0
        %v3168 = vadd.f32 %v3095, %v3167
        %v3169 = vpop.f32.mrf.mxu0
        %v3170 = vadd.f32 %v3097, %v3169
        %3171 = vmatmul.bf16.gmra.mxu0 %v1817
        %v3172 = vpop.f32.mrf.mxu0
        %v3173 = vadd.f32 %v3100, %v3172
        %v3174 = vpop.f32.mrf.mxu0
        %v3175 = vadd.f32 %v3102, %v3174
        %3176 = vmatmul.bf16.gmra.mxu0 %v1821
        %v3177 = vpop.f32.mrf.mxu0
        %v3178 = vadd.f32 %v3105, %v3177
        %v3179 = vpop.f32.mrf.mxu0
        %v3180 = vadd.f32 %v3107, %v3179
        %3181 = vmatmul.bf16.gmra.mxu0 %v1825
        %v3182 = vpop.f32.mrf.mxu0
        %v3183 = vadd.f32 %v3110, %v3182
        %v3184 = vpop.f32.mrf.mxu0
        %v3185 = vadd.f32 %v3112, %v3184
        %3186 = vmatmul.bf16.gmra.mxu0 %v1829
        %v3187 = vpop.f32.mrf.mxu0
        %v3188 = vadd.f32 %v3115, %v3187
        %v3189 = vpop.f32.mrf.mxu0
        %v3190 = vadd.f32 %v3117, %v3189
        %3191 = vmatmul.bf16.gmra.mxu0 %v1833
        %v3192 = vpop.f32.mrf.mxu0
        %v3193 = vadd.f32 %v3120, %v3192
        %v3194 = vpop.f32.mrf.mxu0
        %3195 = vdwg.mxu0
        %3196 = vmatpush.bf16.msra.mxu0 %v2386
        %3197 = vmatpush.bf16.msra.mxu0 %v2382
        %3198 = vmatpush.bf16.msra.mxu0 %v2378
        %3199 = vmatpush.bf16.msra.mxu0 %v2374
        %3200 = vmatpush.bf16.msra.mxu0 %v2370
        %3201 = vmatpush.bf16.msra.mxu0 %v2366
        %3202 = vmatpush.bf16.msra.mxu0 %v2362
        %3203 = vmatpush.bf16.msra.mxu0 %v2358
        %3204 = vmatmul.bf16.gmra.mxu0 %v1782
        %v3205 = vpop.f32.mrf.mxu0
        %v3206 = vadd.f32 %v1966, %v3205
        %v3207 = vpop.f32.mrf.mxu0
        %v3208 = vadd.f32 %v1966, %v3207
        %3209 = vmatmul.bf16.gmra.mxu0 %v1786
        %v3210 = vpop.f32.mrf.mxu0
        %v3211 = vadd.f32 %v1966, %v3210
        %v3212 = vpop.f32.mrf.mxu0
        %v3213 = vadd.f32 %v1966, %v3212
        %3214 = vmatmul.bf16.gmra.mxu0 %v1790
        %v3215 = vpop.f32.mrf.mxu0
        %v3216 = vadd.f32 %v1966, %v3215
        %v3217 = vpop.f32.mrf.mxu0
        %v3218 = vadd.f32 %v1966, %v3217
        %3219 = vmatmul.bf16.gmra.mxu0 %v1794
        %v3220 = vpop.f32.mrf.mxu0
        %v3221 = vadd.f32 %v1966, %v3220
        %v3222 = vpop.f32.mrf.mxu0
        %v3223 = vadd.f32 %v1966, %v3222
        %3224 = vmatmul.bf16.gmra.mxu0 %v1798
        %v3225 = vpop.f32.mrf.mxu0
        %v3226 = vadd.f32 %v1966, %v3225
        %v3227 = vpop.f32.mrf.mxu0
        %v3228 = vadd.f32 %v1966, %v3227
        %3229 = vmatmul.bf16.gmra.mxu0 %v1802
        %v3230 = vpop.f32.mrf.mxu0
        %v3231 = vadd.f32 %v1966, %v3230
        %v3232 = vpop.f32.mrf.mxu0
        %v3233 = vadd.f32 %v1966, %v3232
        %3234 = vmatmul.bf16.gmra.mxu0 %v1806
        %v3235 = vpop.f32.mrf.mxu0
        %v3236 = vadd.f32 %v1966, %v3235
        %v3237 = vpop.f32.mrf.mxu0
        %v3238 = vadd.f32 %v1966, %v3237
        %3239 = vmatmul.bf16.gmra.mxu0 %v1810
        %v3240 = vpop.f32.mrf.mxu0
        %v3241 = vadd.f32 %v1966, %v3240
        %v3242 = vpop.f32.mrf.mxu0
        %v3243 = vadd.f32 %v1966, %v3242
        %3244 = vmatmul.bf16.gmra.mxu0 %v1814
        %v3245 = vpop.f32.mrf.mxu0
        %v3246 = vadd.f32 %v1966, %v3245
        %v3247 = vpop.f32.mrf.mxu0
        %v3248 = vadd.f32 %v1966, %v3247
        %3249 = vmatmul.bf16.gmra.mxu0 %v1818
        %v3250 = vpop.f32.mrf.mxu0
        %v3251 = vadd.f32 %v1966, %v3250
        %v3252 = vpop.f32.mrf.mxu0
        %v3253 = vadd.f32 %v1966, %v3252
        %3254 = vmatmul.bf16.gmra.mxu0 %v1822
        %v3255 = vpop.f32.mrf.mxu0
        %v3256 = vadd.f32 %v1966, %v3255
        %v3257 = vpop.f32.mrf.mxu0
        %v3258 = vadd.f32 %v1966, %v3257
        %3259 = vmatmul.bf16.gmra.mxu0 %v1826
        %v3260 = vpop.f32.mrf.mxu0
        %v3261 = vadd.f32 %v1966, %v3260
        %v3262 = vpop.f32.mrf.mxu0
        %v3263 = vadd.f32 %v1966, %v3262
        %3264 = vmatmul.bf16.gmra.mxu0 %v1830
        %v3265 = vpop.f32.mrf.mxu0
        %v3266 = vadd.f32 %v1966, %v3265
        %v3267 = vpop.f32.mrf.mxu0
        %3268 = vdwg.mxu0
        %3269 = vmatpush.bf16.msra.mxu0 %v2418
        %3270 = vmatpush.bf16.msra.mxu0 %v2414
        %3271 = vmatpush.bf16.msra.mxu0 %v2410
        %3272 = vmatpush.bf16.msra.mxu0 %v2406
        %3273 = vmatpush.bf16.msra.mxu0 %v2402
        %3274 = vmatpush.bf16.msra.mxu0 %v2398
        %3275 = vmatpush.bf16.msra.mxu0 %v2394
        %3276 = vmatpush.bf16.msra.mxu0 %v2390
        %3277 = vmatmul.bf16.gmra.mxu0 %v1783
        %v3278 = vpop.f32.mrf.mxu0
        %v3279 = vadd.f32 %v3206, %v3278
        %v3280 = vpop.f32.mrf.mxu0
        %v3281 = vadd.f32 %v3208, %v3280
        %3282 = vmatmul.bf16.gmra.mxu0 %v1787
        %v3283 = vpop.f32.mrf.mxu0
        %v3284 = vadd.f32 %v3211, %v3283
        %v3285 = vpop.f32.mrf.mxu0
        %v3286 = vadd.f32 %v3213, %v3285
        %3287 = vmatmul.bf16.gmra.mxu0 %v1791
        %v3288 = vpop.f32.mrf.mxu0
        %v3289 = vadd.f32 %v3216, %v3288
        %v3290 = vpop.f32.mrf.mxu0
        %v3291 = vadd.f32 %v3218, %v3290
        %3292 = vmatmul.bf16.gmra.mxu0 %v1795
        %v3293 = vpop.f32.mrf.mxu0
        %v3294 = vadd.f32 %v3221, %v3293
        %v3295 = vpop.f32.mrf.mxu0
        %v3296 = vadd.f32 %v3223, %v3295
        %3297 = vmatmul.bf16.gmra.mxu0 %v1799
        %v3298 = vpop.f32.mrf.mxu0
        %v3299 = vadd.f32 %v3226, %v3298
        %v3300 = vpop.f32.mrf.mxu0
        %v3301 = vadd.f32 %v3228, %v3300
        %3302 = vmatmul.bf16.gmra.mxu0 %v1803
        %v3303 = vpop.f32.mrf.mxu0
        %v3304 = vadd.f32 %v3231, %v3303
        %v3305 = vpop.f32.mrf.mxu0
        %v3306 = vadd.f32 %v3233, %v3305
        %3307 = vmatmul.bf16.gmra.mxu0 %v1807
        %v3308 = vpop.f32.mrf.mxu0
        %v3309 = vadd.f32 %v3236, %v3308
        %v3310 = vpop.f32.mrf.mxu0
        %v3311 = vadd.f32 %v3238, %v3310
        %3312 = vmatmul.bf16.gmra.mxu0 %v1811
        %v3313 = vpop.f32.mrf.mxu0
        %v3314 = vadd.f32 %v3241, %v3313
        %v3315 = vpop.f32.mrf.mxu0
        %v3316 = vadd.f32 %v3243, %v3315
        %3317 = vmatmul.bf16.gmra.mxu0 %v1815
        %v3318 = vpop.f32.mrf.mxu0
        %v3319 = vadd.f32 %v3246, %v3318
        %v3320 = vpop.f32.mrf.mxu0
        %v3321 = vadd.f32 %v3248, %v3320
        %3322 = vmatmul.bf16.gmra.mxu0 %v1819
        %v3323 = vpop.f32.mrf.mxu0
        %v3324 = vadd.f32 %v3251, %v3323
        %v3325 = vpop.f32.mrf.mxu0
        %v3326 = vadd.f32 %v3253, %v3325
        %3327 = vmatmul.bf16.gmra.mxu0 %v1823
        %v3328 = vpop.f32.mrf.mxu0
        %v3329 = vadd.f32 %v3256, %v3328
        %v3330 = vpop.f32.mrf.mxu0
        %v3331 = vadd.f32 %v3258, %v3330
        %3332 = vmatmul.bf16.gmra.mxu0 %v1827
        %v3333 = vpop.f32.mrf.mxu0
        %v3334 = vadd.f32 %v3261, %v3333
        %v3335 = vpop.f32.mrf.mxu0
        %v3336 = vadd.f32 %v3263, %v3335
        %3337 = vmatmul.bf16.gmra.mxu0 %v1831
        %v3338 = vpop.f32.mrf.mxu0
        %v3339 = vadd.f32 %v3266, %v3338
        %v3340 = vpop.f32.mrf.mxu0
        %3341 = vdwg.mxu0
        %3342 = vmatpush.bf16.msra.mxu0 %v2450
        %3343 = vmatpush.bf16.msra.mxu0 %v2446
        %3344 = vmatpush.bf16.msra.mxu0 %v2442
        %3345 = vmatpush.bf16.msra.mxu0 %v2438
        %3346 = vmatpush.bf16.msra.mxu0 %v2434
        %3347 = vmatpush.bf16.msra.mxu0 %v2430
        %3348 = vmatpush.bf16.msra.mxu0 %v2426
        %3349 = vmatpush.bf16.msra.mxu0 %v2422
        %3350 = vmatmul.bf16.gmra.mxu0 %v1784
        %v3351 = vpop.f32.mrf.mxu0
        %v3352 = vadd.f32 %v3279, %v3351
        %v3353 = vpop.f32.mrf.mxu0
        %v3354 = vadd.f32 %v3281, %v3353
        %3355 = vmatmul.bf16.gmra.mxu0 %v1788
        %v3356 = vpop.f32.mrf.mxu0
        %v3357 = vadd.f32 %v3284, %v3356
        %v3358 = vpop.f32.mrf.mxu0
        %v3359 = vadd.f32 %v3286, %v3358
        %3360 = vmatmul.bf16.gmra.mxu0 %v1792
        %v3361 = vpop.f32.mrf.mxu0
        %v3362 = vadd.f32 %v3289, %v3361
        %v3363 = vpop.f32.mrf.mxu0
        %v3364 = vadd.f32 %v3291, %v3363
        %3365 = vmatmul.bf16.gmra.mxu0 %v1796
        %v3366 = vpop.f32.mrf.mxu0
        %v3367 = vadd.f32 %v3294, %v3366
        %v3368 = vpop.f32.mrf.mxu0
        %v3369 = vadd.f32 %v3296, %v3368
        %3370 = vmatmul.bf16.gmra.mxu0 %v1800
        %v3371 = vpop.f32.mrf.mxu0
        %v3372 = vadd.f32 %v3299, %v3371
        %v3373 = vpop.f32.mrf.mxu0
        %v3374 = vadd.f32 %v3301, %v3373
        %3375 = vmatmul.bf16.gmra.mxu0 %v1804
        %v3376 = vpop.f32.mrf.mxu0
        %v3377 = vadd.f32 %v3304, %v3376
        %v3378 = vpop.f32.mrf.mxu0
        %v3379 = vadd.f32 %v3306, %v3378
        %3380 = vmatmul.bf16.gmra.mxu0 %v1808
        %v3381 = vpop.f32.mrf.mxu0
        %v3382 = vadd.f32 %v3309, %v3381
        %v3383 = vpop.f32.mrf.mxu0
        %v3384 = vadd.f32 %v3311, %v3383
        %3385 = vmatmul.bf16.gmra.mxu0 %v1812
        %v3386 = vpop.f32.mrf.mxu0
        %v3387 = vadd.f32 %v3314, %v3386
        %v3388 = vpop.f32.mrf.mxu0
        %v3389 = vadd.f32 %v3316, %v3388
        %3390 = vmatmul.bf16.gmra.mxu0 %v1816
        %v3391 = vpop.f32.mrf.mxu0
        %v3392 = vadd.f32 %v3319, %v3391
        %v3393 = vpop.f32.mrf.mxu0
        %v3394 = vadd.f32 %v3321, %v3393
        %3395 = vmatmul.bf16.gmra.mxu0 %v1820
        %v3396 = vpop.f32.mrf.mxu0
        %v3397 = vadd.f32 %v3324, %v3396
        %v3398 = vpop.f32.mrf.mxu0
        %v3399 = vadd.f32 %v3326, %v3398
        %3400 = vmatmul.bf16.gmra.mxu0 %v1824
        %v3401 = vpop.f32.mrf.mxu0
        %v3402 = vadd.f32 %v3329, %v3401
        %v3403 = vpop.f32.mrf.mxu0
        %v3404 = vadd.f32 %v3331, %v3403
        %3405 = vmatmul.bf16.gmra.mxu0 %v1828
        %v3406 = vpop.f32.mrf.mxu0
        %v3407 = vadd.f32 %v3334, %v3406
        %v3408 = vpop.f32.mrf.mxu0
        %v3409 = vadd.f32 %v3336, %v3408
        %3410 = vmatmul.bf16.gmra.mxu0 %v1832
        %v3411 = vpop.f32.mrf.mxu0
        %v3412 = vadd.f32 %v3339, %v3411
        %v3413 = vpop.f32.mrf.mxu0
        %3414 = vdwg.mxu0
        %3415 = vmatpush.bf16.msra.mxu0 %v2482
        %3416 = vmatpush.bf16.msra.mxu0 %v2478
        %3417 = vmatpush.bf16.msra.mxu0 %v2474
        %3418 = vmatpush.bf16.msra.mxu0 %v2470
        %3419 = vmatpush.bf16.msra.mxu0 %v2466
        %3420 = vmatpush.bf16.msra.mxu0 %v2462
        %3421 = vmatpush.bf16.msra.mxu0 %v2458
        %3422 = vmatpush.bf16.msra.mxu0 %v2454
        %3423 = vmatmul.bf16.gmra.mxu0 %v1785
        %v3424 = vpop.f32.mrf.mxu0
        %v3425 = vadd.f32 %v3352, %v3424
        %v3426 = vpop.f32.mrf.mxu0
        %v3427 = vadd.f32 %v3354, %v3426
        %3428 = vmatmul.bf16.gmra.mxu0 %v1789
        %v3429 = vpop.f32.mrf.mxu0
        %v3430 = vadd.f32 %v3357, %v3429
        %v3431 = vpop.f32.mrf.mxu0
        %v3432 = vadd.f32 %v3359, %v3431
        %3433 = vmatmul.bf16.gmra.mxu0 %v1793
        %v3434 = vpop.f32.mrf.mxu0
        %v3435 = vadd.f32 %v3362, %v3434
        %v3436 = vpop.f32.mrf.mxu0
        %v3437 = vadd.f32 %v3364, %v3436
        %3438 = vmatmul.bf16.gmra.mxu0 %v1797
        %v3439 = vpop.f32.mrf.mxu0
        %v3440 = vadd.f32 %v3367, %v3439
        %v3441 = vpop.f32.mrf.mxu0
        %v3442 = vadd.f32 %v3369, %v3441
        %3443 = vmatmul.bf16.gmra.mxu0 %v1801
        %v3444 = vpop.f32.mrf.mxu0
        %v3445 = vadd.f32 %v3372, %v3444
        %v3446 = vpop.f32.mrf.mxu0
        %v3447 = vadd.f32 %v3374, %v3446
        %3448 = vmatmul.bf16.gmra.mxu0 %v1805
        %v3449 = vpop.f32.mrf.mxu0
        %v3450 = vadd.f32 %v3377, %v3449
        %v3451 = vpop.f32.mrf.mxu0
        %v3452 = vadd.f32 %v3379, %v3451
        %3453 = vmatmul.bf16.gmra.mxu0 %v1809
        %v3454 = vpop.f32.mrf.mxu0
        %v3455 = vadd.f32 %v3382, %v3454
        %v3456 = vpop.f32.mrf.mxu0
        %v3457 = vadd.f32 %v3384, %v3456
        %3458 = vmatmul.bf16.gmra.mxu0 %v1813
        %v3459 = vpop.f32.mrf.mxu0
        %v3460 = vadd.f32 %v3387, %v3459
        %v3461 = vpop.f32.mrf.mxu0
        %v3462 = vadd.f32 %v3389, %v3461
        %3463 = vmatmul.bf16.gmra.mxu0 %v1817
        %v3464 = vpop.f32.mrf.mxu0
        %v3465 = vadd.f32 %v3392, %v3464
        %v3466 = vpop.f32.mrf.mxu0
        %v3467 = vadd.f32 %v3394, %v3466
        %3468 = vmatmul.bf16.gmra.mxu0 %v1821
        %v3469 = vpop.f32.mrf.mxu0
        %v3470 = vadd.f32 %v3397, %v3469
        %v3471 = vpop.f32.mrf.mxu0
        %v3472 = vadd.f32 %v3399, %v3471
        %3473 = vmatmul.bf16.gmra.mxu0 %v1825
        %v3474 = vpop.f32.mrf.mxu0
        %v3475 = vadd.f32 %v3402, %v3474
        %v3476 = vpop.f32.mrf.mxu0
        %v3477 = vadd.f32 %v3404, %v3476
        %3478 = vmatmul.bf16.gmra.mxu0 %v1829
        %v3479 = vpop.f32.mrf.mxu0
        %v3480 = vadd.f32 %v3407, %v3479
        %v3481 = vpop.f32.mrf.mxu0
        %v3482 = vadd.f32 %v3409, %v3481
        %3483 = vmatmul.bf16.gmra.mxu0 %v1833
        %v3484 = vpop.f32.mrf.mxu0
        %v3485 = vadd.f32 %v3412, %v3484
        %v3486 = vpop.f32.mrf.mxu0
        %3487 = vdwg.mxu0
        %3488 = vmatpush.bf16.msra.mxu0 %v2387
        %3489 = vmatpush.bf16.msra.mxu0 %v2383
        %3490 = vmatpush.bf16.msra.mxu0 %v2379
        %3491 = vmatpush.bf16.msra.mxu0 %v2375
        %3492 = vmatpush.bf16.msra.mxu0 %v2371
        %3493 = vmatpush.bf16.msra.mxu0 %v2367
        %3494 = vmatpush.bf16.msra.mxu0 %v2363
        %3495 = vmatpush.bf16.msra.mxu0 %v2359
        %3496 = vmatmul.bf16.gmra.mxu0 %v1782
        %v3497 = vpop.f32.mrf.mxu0
        %v3498 = vadd.f32 %v1967, %v3497
        %v3499 = vpop.f32.mrf.mxu0
        %v3500 = vadd.f32 %v1967, %v3499
        %3501 = vmatmul.bf16.gmra.mxu0 %v1786
        %v3502 = vpop.f32.mrf.mxu0
        %v3503 = vadd.f32 %v1967, %v3502
        %v3504 = vpop.f32.mrf.mxu0
        %v3505 = vadd.f32 %v1967, %v3504
        %3506 = vmatmul.bf16.gmra.mxu0 %v1790
        %v3507 = vpop.f32.mrf.mxu0
        %v3508 = vadd.f32 %v1967, %v3507
        %v3509 = vpop.f32.mrf.mxu0
        %v3510 = vadd.f32 %v1967, %v3509
        %3511 = vmatmul.bf16.gmra.mxu0 %v1794
        %v3512 = vpop.f32.mrf.mxu0
        %v3513 = vadd.f32 %v1967, %v3512
        %v3514 = vpop.f32.mrf.mxu0
        %v3515 = vadd.f32 %v1967, %v3514
        %3516 = vmatmul.bf16.gmra.mxu0 %v1798
        %v3517 = vpop.f32.mrf.mxu0
        %v3518 = vadd.f32 %v1967, %v3517
        %v3519 = vpop.f32.mrf.mxu0
        %v3520 = vadd.f32 %v1967, %v3519
        %3521 = vmatmul.bf16.gmra.mxu0 %v1802
        %v3522 = vpop.f32.mrf.mxu0
        %v3523 = vadd.f32 %v1967, %v3522
        %v3524 = vpop.f32.mrf.mxu0
        %v3525 = vadd.f32 %v1967, %v3524
        %3526 = vmatmul.bf16.gmra.mxu0 %v1806
        %v3527 = vpop.f32.mrf.mxu0
        %v3528 = vadd.f32 %v1967, %v3527
        %v3529 = vpop.f32.mrf.mxu0
        %v3530 = vadd.f32 %v1967, %v3529
        %3531 = vmatmul.bf16.gmra.mxu0 %v1810
        %v3532 = vpop.f32.mrf.mxu0
        %v3533 = vadd.f32 %v1967, %v3532
        %v3534 = vpop.f32.mrf.mxu0
        %v3535 = vadd.f32 %v1967, %v3534
        %3536 = vmatmul.bf16.gmra.mxu0 %v1814
        %v3537 = vpop.f32.mrf.mxu0
        %v3538 = vadd.f32 %v1967, %v3537
        %v3539 = vpop.f32.mrf.mxu0
        %v3540 = vadd.f32 %v1967, %v3539
        %3541 = vmatmul.bf16.gmra.mxu0 %v1818
        %v3542 = vpop.f32.mrf.mxu0
        %v3543 = vadd.f32 %v1967, %v3542
        %v3544 = vpop.f32.mrf.mxu0
        %v3545 = vadd.f32 %v1967, %v3544
        %3546 = vmatmul.bf16.gmra.mxu0 %v1822
        %v3547 = vpop.f32.mrf.mxu0
        %v3548 = vadd.f32 %v1967, %v3547
        %v3549 = vpop.f32.mrf.mxu0
        %v3550 = vadd.f32 %v1967, %v3549
        %3551 = vmatmul.bf16.gmra.mxu0 %v1826
        %v3552 = vpop.f32.mrf.mxu0
        %v3553 = vadd.f32 %v1967, %v3552
        %v3554 = vpop.f32.mrf.mxu0
        %v3555 = vadd.f32 %v1967, %v3554
        %3556 = vmatmul.bf16.gmra.mxu0 %v1830
        %v3557 = vpop.f32.mrf.mxu0
        %v3558 = vadd.f32 %v1967, %v3557
        %v3559 = vpop.f32.mrf.mxu0
        %3560 = vdwg.mxu0
        %3561 = vmatpush.bf16.msra.mxu0 %v2419
        %3562 = vmatpush.bf16.msra.mxu0 %v2415
        %3563 = vmatpush.bf16.msra.mxu0 %v2411
        %3564 = vmatpush.bf16.msra.mxu0 %v2407
        %3565 = vmatpush.bf16.msra.mxu0 %v2403
        %3566 = vmatpush.bf16.msra.mxu0 %v2399
        %3567 = vmatpush.bf16.msra.mxu0 %v2395
        %3568 = vmatpush.bf16.msra.mxu0 %v2391
        %3569 = vmatmul.bf16.gmra.mxu0 %v1783
        %v3570 = vpop.f32.mrf.mxu0
        %v3571 = vadd.f32 %v3498, %v3570
        %v3572 = vpop.f32.mrf.mxu0
        %v3573 = vadd.f32 %v3500, %v3572
        %3574 = vmatmul.bf16.gmra.mxu0 %v1787
        %v3575 = vpop.f32.mrf.mxu0
        %v3576 = vadd.f32 %v3503, %v3575
        %v3577 = vpop.f32.mrf.mxu0
        %v3578 = vadd.f32 %v3505, %v3577
        %3579 = vmatmul.bf16.gmra.mxu0 %v1791
        %v3580 = vpop.f32.mrf.mxu0
        %v3581 = vadd.f32 %v3508, %v3580
        %v3582 = vpop.f32.mrf.mxu0
        %v3583 = vadd.f32 %v3510, %v3582
        %3584 = vmatmul.bf16.gmra.mxu0 %v1795
        %v3585 = vpop.f32.mrf.mxu0
        %v3586 = vadd.f32 %v3513, %v3585
        %v3587 = vpop.f32.mrf.mxu0
        %v3588 = vadd.f32 %v3515, %v3587
        %3589 = vmatmul.bf16.gmra.mxu0 %v1799
        %v3590 = vpop.f32.mrf.mxu0
        %v3591 = vadd.f32 %v3518, %v3590
        %v3592 = vpop.f32.mrf.mxu0
        %v3593 = vadd.f32 %v3520, %v3592
        %3594 = vmatmul.bf16.gmra.mxu0 %v1803
        %v3595 = vpop.f32.mrf.mxu0
        %v3596 = vadd.f32 %v3523, %v3595
        %v3597 = vpop.f32.mrf.mxu0
        %v3598 = vadd.f32 %v3525, %v3597
        %3599 = vmatmul.bf16.gmra.mxu0 %v1807
        %v3600 = vpop.f32.mrf.mxu0
        %v3601 = vadd.f32 %v3528, %v3600
        %v3602 = vpop.f32.mrf.mxu0
        %v3603 = vadd.f32 %v3530, %v3602
        %3604 = vmatmul.bf16.gmra.mxu0 %v1811
        %v3605 = vpop.f32.mrf.mxu0
        %v3606 = vadd.f32 %v3533, %v3605
        %v3607 = vpop.f32.mrf.mxu0
        %v3608 = vadd.f32 %v3535, %v3607
        %3609 = vmatmul.bf16.gmra.mxu0 %v1815
        %v3610 = vpop.f32.mrf.mxu0
        %v3611 = vadd.f32 %v3538, %v3610
        %v3612 = vpop.f32.mrf.mxu0
        %v3613 = vadd.f32 %v3540, %v3612
        %3614 = vmatmul.bf16.gmra.mxu0 %v1819
        %v3615 = vpop.f32.mrf.mxu0
        %v3616 = vadd.f32 %v3543, %v3615
        %v3617 = vpop.f32.mrf.mxu0
        %v3618 = vadd.f32 %v3545, %v3617
        %3619 = vmatmul.bf16.gmra.mxu0 %v1823
        %v3620 = vpop.f32.mrf.mxu0
        %v3621 = vadd.f32 %v3548, %v3620
        %v3622 = vpop.f32.mrf.mxu0
        %v3623 = vadd.f32 %v3550, %v3622
        %3624 = vmatmul.bf16.gmra.mxu0 %v1827
        %v3625 = vpop.f32.mrf.mxu0
        %v3626 = vadd.f32 %v3553, %v3625
        %v3627 = vpop.f32.mrf.mxu0
        %v3628 = vadd.f32 %v3555, %v3627
        %3629 = vmatmul.bf16.gmra.mxu0 %v1831
        %v3630 = vpop.f32.mrf.mxu0
        %v3631 = vadd.f32 %v3558, %v3630
        %v3632 = vpop.f32.mrf.mxu0
        %3633 = vdwg.mxu0
        %3634 = vmatpush.bf16.msra.mxu0 %v2451
        %3635 = vmatpush.bf16.msra.mxu0 %v2447
        %3636 = vmatpush.bf16.msra.mxu0 %v2443
        %3637 = vmatpush.bf16.msra.mxu0 %v2439
        %3638 = vmatpush.bf16.msra.mxu0 %v2435
        %3639 = vmatpush.bf16.msra.mxu0 %v2431
        %3640 = vmatpush.bf16.msra.mxu0 %v2427
        %3641 = vmatpush.bf16.msra.mxu0 %v2423
        %3642 = vmatmul.bf16.gmra.mxu0 %v1784
        %v3643 = vpop.f32.mrf.mxu0
        %v3644 = vadd.f32 %v3571, %v3643
        %v3645 = vpop.f32.mrf.mxu0
        %v3646 = vadd.f32 %v3573, %v3645
        %3647 = vmatmul.bf16.gmra.mxu0 %v1788
        %v3648 = vpop.f32.mrf.mxu0
        %v3649 = vadd.f32 %v3576, %v3648
        %v3650 = vpop.f32.mrf.mxu0
        %v3651 = vadd.f32 %v3578, %v3650
        %3652 = vmatmul.bf16.gmra.mxu0 %v1792
        %v3653 = vpop.f32.mrf.mxu0
        %v3654 = vadd.f32 %v3581, %v3653
        %v3655 = vpop.f32.mrf.mxu0
        %v3656 = vadd.f32 %v3583, %v3655
        %3657 = vmatmul.bf16.gmra.mxu0 %v1796
        %v3658 = vpop.f32.mrf.mxu0
        %v3659 = vadd.f32 %v3586, %v3658
        %v3660 = vpop.f32.mrf.mxu0
        %v3661 = vadd.f32 %v3588, %v3660
        %3662 = vmatmul.bf16.gmra.mxu0 %v1800
        %v3663 = vpop.f32.mrf.mxu0
        %v3664 = vadd.f32 %v3591, %v3663
        %v3665 = vpop.f32.mrf.mxu0
        %v3666 = vadd.f32 %v3593, %v3665
        %3667 = vmatmul.bf16.gmra.mxu0 %v1804
        %v3668 = vpop.f32.mrf.mxu0
        %v3669 = vadd.f32 %v3596, %v3668
        %v3670 = vpop.f32.mrf.mxu0
        %v3671 = vadd.f32 %v3598, %v3670
        %3672 = vmatmul.bf16.gmra.mxu0 %v1808
        %v3673 = vpop.f32.mrf.mxu0
        %v3674 = vadd.f32 %v3601, %v3673
        %v3675 = vpop.f32.mrf.mxu0
        %v3676 = vadd.f32 %v3603, %v3675
        %3677 = vmatmul.bf16.gmra.mxu0 %v1812
        %v3678 = vpop.f32.mrf.mxu0
        %v3679 = vadd.f32 %v3606, %v3678
        %v3680 = vpop.f32.mrf.mxu0
        %v3681 = vadd.f32 %v3608, %v3680
        %3682 = vmatmul.bf16.gmra.mxu0 %v1816
        %v3683 = vpop.f32.mrf.mxu0
        %v3684 = vadd.f32 %v3611, %v3683
        %v3685 = vpop.f32.mrf.mxu0
        %v3686 = vadd.f32 %v3613, %v3685
        %3687 = vmatmul.bf16.gmra.mxu0 %v1820
        %v3688 = vpop.f32.mrf.mxu0
        %v3689 = vadd.f32 %v3616, %v3688
        %v3690 = vpop.f32.mrf.mxu0
        %v3691 = vadd.f32 %v3618, %v3690
        %3692 = vmatmul.bf16.gmra.mxu0 %v1824
        %v3693 = vpop.f32.mrf.mxu0
        %v3694 = vadd.f32 %v3621, %v3693
        %v3695 = vpop.f32.mrf.mxu0
        %v3696 = vadd.f32 %v3623, %v3695
        %3697 = vmatmul.bf16.gmra.mxu0 %v1828
        %v3698 = vpop.f32.mrf.mxu0
        %v3699 = vadd.f32 %v3626, %v3698
        %v3700 = vpop.f32.mrf.mxu0
        %v3701 = vadd.f32 %v3628, %v3700
        %3702 = vmatmul.bf16.gmra.mxu0 %v1832
        %v3703 = vpop.f32.mrf.mxu0
        %v3704 = vadd.f32 %v3631, %v3703
        %v3705 = vpop.f32.mrf.mxu0
        %3706 = vdwg.mxu0
        %3707 = vmatpush.bf16.msra.mxu0 %v2483
        %3708 = vmatpush.bf16.msra.mxu0 %v2479
        %3709 = vmatpush.bf16.msra.mxu0 %v2475
        %3710 = vmatpush.bf16.msra.mxu0 %v2471
        %3711 = vmatpush.bf16.msra.mxu0 %v2467
        %3712 = vmatpush.bf16.msra.mxu0 %v2463
        %3713 = vmatpush.bf16.msra.mxu0 %v2459
        %3714 = vmatpush.bf16.msra.mxu0 %v2455
        %3715 = vmatmul.bf16.gmra.mxu0 %v1785
        %v3716 = vpop.f32.mrf.mxu0
        %v3717 = vadd.f32 %v3644, %v3716
        %v3718 = vpop.f32.mrf.mxu0
        %v3719 = vadd.f32 %v3646, %v3718
        %3720 = vmatmul.bf16.gmra.mxu0 %v1789
        %v3721 = vpop.f32.mrf.mxu0
        %v3722 = vadd.f32 %v3649, %v3721
        %v3723 = vpop.f32.mrf.mxu0
        %v3724 = vadd.f32 %v3651, %v3723
        %3725 = vmatmul.bf16.gmra.mxu0 %v1793
        %v3726 = vpop.f32.mrf.mxu0
        %v3727 = vadd.f32 %v3654, %v3726
        %v3728 = vpop.f32.mrf.mxu0
        %v3729 = vadd.f32 %v3656, %v3728
        %3730 = vmatmul.bf16.gmra.mxu0 %v1797
        %v3731 = vpop.f32.mrf.mxu0
        %v3732 = vadd.f32 %v3659, %v3731
        %v3733 = vpop.f32.mrf.mxu0
        %v3734 = vadd.f32 %v3661, %v3733
        %3735 = vmatmul.bf16.gmra.mxu0 %v1801
        %v3736 = vpop.f32.mrf.mxu0
        %v3737 = vadd.f32 %v3664, %v3736
        %v3738 = vpop.f32.mrf.mxu0
        %v3739 = vadd.f32 %v3666, %v3738
        %3740 = vmatmul.bf16.gmra.mxu0 %v1805
        %v3741 = vpop.f32.mrf.mxu0
        %v3742 = vadd.f32 %v3669, %v3741
        %v3743 = vpop.f32.mrf.mxu0
        %v3744 = vadd.f32 %v3671, %v3743
        %3745 = vmatmul.bf16.gmra.mxu0 %v1809
        %v3746 = vpop.f32.mrf.mxu0
        %v3747 = vadd.f32 %v3674, %v3746
        %v3748 = vpop.f32.mrf.mxu0
        %v3749 = vadd.f32 %v3676, %v3748
        %3750 = vmatmul.bf16.gmra.mxu0 %v1813
        %v3751 = vpop.f32.mrf.mxu0
        %v3752 = vadd.f32 %v3679, %v3751
        %v3753 = vpop.f32.mrf.mxu0
        %v3754 = vadd.f32 %v3681, %v3753
        %3755 = vmatmul.bf16.gmra.mxu0 %v1817
        %v3756 = vpop.f32.mrf.mxu0
        %v3757 = vadd.f32 %v3684, %v3756
        %v3758 = vpop.f32.mrf.mxu0
        %v3759 = vadd.f32 %v3686, %v3758
        %3760 = vmatmul.bf16.gmra.mxu0 %v1821
        %v3761 = vpop.f32.mrf.mxu0
        %v3762 = vadd.f32 %v3689, %v3761
        %v3763 = vpop.f32.mrf.mxu0
        %v3764 = vadd.f32 %v3691, %v3763
        %3765 = vmatmul.bf16.gmra.mxu0 %v1825
        %v3766 = vpop.f32.mrf.mxu0
        %v3767 = vadd.f32 %v3694, %v3766
        %v3768 = vpop.f32.mrf.mxu0
        %v3769 = vadd.f32 %v3696, %v3768
        %3770 = vmatmul.bf16.gmra.mxu0 %v1829
        %v3771 = vpop.f32.mrf.mxu0
        %v3772 = vadd.f32 %v3699, %v3771
        %v3773 = vpop.f32.mrf.mxu0
        %v3774 = vadd.f32 %v3701, %v3773
        %3775 = vmatmul.bf16.gmra.mxu0 %v1833
        %v3776 = vpop.f32.mrf.mxu0
        %v3777 = vadd.f32 %v3704, %v3776
        %v3778 = vpop.f32.mrf.mxu0
        %3779 = vdwg.mxu0
        %v3780 = vmul.f32 %v2841, 0.70710677
        %v3781 = vmul.f32 %v3133, 0.70710677
        %v3782 = vmul.f32 %v3425, 0.70710677
        %v3783 = vmul.f32 %v3717, 0.70710677
        %v3784 = vmul.f32 %v2843, 0.70710677
        %v3785 = vmul.f32 %v3135, 0.70710677
        %v3786 = vmul.f32 %v3427, 0.70710677
        %v3787 = vmul.f32 %v3719, 0.70710677
        %v3788 = vmul.f32 %v2846, 0.70710677
        %v3789 = vmul.f32 %v3138, 0.70710677
        %v3790 = vmul.f32 %v3430, 0.70710677
        %v3791 = vmul.f32 %v3722, 0.70710677
        %v3792 = vmul.f32 %v2848, 0.70710677
        %v3793 = vmul.f32 %v3140, 0.70710677
        %v3794 = vmul.f32 %v3432, 0.70710677
        %v3795 = vmul.f32 %v3724, 0.70710677
        %v3796 = vmul.f32 %v2851, 0.70710677
        %v3797 = vmul.f32 %v3143, 0.70710677
        %v3798 = vmul.f32 %v3435, 0.70710677
        %v3799 = vmul.f32 %v3727, 0.70710677
        %v3800 = vmul.f32 %v2853, 0.70710677
        %v3801 = vmul.f32 %v3145, 0.70710677
        %v3802 = vmul.f32 %v3437, 0.70710677
        %v3803 = vmul.f32 %v3729, 0.70710677
        %v3804 = vmul.f32 %v2856, 0.70710677
        %v3805 = vmul.f32 %v3148, 0.70710677
        %v3806 = vmul.f32 %v3440, 0.70710677
        %v3807 = vmul.f32 %v3732, 0.70710677
        %v3808 = vmul.f32 %v2858, 0.70710677
        %v3809 = vmul.f32 %v3150, 0.70710677
        %v3810 = vmul.f32 %v3442, 0.70710677
        %v3811 = vmul.f32 %v3734, 0.70710677
        %v3812 = vmul.f32 %v2861, 0.70710677
        %v3813 = vmul.f32 %v3153, 0.70710677
        %v3814 = vmul.f32 %v3445, 0.70710677
        %v3815 = vmul.f32 %v3737, 0.70710677
        %v3816 = vmul.f32 %v2863, 0.70710677
        %v3817 = vmul.f32 %v3155, 0.70710677
        %v3818 = vmul.f32 %v3447, 0.70710677
        %v3819 = vmul.f32 %v3739, 0.70710677
        %v3820 = vmul.f32 %v2866, 0.70710677
        %v3821 = vmul.f32 %v3158, 0.70710677
        %v3822 = vmul.f32 %v3450, 0.70710677
        %v3823 = vmul.f32 %v3742, 0.70710677
        %v3824 = vmul.f32 %v2868, 0.70710677
        %v3825 = vmul.f32 %v3160, 0.70710677
        %v3826 = vmul.f32 %v3452, 0.70710677
        %v3827 = vmul.f32 %v3744, 0.70710677
        %v3828 = vmul.f32 %v2871, 0.70710677
        %v3829 = vmul.f32 %v3163, 0.70710677
        %v3830 = vmul.f32 %v3455, 0.70710677
        %v3831 = vmul.f32 %v3747, 0.70710677
        %v3832 = vmul.f32 %v2873, 0.70710677
        %v3833 = vmul.f32 %v3165, 0.70710677
        %v3834 = vmul.f32 %v3457, 0.70710677
        %v3835 = vmul.f32 %v3749, 0.70710677
        %v3836 = vmul.f32 %v2876, 0.70710677
        %v3837 = vmul.f32 %v3168, 0.70710677
        %v3838 = vmul.f32 %v3460, 0.70710677
        %v3839 = vmul.f32 %v3752, 0.70710677
        %v3840 = vmul.f32 %v2878, 0.70710677
        %v3841 = vmul.f32 %v3170, 0.70710677
        %v3842 = vmul.f32 %v3462, 0.70710677
        %v3843 = vmul.f32 %v3754, 0.70710677
        %v3844 = vmul.f32 %v2881, 0.70710677
        %v3845 = vmul.f32 %v3173, 0.70710677
        %v3846 = vmul.f32 %v3465, 0.70710677
        %v3847 = vmul.f32 %v3757, 0.70710677
        %v3848 = vmul.f32 %v2883, 0.70710677
        %v3849 = vmul.f32 %v3175, 0.70710677
        %v3850 = vmul.f32 %v3467, 0.70710677
        %v3851 = vmul.f32 %v3759, 0.70710677
        %v3852 = vmul.f32 %v2886, 0.70710677
        %v3853 = vmul.f32 %v3178, 0.70710677
        %v3854 = vmul.f32 %v3470, 0.70710677
        %v3855 = vmul.f32 %v3762, 0.70710677
        %v3856 = vmul.f32 %v2888, 0.70710677
        %v3857 = vmul.f32 %v3180, 0.70710677
        %v3858 = vmul.f32 %v3472, 0.70710677
        %v3859 = vmul.f32 %v3764, 0.70710677
        %v3860 = vmul.f32 %v2891, 0.70710677
        %v3861 = vmul.f32 %v3183, 0.70710677
        %v3862 = vmul.f32 %v3475, 0.70710677
        %v3863 = vmul.f32 %v3767, 0.70710677
        %v3864 = vmul.f32 %v2893, 0.70710677
        %v3865 = vmul.f32 %v3185, 0.70710677
        %v3866 = vmul.f32 %v3477, 0.70710677
        %v3867 = vmul.f32 %v3769, 0.70710677
        %v3868 = vmul.f32 %v2896, 0.70710677
        %v3869 = vmul.f32 %v3188, 0.70710677
        %v3870 = vmul.f32 %v3480, 0.70710677
        %v3871 = vmul.f32 %v3772, 0.70710677
        %v3872 = vmul.f32 %v2898, 0.70710677
        %v3873 = vmul.f32 %v3190, 0.70710677
        %v3874 = vmul.f32 %v3482, 0.70710677
        %v3875 = vmul.f32 %v3774, 0.70710677
        %v3876 = vmul.f32 %v2901, 0.70710677
        %v3877 = vmul.f32 %v3193, 0.70710677
        %v3878 = vmul.f32 %v3485, 0.70710677
        %v3879 = vmul.f32 %v3777, 0.70710677
        %v3880 = vand.u32 2147483647, %v3780
        %v3881 = vand.u32 2147483647, %v3781
        %v3882 = vand.u32 2147483647, %v3782
        %v3883 = vand.u32 2147483647, %v3783
        %v3884 = vand.u32 2147483647, %v3784
        %v3885 = vand.u32 2147483647, %v3785
        %v3886 = vand.u32 2147483647, %v3786
        %v3887 = vand.u32 2147483647, %v3787
        %v3888 = vand.u32 2147483647, %v3788
        %v3889 = vand.u32 2147483647, %v3789
        %v3890 = vand.u32 2147483647, %v3790
        %v3891 = vand.u32 2147483647, %v3791
        %v3892 = vand.u32 2147483647, %v3792
        %v3893 = vand.u32 2147483647, %v3793
        %v3894 = vand.u32 2147483647, %v3794
        %v3895 = vand.u32 2147483647, %v3795
        %v3896 = vand.u32 2147483647, %v3796
        %v3897 = vand.u32 2147483647, %v3797
        %v3898 = vand.u32 2147483647, %v3798
        %v3899 = vand.u32 2147483647, %v3799
        %v3900 = vand.u32 2147483647, %v3800
        %v3901 = vand.u32 2147483647, %v3801
        %v3902 = vand.u32 2147483647, %v3802
        %v3903 = vand.u32 2147483647, %v3803
        %v3904 = vand.u32 2147483647, %v3804
        %v3905 = vand.u32 2147483647, %v3805
        %v3906 = vand.u32 2147483647, %v3806
        %v3907 = vand.u32 2147483647, %v3807
        %v3908 = vand.u32 2147483647, %v3808
        %v3909 = vand.u32 2147483647, %v3809
        %v3910 = vand.u32 2147483647, %v3810
        %v3911 = vand.u32 2147483647, %v3811
        %v3912 = vand.u32 2147483647, %v3812
        %v3913 = vand.u32 2147483647, %v3813
        %v3914 = vand.u32 2147483647, %v3814
        %v3915 = vand.u32 2147483647, %v3815
        %v3916 = vand.u32 2147483647, %v3816
        %v3917 = vand.u32 2147483647, %v3817
        %v3918 = vand.u32 2147483647, %v3818
        %v3919 = vand.u32 2147483647, %v3819
        %v3920 = vand.u32 2147483647, %v3820
        %v3921 = vand.u32 2147483647, %v3821
        %v3922 = vand.u32 2147483647, %v3822
        %v3923 = vand.u32 2147483647, %v3823
        %v3924 = vand.u32 2147483647, %v3824
        %v3925 = vand.u32 2147483647, %v3825
        %v3926 = vand.u32 2147483647, %v3826
        %v3927 = vand.u32 2147483647, %v3827
        %v3928 = vand.u32 2147483647, %v3828
        %v3929 = vand.u32 2147483647, %v3829
        %v3930 = vand.u32 2147483647, %v3830
        %v3931 = vand.u32 2147483647, %v3831
        %v3932 = vand.u32 2147483647, %v3832
        %v3933 = vand.u32 2147483647, %v3833
        %v3934 = vand.u32 2147483647, %v3834
        %v3935 = vand.u32 2147483647, %v3835
        %v3936 = vand.u32 2147483647, %v3836
        %v3937 = vand.u32 2147483647, %v3837
        %v3938 = vand.u32 2147483647, %v3838
        %v3939 = vand.u32 2147483647, %v3839
        %v3940 = vand.u32 2147483647, %v3840
        %v3941 = vand.u32 2147483647, %v3841
        %v3942 = vand.u32 2147483647, %v3842
        %v3943 = vand.u32 2147483647, %v3843
        %v3944 = vand.u32 2147483647, %v3844
        %v3945 = vand.u32 2147483647, %v3845
        %v3946 = vand.u32 2147483647, %v3846
        %v3947 = vand.u32 2147483647, %v3847
        %v3948 = vand.u32 2147483647, %v3848
        %v3949 = vand.u32 2147483647, %v3849
        %v3950 = vand.u32 2147483647, %v3850
        %v3951 = vand.u32 2147483647, %v3851
        %v3952 = vand.u32 2147483647, %v3852
        %v3953 = vand.u32 2147483647, %v3853
        %v3954 = vand.u32 2147483647, %v3854
        %v3955 = vand.u32 2147483647, %v3855
        %v3956 = vand.u32 2147483647, %v3856
        %v3957 = vand.u32 2147483647, %v3857
        %v3958 = vand.u32 2147483647, %v3858
        %v3959 = vand.u32 2147483647, %v3859
        %v3960 = vand.u32 2147483647, %v3860
        %v3961 = vand.u32 2147483647, %v3861
        %v3962 = vand.u32 2147483647, %v3862
        %v3963 = vand.u32 2147483647, %v3863
        %v3964 = vand.u32 2147483647, %v3864
        %v3965 = vand.u32 2147483647, %v3865
        %v3966 = vand.u32 2147483647, %v3866
        %v3967 = vand.u32 2147483647, %v3867
        %v3968 = vand.u32 2147483647, %v3868
        %v3969 = vand.u32 2147483647, %v3869
        %v3970 = vand.u32 2147483647, %v3870
        %v3971 = vand.u32 2147483647, %v3871
        %v3972 = vand.u32 2147483647, %v3872
        %v3973 = vand.u32 2147483647, %v3873
        %v3974 = vand.u32 2147483647, %v3874
        %v3975 = vand.u32 2147483647, %v3875
        %v3976 = vand.u32 2147483647, %v3876
        %v3977 = vand.u32 2147483647, %v3877
        %v3978 = vand.u32 2147483647, %v3878
        %v3979 = vand.u32 2147483647, %v3879
        %v3980 = vmul.f32 %v3880, 0.3275911
        %v3981 = vmul.f32 %v3881, 0.3275911
        %v3982 = vmul.f32 %v3882, 0.3275911
        %v3983 = vmul.f32 %v3883, 0.3275911
        %v3984 = vmul.f32 %v3884, 0.3275911
        %v3985 = vmul.f32 %v3885, 0.3275911
        %v3986 = vmul.f32 %v3886, 0.3275911
        %v3987 = vmul.f32 %v3887, 0.3275911
        %v3988 = vmul.f32 %v3888, 0.3275911
        %v3989 = vmul.f32 %v3889, 0.3275911
        %v3990 = vmul.f32 %v3890, 0.3275911
        %v3991 = vmul.f32 %v3891, 0.3275911
        %v3992 = vmul.f32 %v3892, 0.3275911
        %v3993 = vmul.f32 %v3893, 0.3275911
        %v3994 = vmul.f32 %v3894, 0.3275911
        %v3995 = vmul.f32 %v3895, 0.3275911
        %v3996 = vmul.f32 %v3896, 0.3275911
        %v3997 = vmul.f32 %v3897, 0.3275911
        %v3998 = vmul.f32 %v3898, 0.3275911
        %v3999 = vmul.f32 %v3899, 0.3275911
        %v4000 = vmul.f32 %v3900, 0.3275911
        %v4001 = vmul.f32 %v3901, 0.3275911
        %v4002 = vmul.f32 %v3902, 0.3275911
        %v4003 = vmul.f32 %v3903, 0.3275911
        %v4004 = vmul.f32 %v3904, 0.3275911
        %v4005 = vmul.f32 %v3905, 0.3275911
        %v4006 = vmul.f32 %v3906, 0.3275911
        %v4007 = vmul.f32 %v3907, 0.3275911
        %v4008 = vmul.f32 %v3908, 0.3275911
        %v4009 = vmul.f32 %v3909, 0.3275911
        %v4010 = vmul.f32 %v3910, 0.3275911
        %v4011 = vmul.f32 %v3911, 0.3275911
        %v4012 = vmul.f32 %v3912, 0.3275911
        %v4013 = vmul.f32 %v3913, 0.3275911
        %v4014 = vmul.f32 %v3914, 0.3275911
        %v4015 = vmul.f32 %v3915, 0.3275911
        %v4016 = vmul.f32 %v3916, 0.3275911
        %v4017 = vmul.f32 %v3917, 0.3275911
        %v4018 = vmul.f32 %v3918, 0.3275911
        %v4019 = vmul.f32 %v3919, 0.3275911
        %v4020 = vmul.f32 %v3920, 0.3275911
        %v4021 = vmul.f32 %v3921, 0.3275911
        %v4022 = vmul.f32 %v3922, 0.3275911
        %v4023 = vmul.f32 %v3923, 0.3275911
        %v4024 = vmul.f32 %v3924, 0.3275911
        %v4025 = vmul.f32 %v3925, 0.3275911
        %v4026 = vmul.f32 %v3926, 0.3275911
        %v4027 = vmul.f32 %v3927, 0.3275911
        %v4028 = vmul.f32 %v3928, 0.3275911
        %v4029 = vmul.f32 %v3929, 0.3275911
        %v4030 = vmul.f32 %v3930, 0.3275911
        %v4031 = vmul.f32 %v3931, 0.3275911
        %v4032 = vmul.f32 %v3932, 0.3275911
        %v4033 = vmul.f32 %v3933, 0.3275911
        %v4034 = vmul.f32 %v3934, 0.3275911
        %v4035 = vmul.f32 %v3935, 0.3275911
        %v4036 = vmul.f32 %v3936, 0.3275911
        %v4037 = vmul.f32 %v3937, 0.3275911
        %v4038 = vmul.f32 %v3938, 0.3275911
        %v4039 = vmul.f32 %v3939, 0.3275911
        %v4040 = vmul.f32 %v3940, 0.3275911
        %v4041 = vmul.f32 %v3941, 0.3275911
        %v4042 = vmul.f32 %v3942, 0.3275911
        %v4043 = vmul.f32 %v3943, 0.3275911
        %v4044 = vmul.f32 %v3944, 0.3275911
        %v4045 = vmul.f32 %v3945, 0.3275911
        %v4046 = vmul.f32 %v3946, 0.3275911
        %v4047 = vmul.f32 %v3947, 0.3275911
        %v4048 = vmul.f32 %v3948, 0.3275911
        %v4049 = vmul.f32 %v3949, 0.3275911
        %v4050 = vmul.f32 %v3950, 0.3275911
        %v4051 = vmul.f32 %v3951, 0.3275911
        %v4052 = vmul.f32 %v3952, 0.3275911
        %v4053 = vmul.f32 %v3953, 0.3275911
        %v4054 = vmul.f32 %v3954, 0.3275911
        %v4055 = vmul.f32 %v3955, 0.3275911
        %v4056 = vmul.f32 %v3956, 0.3275911
        %v4057 = vmul.f32 %v3957, 0.3275911
        %v4058 = vmul.f32 %v3958, 0.3275911
        %v4059 = vmul.f32 %v3959, 0.3275911
        %v4060 = vmul.f32 %v3960, 0.3275911
        %v4061 = vmul.f32 %v3961, 0.3275911
        %v4062 = vmul.f32 %v3962, 0.3275911
        %v4063 = vmul.f32 %v3963, 0.3275911
        %v4064 = vmul.f32 %v3964, 0.3275911
        %v4065 = vmul.f32 %v3965, 0.3275911
        %v4066 = vmul.f32 %v3966, 0.3275911
        %v4067 = vmul.f32 %v3967, 0.3275911
        %v4068 = vmul.f32 %v3968, 0.3275911
        %v4069 = vmul.f32 %v3969, 0.3275911
        %v4070 = vmul.f32 %v3970, 0.3275911
        %v4071 = vmul.f32 %v3971, 0.3275911
        %v4072 = vmul.f32 %v3972, 0.3275911
        %v4073 = vmul.f32 %v3973, 0.3275911
        %v4074 = vmul.f32 %v3974, 0.3275911
        %v4075 = vmul.f32 %v3975, 0.3275911
        %v4076 = vmul.f32 %v3976, 0.3275911
        %v4077 = vmul.f32 %v3977, 0.3275911
        %v4078 = vmul.f32 %v3978, 0.3275911
        %v4079 = vmul.f32 %v3979, 0.3275911
        %v4080 = vadd.f32 %v3980, 1.0
        %v4081 = vadd.f32 %v3981, 1.0
        %v4082 = vadd.f32 %v3982, 1.0
        %v4083 = vadd.f32 %v3983, 1.0
        %v4084 = vadd.f32 %v3984, 1.0
        %v4085 = vadd.f32 %v3985, 1.0
        %v4086 = vadd.f32 %v3986, 1.0
        %v4087 = vadd.f32 %v3987, 1.0
        %v4088 = vadd.f32 %v3988, 1.0
        %v4089 = vadd.f32 %v3989, 1.0
        %v4090 = vadd.f32 %v3990, 1.0
        %v4091 = vadd.f32 %v3991, 1.0
        %v4092 = vadd.f32 %v3992, 1.0
        %v4093 = vadd.f32 %v3993, 1.0
        %v4094 = vadd.f32 %v3994, 1.0
        %v4095 = vadd.f32 %v3995, 1.0
        %v4096 = vadd.f32 %v3996, 1.0
        %v4097 = vadd.f32 %v3997, 1.0
        %v4098 = vadd.f32 %v3998, 1.0
        %v4099 = vadd.f32 %v3999, 1.0
        %v4100 = vadd.f32 %v4000, 1.0
        %v4101 = vadd.f32 %v4001, 1.0
        %v4102 = vadd.f32 %v4002, 1.0
        %v4103 = vadd.f32 %v4003, 1.0
        %v4104 = vadd.f32 %v4004, 1.0
        %v4105 = vadd.f32 %v4005, 1.0
        %v4106 = vadd.f32 %v4006, 1.0
        %v4107 = vadd.f32 %v4007, 1.0
        %v4108 = vadd.f32 %v4008, 1.0
        %v4109 = vadd.f32 %v4009, 1.0
        %v4110 = vadd.f32 %v4010, 1.0
        %v4111 = vadd.f32 %v4011, 1.0
        %v4112 = vadd.f32 %v4012, 1.0
        %v4113 = vadd.f32 %v4013, 1.0
        %v4114 = vadd.f32 %v4014, 1.0
        %v4115 = vadd.f32 %v4015, 1.0
        %v4116 = vadd.f32 %v4016, 1.0
        %v4117 = vadd.f32 %v4017, 1.0
        %v4118 = vadd.f32 %v4018, 1.0
        %v4119 = vadd.f32 %v4019, 1.0
        %v4120 = vadd.f32 %v4020, 1.0
        %v4121 = vadd.f32 %v4021, 1.0
        %v4122 = vadd.f32 %v4022, 1.0
        %v4123 = vadd.f32 %v4023, 1.0
        %v4124 = vadd.f32 %v4024, 1.0
        %v4125 = vadd.f32 %v4025, 1.0
        %v4126 = vadd.f32 %v4026, 1.0
        %v4127 = vadd.f32 %v4027, 1.0
        %v4128 = vadd.f32 %v4028, 1.0
        %v4129 = vadd.f32 %v4029, 1.0
        %v4130 = vadd.f32 %v4030, 1.0
        %v4131 = vadd.f32 %v4031, 1.0
        %v4132 = vadd.f32 %v4032, 1.0
        %v4133 = vadd.f32 %v4033, 1.0
        %v4134 = vadd.f32 %v4034, 1.0
        %v4135 = vadd.f32 %v4035, 1.0
        %v4136 = vadd.f32 %v4036, 1.0
        %v4137 = vadd.f32 %v4037, 1.0
        %v4138 = vadd.f32 %v4038, 1.0
        %v4139 = vadd.f32 %v4039, 1.0
        %v4140 = vadd.f32 %v4040, 1.0
        %v4141 = vadd.f32 %v4041, 1.0
        %v4142 = vadd.f32 %v4042, 1.0
        %v4143 = vadd.f32 %v4043, 1.0
        %v4144 = vadd.f32 %v4044, 1.0
        %v4145 = vadd.f32 %v4045, 1.0
        %v4146 = vadd.f32 %v4046, 1.0
        %v4147 = vadd.f32 %v4047, 1.0
        %v4148 = vadd.f32 %v4048, 1.0
        %v4149 = vadd.f32 %v4049, 1.0
        %v4150 = vadd.f32 %v4050, 1.0
        %v4151 = vadd.f32 %v4051, 1.0
        %v4152 = vadd.f32 %v4052, 1.0
        %v4153 = vadd.f32 %v4053, 1.0
        %v4154 = vadd.f32 %v4054, 1.0
        %v4155 = vadd.f32 %v4055, 1.0
        %v4156 = vadd.f32 %v4056, 1.0
        %v4157 = vadd.f32 %v4057, 1.0
        %v4158 = vadd.f32 %v4058, 1.0
        %v4159 = vadd.f32 %v4059, 1.0
        %v4160 = vadd.f32 %v4060, 1.0
        %v4161 = vadd.f32 %v4061, 1.0
        %v4162 = vadd.f32 %v4062, 1.0
        %v4163 = vadd.f32 %v4063, 1.0
        %v4164 = vadd.f32 %v4064, 1.0
        %v4165 = vadd.f32 %v4065, 1.0
        %v4166 = vadd.f32 %v4066, 1.0
        %v4167 = vadd.f32 %v4067, 1.0
        %v4168 = vadd.f32 %v4068, 1.0
        %v4169 = vadd.f32 %v4069, 1.0
        %v4170 = vadd.f32 %v4070, 1.0
        %v4171 = vadd.f32 %v4071, 1.0
        %v4172 = vadd.f32 %v4072, 1.0
        %v4173 = vadd.f32 %v4073, 1.0
        %v4174 = vadd.f32 %v4074, 1.0
        %v4175 = vadd.f32 %v4075, 1.0
        %v4176 = vadd.f32 %v4076, 1.0
        %v4177 = vadd.f32 %v4077, 1.0
        %v4178 = vadd.f32 %v4078, 1.0
        %v4179 = vadd.f32 %v4079, 1.0
        %v4180 = vrcp.pop %v4080
        %v4181 = vrcp.pop %v4081
        %v4182 = vrcp.pop %v4082
        %v4183 = vrcp.pop %v4083
        %v4184 = vrcp.pop %v4084
        %v4185 = vrcp.pop %v4085
        %v4186 = vrcp.pop %v4086
        %v4187 = vrcp.pop %v4087
        %v4188 = vrcp.pop %v4088
        %v4189 = vrcp.pop %v4089
        %v4190 = vrcp.pop %v4090
        %v4191 = vrcp.pop %v4091
        %v4192 = vrcp.pop %v4092
        %v4193 = vrcp.pop %v4093
        %v4194 = vrcp.pop %v4094
        %v4195 = vrcp.pop %v4095
        %v4196 = vrcp.pop %v4096
        %v4197 = vrcp.pop %v4097
        %v4198 = vrcp.pop %v4098
        %v4199 = vrcp.pop %v4099
        %v4200 = vrcp.pop %v4100
        %v4201 = vrcp.pop %v4101
        %v4202 = vrcp.pop %v4102
        %v4203 = vrcp.pop %v4103
        %v4204 = vrcp.pop %v4104
        %v4205 = vrcp.pop %v4105
        %v4206 = vrcp.pop %v4106
        %v4207 = vrcp.pop %v4107
        %v4208 = vrcp.pop %v4108
        %v4209 = vrcp.pop %v4109
        %v4210 = vrcp.pop %v4110
        %v4211 = vrcp.pop %v4111
        %v4212 = vrcp.pop %v4112
        %v4213 = vrcp.pop %v4113
        %v4214 = vrcp.pop %v4114
        %v4215 = vrcp.pop %v4115
        %v4216 = vrcp.pop %v4116
        %v4217 = vrcp.pop %v4117
        %v4218 = vrcp.pop %v4118
        %v4219 = vrcp.pop %v4119
        %v4220 = vrcp.pop %v4120
        %v4221 = vrcp.pop %v4121
        %v4222 = vrcp.pop %v4122
        %v4223 = vrcp.pop %v4123
        %v4224 = vrcp.pop %v4124
        %v4225 = vrcp.pop %v4125
        %v4226 = vrcp.pop %v4126
        %v4227 = vrcp.pop %v4127
        %v4228 = vrcp.pop %v4128
        %v4229 = vrcp.pop %v4129
        %v4230 = vrcp.pop %v4130
        %v4231 = vrcp.pop %v4131
        %v4232 = vrcp.pop %v4132
        %v4233 = vrcp.pop %v4133
        %v4234 = vrcp.pop %v4134
        %v4235 = vrcp.pop %v4135
        %v4236 = vrcp.pop %v4136
        %v4237 = vrcp.pop %v4137
        %v4238 = vrcp.pop %v4138
        %v4239 = vrcp.pop %v4139
        %v4240 = vrcp.pop %v4140
        %v4241 = vrcp.pop %v4141
        %v4242 = vrcp.pop %v4142
        %v4243 = vrcp.pop %v4143
        %v4244 = vrcp.pop %v4144
        %v4245 = vrcp.pop %v4145
        %v4246 = vrcp.pop %v4146
        %v4247 = vrcp.pop %v4147
        %v4248 = vrcp.pop %v4148
        %v4249 = vrcp.pop %v4149
        %v4250 = vrcp.pop %v4150
        %v4251 = vrcp.pop %v4151
        %v4252 = vrcp.pop %v4152
        %v4253 = vrcp.pop %v4153
        %v4254 = vrcp.pop %v4154
        %v4255 = vrcp.pop %v4155
        %v4256 = vrcp.pop %v4156
        %v4257 = vrcp.pop %v4157
        %v4258 = vrcp.pop %v4158
        %v4259 = vrcp.pop %v4159
        %v4260 = vrcp.pop %v4160
        %v4261 = vrcp.pop %v4161
        %v4262 = vrcp.pop %v4162
        %v4263 = vrcp.pop %v4163
        %v4264 = vrcp.pop %v4164
        %v4265 = vrcp.pop %v4165
        %v4266 = vrcp.pop %v4166
        %v4267 = vrcp.pop %v4167
        %v4268 = vrcp.pop %v4168
        %v4269 = vrcp.pop %v4169
        %v4270 = vrcp.pop %v4170
        %v4271 = vrcp.pop %v4171
        %v4272 = vrcp.pop %v4172
        %v4273 = vrcp.pop %v4173
        %v4274 = vrcp.pop %v4174
        %v4275 = vrcp.pop %v4175
        %v4276 = vrcp.pop %v4176
        %v4277 = vrcp.pop %v4177
        %v4278 = vrcp.pop %v4178
        %v4279 = vrcp.pop %v4179
        %v4280 = vmul.f32 %v4180, 1.0614054
        %v4281 = vmul.f32 %v4181, 1.0614054
        %v4282 = vmul.f32 %v4182, 1.0614054
        %v4283 = vmul.f32 %v4183, 1.0614054
        %v4284 = vmul.f32 %v4184, 1.0614054
        %v4285 = vmul.f32 %v4185, 1.0614054
        %v4286 = vmul.f32 %v4186, 1.0614054
        %v4287 = vmul.f32 %v4187, 1.0614054
        %v4288 = vmul.f32 %v4188, 1.0614054
        %v4289 = vmul.f32 %v4189, 1.0614054
        %v4290 = vmul.f32 %v4190, 1.0614054
        %v4291 = vmul.f32 %v4191, 1.0614054
        %v4292 = vmul.f32 %v4192, 1.0614054
        %v4293 = vmul.f32 %v4193, 1.0614054
        %v4294 = vmul.f32 %v4194, 1.0614054
        %v4295 = vmul.f32 %v4195, 1.0614054
        %v4296 = vmul.f32 %v4196, 1.0614054
        %v4297 = vmul.f32 %v4197, 1.0614054
        %v4298 = vmul.f32 %v4198, 1.0614054
        %v4299 = vmul.f32 %v4199, 1.0614054
        %v4300 = vmul.f32 %v4200, 1.0614054
        %v4301 = vmul.f32 %v4201, 1.0614054
        %v4302 = vmul.f32 %v4202, 1.0614054
        %v4303 = vmul.f32 %v4203, 1.0614054
        %v4304 = vmul.f32 %v4204, 1.0614054
        %v4305 = vmul.f32 %v4205, 1.0614054
        %v4306 = vmul.f32 %v4206, 1.0614054
        %v4307 = vmul.f32 %v4207, 1.0614054
        %v4308 = vmul.f32 %v4208, 1.0614054
        %v4309 = vmul.f32 %v4209, 1.0614054
        %v4310 = vmul.f32 %v4210, 1.0614054
        %v4311 = vmul.f32 %v4211, 1.0614054
        %v4312 = vmul.f32 %v4212, 1.0614054
        %v4313 = vmul.f32 %v4213, 1.0614054
        %v4314 = vmul.f32 %v4214, 1.0614054
        %v4315 = vmul.f32 %v4215, 1.0614054
        %v4316 = vmul.f32 %v4216, 1.0614054
        %v4317 = vmul.f32 %v4217, 1.0614054
        %v4318 = vmul.f32 %v4218, 1.0614054
        %v4319 = vmul.f32 %v4219, 1.0614054
        %v4320 = vmul.f32 %v4220, 1.0614054
        %v4321 = vmul.f32 %v4221, 1.0614054
        %v4322 = vmul.f32 %v4222, 1.0614054
        %v4323 = vmul.f32 %v4223, 1.0614054
        %v4324 = vmul.f32 %v4224, 1.0614054
        %v4325 = vmul.f32 %v4225, 1.0614054
        %v4326 = vmul.f32 %v4226, 1.0614054
        %v4327 = vmul.f32 %v4227, 1.0614054
        %v4328 = vmul.f32 %v4228, 1.0614054
        %v4329 = vmul.f32 %v4229, 1.0614054
        %v4330 = vmul.f32 %v4230, 1.0614054
        %v4331 = vmul.f32 %v4231, 1.0614054
        %v4332 = vmul.f32 %v4232, 1.0614054
        %v4333 = vmul.f32 %v4233, 1.0614054
        %v4334 = vmul.f32 %v4234, 1.0614054
        %v4335 = vmul.f32 %v4235, 1.0614054
        %v4336 = vmul.f32 %v4236, 1.0614054
        %v4337 = vmul.f32 %v4237, 1.0614054
        %v4338 = vmul.f32 %v4238, 1.0614054
        %v4339 = vmul.f32 %v4239, 1.0614054
        %v4340 = vmul.f32 %v4240, 1.0614054
        %v4341 = vmul.f32 %v4241, 1.0614054
        %v4342 = vmul.f32 %v4242, 1.0614054
        %v4343 = vmul.f32 %v4243, 1.0614054
        %v4344 = vmul.f32 %v4244, 1.0614054
        %v4345 = vmul.f32 %v4245, 1.0614054
        %v4346 = vmul.f32 %v4246, 1.0614054
        %v4347 = vmul.f32 %v4247, 1.0614054
        %v4348 = vmul.f32 %v4248, 1.0614054
        %v4349 = vmul.f32 %v4249, 1.0614054
        %v4350 = vmul.f32 %v4250, 1.0614054
        %v4351 = vmul.f32 %v4251, 1.0614054
        %v4352 = vmul.f32 %v4252, 1.0614054
        %v4353 = vmul.f32 %v4253, 1.0614054
        %v4354 = vmul.f32 %v4254, 1.0614054
        %v4355 = vmul.f32 %v4255, 1.0614054
        %v4356 = vmul.f32 %v4256, 1.0614054
        %v4357 = vmul.f32 %v4257, 1.0614054
        %v4358 = vmul.f32 %v4258, 1.0614054
        %v4359 = vmul.f32 %v4259, 1.0614054
        %v4360 = vmul.f32 %v4260, 1.0614054
        %v4361 = vmul.f32 %v4261, 1.0614054
        %v4362 = vmul.f32 %v4262, 1.0614054
        %v4363 = vmul.f32 %v4263, 1.0614054
        %v4364 = vmul.f32 %v4264, 1.0614054
        %v4365 = vmul.f32 %v4265, 1.0614054
        %v4366 = vmul.f32 %v4266, 1.0614054
        %v4367 = vmul.f32 %v4267, 1.0614054
        %v4368 = vmul.f32 %v4268, 1.0614054
        %v4369 = vmul.f32 %v4269, 1.0614054
        %v4370 = vmul.f32 %v4270, 1.0614054
        %v4371 = vmul.f32 %v4271, 1.0614054
        %v4372 = vmul.f32 %v4272, 1.0614054
        %v4373 = vmul.f32 %v4273, 1.0614054
        %v4374 = vmul.f32 %v4274, 1.0614054
        %v4375 = vmul.f32 %v4275, 1.0614054
        %v4376 = vmul.f32 %v4276, 1.0614054
        %v4377 = vmul.f32 %v4277, 1.0614054
        %v4378 = vmul.f32 %v4278, 1.0614054
        %v4379 = vmul.f32 %v4279, 1.0614054
        %v4380 = vadd.f32 %v4280, -1.4531521
        %v4381 = vadd.f32 %v4281, -1.4531521
        %v4382 = vadd.f32 %v4282, -1.4531521
        %v4383 = vadd.f32 %v4283, -1.4531521
        %v4384 = vadd.f32 %v4284, -1.4531521
        %v4385 = vadd.f32 %v4285, -1.4531521
        %v4386 = vadd.f32 %v4286, -1.4531521
        %v4387 = vadd.f32 %v4287, -1.4531521
        %v4388 = vadd.f32 %v4288, -1.4531521
        %v4389 = vadd.f32 %v4289, -1.4531521
        %v4390 = vadd.f32 %v4290, -1.4531521
        %v4391 = vadd.f32 %v4291, -1.4531521
        %v4392 = vadd.f32 %v4292, -1.4531521
        %v4393 = vadd.f32 %v4293, -1.4531521
        %v4394 = vadd.f32 %v4294, -1.4531521
        %v4395 = vadd.f32 %v4295, -1.4531521
        %v4396 = vadd.f32 %v4296, -1.4531521
        %v4397 = vadd.f32 %v4297, -1.4531521
        %v4398 = vadd.f32 %v4298, -1.4531521
        %v4399 = vadd.f32 %v4299, -1.4531521
        %v4400 = vadd.f32 %v4300, -1.4531521
        %v4401 = vadd.f32 %v4301, -1.4531521
        %v4402 = vadd.f32 %v4302, -1.4531521
        %v4403 = vadd.f32 %v4303, -1.4531521
        %v4404 = vadd.f32 %v4304, -1.4531521
        %v4405 = vadd.f32 %v4305, -1.4531521
        %v4406 = vadd.f32 %v4306, -1.4531521
        %v4407 = vadd.f32 %v4307, -1.4531521
        %v4408 = vadd.f32 %v4308, -1.4531521
        %v4409 = vadd.f32 %v4309, -1.4531521
        %v4410 = vadd.f32 %v4310, -1.4531521
        %v4411 = vadd.f32 %v4311, -1.4531521
        %v4412 = vadd.f32 %v4312, -1.4531521
        %v4413 = vadd.f32 %v4313, -1.4531521
        %v4414 = vadd.f32 %v4314, -1.4531521
        %v4415 = vadd.f32 %v4315, -1.4531521
        %v4416 = vadd.f32 %v4316, -1.4531521
        %v4417 = vadd.f32 %v4317, -1.4531521
        %v4418 = vadd.f32 %v4318, -1.4531521
        %v4419 = vadd.f32 %v4319, -1.4531521
        %v4420 = vadd.f32 %v4320, -1.4531521
        %v4421 = vadd.f32 %v4321, -1.4531521
        %v4422 = vadd.f32 %v4322, -1.4531521
        %v4423 = vadd.f32 %v4323, -1.4531521
        %v4424 = vadd.f32 %v4324, -1.4531521
        %v4425 = vadd.f32 %v4325, -1.4531521
        %v4426 = vadd.f32 %v4326, -1.4531521
        %v4427 = vadd.f32 %v4327, -1.4531521
        %v4428 = vadd.f32 %v4328, -1.4531521
        %v4429 = vadd.f32 %v4329, -1.4531521
        %v4430 = vadd.f32 %v4330, -1.4531521
        %v4431 = vadd.f32 %v4331, -1.4531521
        %v4432 = vadd.f32 %v4332, -1.4531521
        %v4433 = vadd.f32 %v4333, -1.4531521
        %v4434 = vadd.f32 %v4334, -1.4531521
        %v4435 = vadd.f32 %v4335, -1.4531521
        %v4436 = vadd.f32 %v4336, -1.4531521
        %v4437 = vadd.f32 %v4337, -1.4531521
        %v4438 = vadd.f32 %v4338, -1.4531521
        %v4439 = vadd.f32 %v4339, -1.4531521
        %v4440 = vadd.f32 %v4340, -1.4531521
        %v4441 = vadd.f32 %v4341, -1.4531521
        %v4442 = vadd.f32 %v4342, -1.4531521
        %v4443 = vadd.f32 %v4343, -1.4531521
        %v4444 = vadd.f32 %v4344, -1.4531521
        %v4445 = vadd.f32 %v4345, -1.4531521
        %v4446 = vadd.f32 %v4346, -1.4531521
        %v4447 = vadd.f32 %v4347, -1.4531521
        %v4448 = vadd.f32 %v4348, -1.4531521
        %v4449 = vadd.f32 %v4349, -1.4531521
        %v4450 = vadd.f32 %v4350, -1.4531521
        %v4451 = vadd.f32 %v4351, -1.4531521
        %v4452 = vadd.f32 %v4352, -1.4531521
        %v4453 = vadd.f32 %v4353, -1.4531521
        %v4454 = vadd.f32 %v4354, -1.4531521
        %v4455 = vadd.f32 %v4355, -1.4531521
        %v4456 = vadd.f32 %v4356, -1.4531521
        %v4457 = vadd.f32 %v4357, -1.4531521
        %v4458 = vadd.f32 %v4358, -1.4531521
        %v4459 = vadd.f32 %v4359, -1.4531521
        %v4460 = vadd.f32 %v4360, -1.4531521
        %v4461 = vadd.f32 %v4361, -1.4531521
        %v4462 = vadd.f32 %v4362, -1.4531521
        %v4463 = vadd.f32 %v4363, -1.4531521
        %v4464 = vadd.f32 %v4364, -1.4531521
        %v4465 = vadd.f32 %v4365, -1.4531521
        %v4466 = vadd.f32 %v4366, -1.4531521
        %v4467 = vadd.f32 %v4367, -1.4531521
        %v4468 = vadd.f32 %v4368, -1.4531521
        %v4469 = vadd.f32 %v4369, -1.4531521
        %v4470 = vadd.f32 %v4370, -1.4531521
        %v4471 = vadd.f32 %v4371, -1.4531521
        %v4472 = vadd.f32 %v4372, -1.4531521
        %v4473 = vadd.f32 %v4373, -1.4531521
        %v4474 = vadd.f32 %v4374, -1.4531521
        %v4475 = vadd.f32 %v4375, -1.4531521
        %v4476 = vadd.f32 %v4376, -1.4531521
        %v4477 = vadd.f32 %v4377, -1.4531521
        %v4478 = vadd.f32 %v4378, -1.4531521
        %v4479 = vadd.f32 %v4379, -1.4531521
        %v4480 = vmul.f32 %v4380, %v4180
        %v4481 = vmul.f32 %v4381, %v4181
        %v4482 = vmul.f32 %v4382, %v4182
        %v4483 = vmul.f32 %v4383, %v4183
        %v4484 = vmul.f32 %v4384, %v4184
        %v4485 = vmul.f32 %v4385, %v4185
        %v4486 = vmul.f32 %v4386, %v4186
        %v4487 = vmul.f32 %v4387, %v4187
        %v4488 = vmul.f32 %v4388, %v4188
        %v4489 = vmul.f32 %v4389, %v4189
        %v4490 = vmul.f32 %v4390, %v4190
        %v4491 = vmul.f32 %v4391, %v4191
        %v4492 = vmul.f32 %v4392, %v4192
        %v4493 = vmul.f32 %v4393, %v4193
        %v4494 = vmul.f32 %v4394, %v4194
        %v4495 = vmul.f32 %v4395, %v4195
        %v4496 = vmul.f32 %v4396, %v4196
        %v4497 = vmul.f32 %v4397, %v4197
        %v4498 = vmul.f32 %v4398, %v4198
        %v4499 = vmul.f32 %v4399, %v4199
        %v4500 = vmul.f32 %v4400, %v4200
        %v4501 = vmul.f32 %v4401, %v4201
        %v4502 = vmul.f32 %v4402, %v4202
        %v4503 = vmul.f32 %v4403, %v4203
        %v4504 = vmul.f32 %v4404, %v4204
        %v4505 = vmul.f32 %v4405, %v4205
        %v4506 = vmul.f32 %v4406, %v4206
        %v4507 = vmul.f32 %v4407, %v4207
        %v4508 = vmul.f32 %v4408, %v4208
        %v4509 = vmul.f32 %v4409, %v4209
        %v4510 = vmul.f32 %v4410, %v4210
        %v4511 = vmul.f32 %v4411, %v4211
        %v4512 = vmul.f32 %v4412, %v4212
        %v4513 = vmul.f32 %v4413, %v4213
        %v4514 = vmul.f32 %v4414, %v4214
        %v4515 = vmul.f32 %v4415, %v4215
        %v4516 = vmul.f32 %v4416, %v4216
        %v4517 = vmul.f32 %v4417, %v4217
        %v4518 = vmul.f32 %v4418, %v4218
        %v4519 = vmul.f32 %v4419, %v4219
        %v4520 = vmul.f32 %v4420, %v4220
        %v4521 = vmul.f32 %v4421, %v4221
        %v4522 = vmul.f32 %v4422, %v4222
        %v4523 = vmul.f32 %v4423, %v4223
        %v4524 = vmul.f32 %v4424, %v4224
        %v4525 = vmul.f32 %v4425, %v4225
        %v4526 = vmul.f32 %v4426, %v4226
        %v4527 = vmul.f32 %v4427, %v4227
        %v4528 = vmul.f32 %v4428, %v4228
        %v4529 = vmul.f32 %v4429, %v4229
        %v4530 = vmul.f32 %v4430, %v4230
        %v4531 = vmul.f32 %v4431, %v4231
        %v4532 = vmul.f32 %v4432, %v4232
        %v4533 = vmul.f32 %v4433, %v4233
        %v4534 = vmul.f32 %v4434, %v4234
        %v4535 = vmul.f32 %v4435, %v4235
        %v4536 = vmul.f32 %v4436, %v4236
        %v4537 = vmul.f32 %v4437, %v4237
        %v4538 = vmul.f32 %v4438, %v4238
        %v4539 = vmul.f32 %v4439, %v4239
        %v4540 = vmul.f32 %v4440, %v4240
        %v4541 = vmul.f32 %v4441, %v4241
        %v4542 = vmul.f32 %v4442, %v4242
        %v4543 = vmul.f32 %v4443, %v4243
        %v4544 = vmul.f32 %v4444, %v4244
        %v4545 = vmul.f32 %v4445, %v4245
        %v4546 = vmul.f32 %v4446, %v4246
        %v4547 = vmul.f32 %v4447, %v4247
        %v4548 = vmul.f32 %v4448, %v4248
        %v4549 = vmul.f32 %v4449, %v4249
        %v4550 = vmul.f32 %v4450, %v4250
        %v4551 = vmul.f32 %v4451, %v4251
        %v4552 = vmul.f32 %v4452, %v4252
        %v4553 = vmul.f32 %v4453, %v4253
        %v4554 = vmul.f32 %v4454, %v4254
        %v4555 = vmul.f32 %v4455, %v4255
        %v4556 = vmul.f32 %v4456, %v4256
        %v4557 = vmul.f32 %v4457, %v4257
        %v4558 = vmul.f32 %v4458, %v4258
        %v4559 = vmul.f32 %v4459, %v4259
        %v4560 = vmul.f32 %v4460, %v4260
        %v4561 = vmul.f32 %v4461, %v4261
        %v4562 = vmul.f32 %v4462, %v4262
        %v4563 = vmul.f32 %v4463, %v4263
        %v4564 = vmul.f32 %v4464, %v4264
        %v4565 = vmul.f32 %v4465, %v4265
        %v4566 = vmul.f32 %v4466, %v4266
        %v4567 = vmul.f32 %v4467, %v4267
        %v4568 = vmul.f32 %v4468, %v4268
        %v4569 = vmul.f32 %v4469, %v4269
        %v4570 = vmul.f32 %v4470, %v4270
        %v4571 = vmul.f32 %v4471, %v4271
        %v4572 = vmul.f32 %v4472, %v4272
        %v4573 = vmul.f32 %v4473, %v4273
        %v4574 = vmul.f32 %v4474, %v4274
        %v4575 = vmul.f32 %v4475, %v4275
        %v4576 = vmul.f32 %v4476, %v4276
        %v4577 = vmul.f32 %v4477, %v4277
        %v4578 = vmul.f32 %v4478, %v4278
        %v4579 = vmul.f32 %v4479, %v4279
        %v4580 = vadd.f32 %v4480, 1.4214138
        %v4581 = vadd.f32 %v4481, 1.4214138
        %v4582 = vadd.f32 %v4482, 1.4214138
        %v4583 = vadd.f32 %v4483, 1.4214138
        %v4584 = vadd.f32 %v4484, 1.4214138
        %v4585 = vadd.f32 %v4485, 1.4214138
        %v4586 = vadd.f32 %v4486, 1.4214138
        %v4587 = vadd.f32 %v4487, 1.4214138
        %v4588 = vadd.f32 %v4488, 1.4214138
        %v4589 = vadd.f32 %v4489, 1.4214138
        %v4590 = vadd.f32 %v4490, 1.4214138
        %v4591 = vadd.f32 %v4491, 1.4214138
        %v4592 = vadd.f32 %v4492, 1.4214138
        %v4593 = vadd.f32 %v4493, 1.4214138
        %v4594 = vadd.f32 %v4494, 1.4214138
        %v4595 = vadd.f32 %v4495, 1.4214138
        %v4596 = vadd.f32 %v4496, 1.4214138
        %v4597 = vadd.f32 %v4497, 1.4214138
        %v4598 = vadd.f32 %v4498, 1.4214138
        %v4599 = vadd.f32 %v4499, 1.4214138
        %v4600 = vadd.f32 %v4500, 1.4214138
        %v4601 = vadd.f32 %v4501, 1.4214138
        %v4602 = vadd.f32 %v4502, 1.4214138
        %v4603 = vadd.f32 %v4503, 1.4214138
        %v4604 = vadd.f32 %v4504, 1.4214138
        %v4605 = vadd.f32 %v4505, 1.4214138
        %v4606 = vadd.f32 %v4506, 1.4214138
        %v4607 = vadd.f32 %v4507, 1.4214138
        %v4608 = vadd.f32 %v4508, 1.4214138
        %v4609 = vadd.f32 %v4509, 1.4214138
        %v4610 = vadd.f32 %v4510, 1.4214138
        %v4611 = vadd.f32 %v4511, 1.4214138
        %v4612 = vadd.f32 %v4512, 1.4214138
        %v4613 = vadd.f32 %v4513, 1.4214138
        %v4614 = vadd.f32 %v4514, 1.4214138
        %v4615 = vadd.f32 %v4515, 1.4214138
        %v4616 = vadd.f32 %v4516, 1.4214138
        %v4617 = vadd.f32 %v4517, 1.4214138
        %v4618 = vadd.f32 %v4518, 1.4214138
        %v4619 = vadd.f32 %v4519, 1.4214138
        %v4620 = vadd.f32 %v4520, 1.4214138
        %v4621 = vadd.f32 %v4521, 1.4214138
        %v4622 = vadd.f32 %v4522, 1.4214138
        %v4623 = vadd.f32 %v4523, 1.4214138
        %v4624 = vadd.f32 %v4524, 1.4214138
        %v4625 = vadd.f32 %v4525, 1.4214138
        %v4626 = vadd.f32 %v4526, 1.4214138
        %v4627 = vadd.f32 %v4527, 1.4214138
        %v4628 = vadd.f32 %v4528, 1.4214138
        %v4629 = vadd.f32 %v4529, 1.4214138
        %v4630 = vadd.f32 %v4530, 1.4214138
        %v4631 = vadd.f32 %v4531, 1.4214138
        %v4632 = vadd.f32 %v4532, 1.4214138
        %v4633 = vadd.f32 %v4533, 1.4214138
        %v4634 = vadd.f32 %v4534, 1.4214138
        %v4635 = vadd.f32 %v4535, 1.4214138
        %v4636 = vadd.f32 %v4536, 1.4214138
        %v4637 = vadd.f32 %v4537, 1.4214138
        %v4638 = vadd.f32 %v4538, 1.4214138
        %v4639 = vadd.f32 %v4539, 1.4214138
        %v4640 = vadd.f32 %v4540, 1.4214138
        %v4641 = vadd.f32 %v4541, 1.4214138
        %v4642 = vadd.f32 %v4542, 1.4214138
        %v4643 = vadd.f32 %v4543, 1.4214138
        %v4644 = vadd.f32 %v4544, 1.4214138
        %v4645 = vadd.f32 %v4545, 1.4214138
        %v4646 = vadd.f32 %v4546, 1.4214138
        %v4647 = vadd.f32 %v4547, 1.4214138
        %v4648 = vadd.f32 %v4548, 1.4214138
        %v4649 = vadd.f32 %v4549, 1.4214138
        %v4650 = vadd.f32 %v4550, 1.4214138
        %v4651 = vadd.f32 %v4551, 1.4214138
        %v4652 = vadd.f32 %v4552, 1.4214138
        %v4653 = vadd.f32 %v4553, 1.4214138
        %v4654 = vadd.f32 %v4554, 1.4214138
        %v4655 = vadd.f32 %v4555, 1.4214138
        %v4656 = vadd.f32 %v4556, 1.4214138
        %v4657 = vadd.f32 %v4557, 1.4214138
        %v4658 = vadd.f32 %v4558, 1.4214138
        %v4659 = vadd.f32 %v4559, 1.4214138
        %v4660 = vadd.f32 %v4560, 1.4214138
        %v4661 = vadd.f32 %v4561, 1.4214138
        %v4662 = vadd.f32 %v4562, 1.4214138
        %v4663 = vadd.f32 %v4563, 1.4214138
        %v4664 = vadd.f32 %v4564, 1.4214138
        %v4665 = vadd.f32 %v4565, 1.4214138
        %v4666 = vadd.f32 %v4566, 1.4214138
        %v4667 = vadd.f32 %v4567, 1.4214138
        %v4668 = vadd.f32 %v4568, 1.4214138
        %v4669 = vadd.f32 %v4569, 1.4214138
        %v4670 = vadd.f32 %v4570, 1.4214138
        %v4671 = vadd.f32 %v4571, 1.4214138
        %v4672 = vadd.f32 %v4572, 1.4214138
        %v4673 = vadd.f32 %v4573, 1.4214138
        %v4674 = vadd.f32 %v4574, 1.4214138
        %v4675 = vadd.f32 %v4575, 1.4214138
        %v4676 = vadd.f32 %v4576, 1.4214138
        %v4677 = vadd.f32 %v4577, 1.4214138
        %v4678 = vadd.f32 %v4578, 1.4214138
        %v4679 = vadd.f32 %v4579, 1.4214138
        %v4680 = vmul.f32 %v4580, %v4180
        %v4681 = vmul.f32 %v4581, %v4181
        %v4682 = vmul.f32 %v4582, %v4182
        %v4683 = vmul.f32 %v4583, %v4183
        %v4684 = vmul.f32 %v4584, %v4184
        %v4685 = vmul.f32 %v4585, %v4185
        %v4686 = vmul.f32 %v4586, %v4186
        %v4687 = vmul.f32 %v4587, %v4187
        %v4688 = vmul.f32 %v4588, %v4188
        %v4689 = vmul.f32 %v4589, %v4189
        %v4690 = vmul.f32 %v4590, %v4190
        %v4691 = vmul.f32 %v4591, %v4191
        %v4692 = vmul.f32 %v4592, %v4192
        %v4693 = vmul.f32 %v4593, %v4193
        %v4694 = vmul.f32 %v4594, %v4194
        %v4695 = vmul.f32 %v4595, %v4195
        %v4696 = vmul.f32 %v4596, %v4196
        %v4697 = vmul.f32 %v4597, %v4197
        %v4698 = vmul.f32 %v4598, %v4198
        %v4699 = vmul.f32 %v4599, %v4199
        %v4700 = vmul.f32 %v4600, %v4200
        %v4701 = vmul.f32 %v4601, %v4201
        %v4702 = vmul.f32 %v4602, %v4202
        %v4703 = vmul.f32 %v4603, %v4203
        %v4704 = vmul.f32 %v4604, %v4204
        %v4705 = vmul.f32 %v4605, %v4205
        %v4706 = vmul.f32 %v4606, %v4206
        %v4707 = vmul.f32 %v4607, %v4207
        %v4708 = vmul.f32 %v4608, %v4208
        %v4709 = vmul.f32 %v4609, %v4209
        %v4710 = vmul.f32 %v4610, %v4210
        %v4711 = vmul.f32 %v4611, %v4211
        %v4712 = vmul.f32 %v4612, %v4212
        %v4713 = vmul.f32 %v4613, %v4213
        %v4714 = vmul.f32 %v4614, %v4214
        %v4715 = vmul.f32 %v4615, %v4215
        %v4716 = vmul.f32 %v4616, %v4216
        %v4717 = vmul.f32 %v4617, %v4217
        %v4718 = vmul.f32 %v4618, %v4218
        %v4719 = vmul.f32 %v4619, %v4219
        %v4720 = vmul.f32 %v4620, %v4220
        %v4721 = vmul.f32 %v4621, %v4221
        %v4722 = vmul.f32 %v4622, %v4222
        %v4723 = vmul.f32 %v4623, %v4223
        %v4724 = vmul.f32 %v4624, %v4224
        %v4725 = vmul.f32 %v4625, %v4225
        %v4726 = vmul.f32 %v4626, %v4226
        %v4727 = vmul.f32 %v4627, %v4227
        %v4728 = vmul.f32 %v4628, %v4228
        %v4729 = vmul.f32 %v4629, %v4229
        %v4730 = vmul.f32 %v4630, %v4230
        %v4731 = vmul.f32 %v4631, %v4231
        %v4732 = vmul.f32 %v4632, %v4232
        %v4733 = vmul.f32 %v4633, %v4233
        %v4734 = vmul.f32 %v4634, %v4234
        %v4735 = vmul.f32 %v4635, %v4235
        %v4736 = vmul.f32 %v4636, %v4236
        %v4737 = vmul.f32 %v4637, %v4237
        %v4738 = vmul.f32 %v4638, %v4238
        %v4739 = vmul.f32 %v4639, %v4239
        %v4740 = vmul.f32 %v4640, %v4240
        %v4741 = vmul.f32 %v4641, %v4241
        %v4742 = vmul.f32 %v4642, %v4242
        %v4743 = vmul.f32 %v4643, %v4243
        %v4744 = vmul.f32 %v4644, %v4244
        %v4745 = vmul.f32 %v4645, %v4245
        %v4746 = vmul.f32 %v4646, %v4246
        %v4747 = vmul.f32 %v4647, %v4247
        %v4748 = vmul.f32 %v4648, %v4248
        %v4749 = vmul.f32 %v4649, %v4249
        %v4750 = vmul.f32 %v4650, %v4250
        %v4751 = vmul.f32 %v4651, %v4251
        %v4752 = vmul.f32 %v4652, %v4252
        %v4753 = vmul.f32 %v4653, %v4253
        %v4754 = vmul.f32 %v4654, %v4254
        %v4755 = vmul.f32 %v4655, %v4255
        %v4756 = vmul.f32 %v4656, %v4256
        %v4757 = vmul.f32 %v4657, %v4257
        %v4758 = vmul.f32 %v4658, %v4258
        %v4759 = vmul.f32 %v4659, %v4259
        %v4760 = vmul.f32 %v4660, %v4260
        %v4761 = vmul.f32 %v4661, %v4261
        %v4762 = vmul.f32 %v4662, %v4262
        %v4763 = vmul.f32 %v4663, %v4263
        %v4764 = vmul.f32 %v4664, %v4264
        %v4765 = vmul.f32 %v4665, %v4265
        %v4766 = vmul.f32 %v4666, %v4266
        %v4767 = vmul.f32 %v4667, %v4267
        %v4768 = vmul.f32 %v4668, %v4268
        %v4769 = vmul.f32 %v4669, %v4269
        %v4770 = vmul.f32 %v4670, %v4270
        %v4771 = vmul.f32 %v4671, %v4271
        %v4772 = vmul.f32 %v4672, %v4272
        %v4773 = vmul.f32 %v4673, %v4273
        %v4774 = vmul.f32 %v4674, %v4274
        %v4775 = vmul.f32 %v4675, %v4275
        %v4776 = vmul.f32 %v4676, %v4276
        %v4777 = vmul.f32 %v4677, %v4277
        %v4778 = vmul.f32 %v4678, %v4278
        %v4779 = vmul.f32 %v4679, %v4279
        %v4780 = vadd.f32 %v4680, -0.28449672
        %v4781 = vadd.f32 %v4681, -0.28449672
        %v4782 = vadd.f32 %v4682, -0.28449672
        %v4783 = vadd.f32 %v4683, -0.28449672
        %v4784 = vadd.f32 %v4684, -0.28449672
        %v4785 = vadd.f32 %v4685, -0.28449672
        %v4786 = vadd.f32 %v4686, -0.28449672
        %v4787 = vadd.f32 %v4687, -0.28449672
        %v4788 = vadd.f32 %v4688, -0.28449672
        %v4789 = vadd.f32 %v4689, -0.28449672
        %v4790 = vadd.f32 %v4690, -0.28449672
        %v4791 = vadd.f32 %v4691, -0.28449672
        %v4792 = vadd.f32 %v4692, -0.28449672
        %v4793 = vadd.f32 %v4693, -0.28449672
        %v4794 = vadd.f32 %v4694, -0.28449672
        %v4795 = vadd.f32 %v4695, -0.28449672
        %v4796 = vadd.f32 %v4696, -0.28449672
        %v4797 = vadd.f32 %v4697, -0.28449672
        %v4798 = vadd.f32 %v4698, -0.28449672
        %v4799 = vadd.f32 %v4699, -0.28449672
        %v4800 = vadd.f32 %v4700, -0.28449672
        %v4801 = vadd.f32 %v4701, -0.28449672
        %v4802 = vadd.f32 %v4702, -0.28449672
        %v4803 = vadd.f32 %v4703, -0.28449672
        %v4804 = vadd.f32 %v4704, -0.28449672
        %v4805 = vadd.f32 %v4705, -0.28449672
        %v4806 = vadd.f32 %v4706, -0.28449672
        %v4807 = vadd.f32 %v4707, -0.28449672
        %v4808 = vadd.f32 %v4708, -0.28449672
        %v4809 = vadd.f32 %v4709, -0.28449672
        %v4810 = vadd.f32 %v4710, -0.28449672
        %v4811 = vadd.f32 %v4711, -0.28449672
        %v4812 = vadd.f32 %v4712, -0.28449672
        %v4813 = vadd.f32 %v4713, -0.28449672
        %v4814 = vadd.f32 %v4714, -0.28449672
        %v4815 = vadd.f32 %v4715, -0.28449672
        %v4816 = vadd.f32 %v4716, -0.28449672
        %v4817 = vadd.f32 %v4717, -0.28449672
        %v4818 = vadd.f32 %v4718, -0.28449672
        %v4819 = vadd.f32 %v4719, -0.28449672
        %v4820 = vadd.f32 %v4720, -0.28449672
        %v4821 = vadd.f32 %v4721, -0.28449672
        %v4822 = vadd.f32 %v4722, -0.28449672
        %v4823 = vadd.f32 %v4723, -0.28449672
        %v4824 = vadd.f32 %v4724, -0.28449672
        %v4825 = vadd.f32 %v4725, -0.28449672
        %v4826 = vadd.f32 %v4726, -0.28449672
        %v4827 = vadd.f32 %v4727, -0.28449672
        %v4828 = vadd.f32 %v4728, -0.28449672
        %v4829 = vadd.f32 %v4729, -0.28449672
        %v4830 = vadd.f32 %v4730, -0.28449672
        %v4831 = vadd.f32 %v4731, -0.28449672
        %v4832 = vadd.f32 %v4732, -0.28449672
        %v4833 = vadd.f32 %v4733, -0.28449672
        %v4834 = vadd.f32 %v4734, -0.28449672
        %v4835 = vadd.f32 %v4735, -0.28449672
        %v4836 = vadd.f32 %v4736, -0.28449672
        %v4837 = vadd.f32 %v4737, -0.28449672
        %v4838 = vadd.f32 %v4738, -0.28449672
        %v4839 = vadd.f32 %v4739, -0.28449672
        %v4840 = vadd.f32 %v4740, -0.28449672
        %v4841 = vadd.f32 %v4741, -0.28449672
        %v4842 = vadd.f32 %v4742, -0.28449672
        %v4843 = vadd.f32 %v4743, -0.28449672
        %v4844 = vadd.f32 %v4744, -0.28449672
        %v4845 = vadd.f32 %v4745, -0.28449672
        %v4846 = vadd.f32 %v4746, -0.28449672
        %v4847 = vadd.f32 %v4747, -0.28449672
        %v4848 = vadd.f32 %v4748, -0.28449672
        %v4849 = vadd.f32 %v4749, -0.28449672
        %v4850 = vadd.f32 %v4750, -0.28449672
        %v4851 = vadd.f32 %v4751, -0.28449672
        %v4852 = vadd.f32 %v4752, -0.28449672
        %v4853 = vadd.f32 %v4753, -0.28449672
        %v4854 = vadd.f32 %v4754, -0.28449672
        %v4855 = vadd.f32 %v4755, -0.28449672
        %v4856 = vadd.f32 %v4756, -0.28449672
        %v4857 = vadd.f32 %v4757, -0.28449672
        %v4858 = vadd.f32 %v4758, -0.28449672
        %v4859 = vadd.f32 %v4759, -0.28449672
        %v4860 = vadd.f32 %v4760, -0.28449672
        %v4861 = vadd.f32 %v4761, -0.28449672
        %v4862 = vadd.f32 %v4762, -0.28449672
        %v4863 = vadd.f32 %v4763, -0.28449672
        %v4864 = vadd.f32 %v4764, -0.28449672
        %v4865 = vadd.f32 %v4765, -0.28449672
        %v4866 = vadd.f32 %v4766, -0.28449672
        %v4867 = vadd.f32 %v4767, -0.28449672
        %v4868 = vadd.f32 %v4768, -0.28449672
        %v4869 = vadd.f32 %v4769, -0.28449672
        %v4870 = vadd.f32 %v4770, -0.28449672
        %v4871 = vadd.f32 %v4771, -0.28449672
        %v4872 = vadd.f32 %v4772, -0.28449672
        %v4873 = vadd.f32 %v4773, -0.28449672
        %v4874 = vadd.f32 %v4774, -0.28449672
        %v4875 = vadd.f32 %v4775, -0.28449672
        %v4876 = vadd.f32 %v4776, -0.28449672
        %v4877 = vadd.f32 %v4777, -0.28449672
        %v4878 = vadd.f32 %v4778, -0.28449672
        %v4879 = vadd.f32 %v4779, -0.28449672
        %v4880 = vmul.f32 %v4780, %v4180
        %v4881 = vmul.f32 %v4781, %v4181
        %v4882 = vmul.f32 %v4782, %v4182
        %v4883 = vmul.f32 %v4783, %v4183
        %v4884 = vmul.f32 %v4784, %v4184
        %v4885 = vmul.f32 %v4785, %v4185
        %v4886 = vmul.f32 %v4786, %v4186
        %v4887 = vmul.f32 %v4787, %v4187
        %v4888 = vmul.f32 %v4788, %v4188
        %v4889 = vmul.f32 %v4789, %v4189
        %v4890 = vmul.f32 %v4790, %v4190
        %v4891 = vmul.f32 %v4791, %v4191
        %v4892 = vmul.f32 %v4792, %v4192
        %v4893 = vmul.f32 %v4793, %v4193
        %v4894 = vmul.f32 %v4794, %v4194
        %v4895 = vmul.f32 %v4795, %v4195
        %v4896 = vmul.f32 %v4796, %v4196
        %v4897 = vmul.f32 %v4797, %v4197
        %v4898 = vmul.f32 %v4798, %v4198
        %v4899 = vmul.f32 %v4799, %v4199
        %v4900 = vmul.f32 %v4800, %v4200
        %v4901 = vmul.f32 %v4801, %v4201
        %v4902 = vmul.f32 %v4802, %v4202
        %v4903 = vmul.f32 %v4803, %v4203
        %v4904 = vmul.f32 %v4804, %v4204
        %v4905 = vmul.f32 %v4805, %v4205
        %v4906 = vmul.f32 %v4806, %v4206
        %v4907 = vmul.f32 %v4807, %v4207
        %v4908 = vmul.f32 %v4808, %v4208
        %v4909 = vmul.f32 %v4809, %v4209
        %v4910 = vmul.f32 %v4810, %v4210
        %v4911 = vmul.f32 %v4811, %v4211
        %v4912 = vmul.f32 %v4812, %v4212
        %v4913 = vmul.f32 %v4813, %v4213
        %v4914 = vmul.f32 %v4814, %v4214
        %v4915 = vmul.f32 %v4815, %v4215
        %v4916 = vmul.f32 %v4816, %v4216
        %v4917 = vmul.f32 %v4817, %v4217
        %v4918 = vmul.f32 %v4818, %v4218
        %v4919 = vmul.f32 %v4819, %v4219
        %v4920 = vmul.f32 %v4820, %v4220
        %v4921 = vmul.f32 %v4821, %v4221
        %v4922 = vmul.f32 %v4822, %v4222
        %v4923 = vmul.f32 %v4823, %v4223
        %v4924 = vmul.f32 %v4824, %v4224
        %v4925 = vmul.f32 %v4825, %v4225
        %v4926 = vmul.f32 %v4826, %v4226
        %v4927 = vmul.f32 %v4827, %v4227
        %v4928 = vmul.f32 %v4828, %v4228
        %v4929 = vmul.f32 %v4829, %v4229
        %v4930 = vmul.f32 %v4830, %v4230
        %v4931 = vmul.f32 %v4831, %v4231
        %v4932 = vmul.f32 %v4832, %v4232
        %v4933 = vmul.f32 %v4833, %v4233
        %v4934 = vmul.f32 %v4834, %v4234
        %v4935 = vmul.f32 %v4835, %v4235
        %v4936 = vmul.f32 %v4836, %v4236
        %v4937 = vmul.f32 %v4837, %v4237
        %v4938 = vmul.f32 %v4838, %v4238
        %v4939 = vmul.f32 %v4839, %v4239
        %v4940 = vmul.f32 %v4840, %v4240
        %v4941 = vmul.f32 %v4841, %v4241
        %v4942 = vmul.f32 %v4842, %v4242
        %v4943 = vmul.f32 %v4843, %v4243
        %v4944 = vmul.f32 %v4844, %v4244
        %v4945 = vmul.f32 %v4845, %v4245
        %v4946 = vmul.f32 %v4846, %v4246
        %v4947 = vmul.f32 %v4847, %v4247
        %v4948 = vmul.f32 %v4848, %v4248
        %v4949 = vmul.f32 %v4849, %v4249
        %v4950 = vmul.f32 %v4850, %v4250
        %v4951 = vmul.f32 %v4851, %v4251
        %v4952 = vmul.f32 %v4852, %v4252
        %v4953 = vmul.f32 %v4853, %v4253
        %v4954 = vmul.f32 %v4854, %v4254
        %v4955 = vmul.f32 %v4855, %v4255
        %v4956 = vmul.f32 %v4856, %v4256
        %v4957 = vmul.f32 %v4857, %v4257
        %v4958 = vmul.f32 %v4858, %v4258
        %v4959 = vmul.f32 %v4859, %v4259
        %v4960 = vmul.f32 %v4860, %v4260
        %v4961 = vmul.f32 %v4861, %v4261
        %v4962 = vmul.f32 %v4862, %v4262
        %v4963 = vmul.f32 %v4863, %v4263
        %v4964 = vmul.f32 %v4864, %v4264
        %v4965 = vmul.f32 %v4865, %v4265
        %v4966 = vmul.f32 %v4866, %v4266
        %v4967 = vmul.f32 %v4867, %v4267
        %v4968 = vmul.f32 %v4868, %v4268
        %v4969 = vmul.f32 %v4869, %v4269
        %v4970 = vmul.f32 %v4870, %v4270
        %v4971 = vmul.f32 %v4871, %v4271
        %v4972 = vmul.f32 %v4872, %v4272
        %v4973 = vmul.f32 %v4873, %v4273
        %v4974 = vmul.f32 %v4874, %v4274
        %v4975 = vmul.f32 %v4875, %v4275
        %v4976 = vmul.f32 %v4876, %v4276
        %v4977 = vmul.f32 %v4877, %v4277
        %v4978 = vmul.f32 %v4878, %v4278
        %v4979 = vmul.f32 %v4879, %v4279
        %v4980 = vadd.f32 %v4880, 0.2548296
        %v4981 = vadd.f32 %v4881, 0.2548296
        %v4982 = vadd.f32 %v4882, 0.2548296
        %v4983 = vadd.f32 %v4883, 0.2548296
        %v4984 = vadd.f32 %v4884, 0.2548296
        %v4985 = vadd.f32 %v4885, 0.2548296
        %v4986 = vadd.f32 %v4886, 0.2548296
        %v4987 = vadd.f32 %v4887, 0.2548296
        %v4988 = vadd.f32 %v4888, 0.2548296
        %v4989 = vadd.f32 %v4889, 0.2548296
        %v4990 = vadd.f32 %v4890, 0.2548296
        %v4991 = vadd.f32 %v4891, 0.2548296
        %v4992 = vadd.f32 %v4892, 0.2548296
        %v4993 = vadd.f32 %v4893, 0.2548296
        %v4994 = vadd.f32 %v4894, 0.2548296
        %v4995 = vadd.f32 %v4895, 0.2548296
        %v4996 = vadd.f32 %v4896, 0.2548296
        %v4997 = vadd.f32 %v4897, 0.2548296
        %v4998 = vadd.f32 %v4898, 0.2548296
        %v4999 = vadd.f32 %v4899, 0.2548296
        %v5000 = vadd.f32 %v4900, 0.2548296
        %v5001 = vadd.f32 %v4901, 0.2548296
        %v5002 = vadd.f32 %v4902, 0.2548296
        %v5003 = vadd.f32 %v4903, 0.2548296
        %v5004 = vadd.f32 %v4904, 0.2548296
        %v5005 = vadd.f32 %v4905, 0.2548296
        %v5006 = vadd.f32 %v4906, 0.2548296
        %v5007 = vadd.f32 %v4907, 0.2548296
        %v5008 = vadd.f32 %v4908, 0.2548296
        %v5009 = vadd.f32 %v4909, 0.2548296
        %v5010 = vadd.f32 %v4910, 0.2548296
        %v5011 = vadd.f32 %v4911, 0.2548296
        %v5012 = vadd.f32 %v4912, 0.2548296
        %v5013 = vadd.f32 %v4913, 0.2548296
        %v5014 = vadd.f32 %v4914, 0.2548296
        %v5015 = vadd.f32 %v4915, 0.2548296
        %v5016 = vadd.f32 %v4916, 0.2548296
        %v5017 = vadd.f32 %v4917, 0.2548296
        %v5018 = vadd.f32 %v4918, 0.2548296
        %v5019 = vadd.f32 %v4919, 0.2548296
        %v5020 = vadd.f32 %v4920, 0.2548296
        %v5021 = vadd.f32 %v4921, 0.2548296
        %v5022 = vadd.f32 %v4922, 0.2548296
        %v5023 = vadd.f32 %v4923, 0.2548296
        %v5024 = vadd.f32 %v4924, 0.2548296
        %v5025 = vadd.f32 %v4925, 0.2548296
        %v5026 = vadd.f32 %v4926, 0.2548296
        %v5027 = vadd.f32 %v4927, 0.2548296
        %v5028 = vadd.f32 %v4928, 0.2548296
        %v5029 = vadd.f32 %v4929, 0.2548296
        %v5030 = vadd.f32 %v4930, 0.2548296
        %v5031 = vadd.f32 %v4931, 0.2548296
        %v5032 = vadd.f32 %v4932, 0.2548296
        %v5033 = vadd.f32 %v4933, 0.2548296
        %v5034 = vadd.f32 %v4934, 0.2548296
        %v5035 = vadd.f32 %v4935, 0.2548296
        %v5036 = vadd.f32 %v4936, 0.2548296
        %v5037 = vadd.f32 %v4937, 0.2548296
        %v5038 = vadd.f32 %v4938, 0.2548296
        %v5039 = vadd.f32 %v4939, 0.2548296
        %v5040 = vadd.f32 %v4940, 0.2548296
        %v5041 = vadd.f32 %v4941, 0.2548296
        %v5042 = vadd.f32 %v4942, 0.2548296
        %v5043 = vadd.f32 %v4943, 0.2548296
        %v5044 = vadd.f32 %v4944, 0.2548296
        %v5045 = vadd.f32 %v4945, 0.2548296
        %v5046 = vadd.f32 %v4946, 0.2548296
        %v5047 = vadd.f32 %v4947, 0.2548296
        %v5048 = vadd.f32 %v4948, 0.2548296
        %v5049 = vadd.f32 %v4949, 0.2548296
        %v5050 = vadd.f32 %v4950, 0.2548296
        %v5051 = vadd.f32 %v4951, 0.2548296
        %v5052 = vadd.f32 %v4952, 0.2548296
        %v5053 = vadd.f32 %v4953, 0.2548296
        %v5054 = vadd.f32 %v4954, 0.2548296
        %v5055 = vadd.f32 %v4955, 0.2548296
        %v5056 = vadd.f32 %v4956, 0.2548296
        %v5057 = vadd.f32 %v4957, 0.2548296
        %v5058 = vadd.f32 %v4958, 0.2548296
        %v5059 = vadd.f32 %v4959, 0.2548296
        %v5060 = vadd.f32 %v4960, 0.2548296
        %v5061 = vadd.f32 %v4961, 0.2548296
        %v5062 = vadd.f32 %v4962, 0.2548296
        %v5063 = vadd.f32 %v4963, 0.2548296
        %v5064 = vadd.f32 %v4964, 0.2548296
        %v5065 = vadd.f32 %v4965, 0.2548296
        %v5066 = vadd.f32 %v4966, 0.2548296
        %v5067 = vadd.f32 %v4967, 0.2548296
        %v5068 = vadd.f32 %v4968, 0.2548296
        %v5069 = vadd.f32 %v4969, 0.2548296
        %v5070 = vadd.f32 %v4970, 0.2548296
        %v5071 = vadd.f32 %v4971, 0.2548296
        %v5072 = vadd.f32 %v4972, 0.2548296
        %v5073 = vadd.f32 %v4973, 0.2548296
        %v5074 = vadd.f32 %v4974, 0.2548296
        %v5075 = vadd.f32 %v4975, 0.2548296
        %v5076 = vadd.f32 %v4976, 0.2548296
        %v5077 = vadd.f32 %v4977, 0.2548296
        %v5078 = vadd.f32 %v4978, 0.2548296
        %v5079 = vadd.f32 %v4979, 0.2548296
        %v5080 = vmul.f32 %v4980, %v4180
        %v5081 = vmul.f32 %v4981, %v4181
        %v5082 = vmul.f32 %v4982, %v4182
        %v5083 = vmul.f32 %v4983, %v4183
        %v5084 = vmul.f32 %v4984, %v4184
        %v5085 = vmul.f32 %v4985, %v4185
        %v5086 = vmul.f32 %v4986, %v4186
        %v5087 = vmul.f32 %v4987, %v4187
        %v5088 = vmul.f32 %v4988, %v4188
        %v5089 = vmul.f32 %v4989, %v4189
        %v5090 = vmul.f32 %v4990, %v4190
        %v5091 = vmul.f32 %v4991, %v4191
        %v5092 = vmul.f32 %v4992, %v4192
        %v5093 = vmul.f32 %v4993, %v4193
        %v5094 = vmul.f32 %v4994, %v4194
        %v5095 = vmul.f32 %v4995, %v4195
        %v5096 = vmul.f32 %v4996, %v4196
        %v5097 = vmul.f32 %v4997, %v4197
        %v5098 = vmul.f32 %v4998, %v4198
        %v5099 = vmul.f32 %v4999, %v4199
        %v5100 = vmul.f32 %v5000, %v4200
        %v5101 = vmul.f32 %v5001, %v4201
        %v5102 = vmul.f32 %v5002, %v4202
        %v5103 = vmul.f32 %v5003, %v4203
        %v5104 = vmul.f32 %v5004, %v4204
        %v5105 = vmul.f32 %v5005, %v4205
        %v5106 = vmul.f32 %v5006, %v4206
        %v5107 = vmul.f32 %v5007, %v4207
        %v5108 = vmul.f32 %v5008, %v4208
        %v5109 = vmul.f32 %v5009, %v4209
        %v5110 = vmul.f32 %v5010, %v4210
        %v5111 = vmul.f32 %v5011, %v4211
        %v5112 = vmul.f32 %v5012, %v4212
        %v5113 = vmul.f32 %v5013, %v4213
        %v5114 = vmul.f32 %v5014, %v4214
        %v5115 = vmul.f32 %v5015, %v4215
        %v5116 = vmul.f32 %v5016, %v4216
        %v5117 = vmul.f32 %v5017, %v4217
        %v5118 = vmul.f32 %v5018, %v4218
        %v5119 = vmul.f32 %v5019, %v4219
        %v5120 = vmul.f32 %v5020, %v4220
        %v5121 = vmul.f32 %v5021, %v4221
        %v5122 = vmul.f32 %v5022, %v4222
        %v5123 = vmul.f32 %v5023, %v4223
        %v5124 = vmul.f32 %v5024, %v4224
        %v5125 = vmul.f32 %v5025, %v4225
        %v5126 = vmul.f32 %v5026, %v4226
        %v5127 = vmul.f32 %v5027, %v4227
        %v5128 = vmul.f32 %v5028, %v4228
        %v5129 = vmul.f32 %v5029, %v4229
        %v5130 = vmul.f32 %v5030, %v4230
        %v5131 = vmul.f32 %v5031, %v4231
        %v5132 = vmul.f32 %v5032, %v4232
        %v5133 = vmul.f32 %v5033, %v4233
        %v5134 = vmul.f32 %v5034, %v4234
        %v5135 = vmul.f32 %v5035, %v4235
        %v5136 = vmul.f32 %v5036, %v4236
        %v5137 = vmul.f32 %v5037, %v4237
        %v5138 = vmul.f32 %v5038, %v4238
        %v5139 = vmul.f32 %v5039, %v4239
        %v5140 = vmul.f32 %v5040, %v4240
        %v5141 = vmul.f32 %v5041, %v4241
        %v5142 = vmul.f32 %v5042, %v4242
        %v5143 = vmul.f32 %v5043, %v4243
        %v5144 = vmul.f32 %v5044, %v4244
        %v5145 = vmul.f32 %v5045, %v4245
        %v5146 = vmul.f32 %v5046, %v4246
        %v5147 = vmul.f32 %v5047, %v4247
        %v5148 = vmul.f32 %v5048, %v4248
        %v5149 = vmul.f32 %v5049, %v4249
        %v5150 = vmul.f32 %v5050, %v4250
        %v5151 = vmul.f32 %v5051, %v4251
        %v5152 = vmul.f32 %v5052, %v4252
        %v5153 = vmul.f32 %v5053, %v4253
        %v5154 = vmul.f32 %v5054, %v4254
        %v5155 = vmul.f32 %v5055, %v4255
        %v5156 = vmul.f32 %v5056, %v4256
        %v5157 = vmul.f32 %v5057, %v4257
        %v5158 = vmul.f32 %v5058, %v4258
        %v5159 = vmul.f32 %v5059, %v4259
        %v5160 = vmul.f32 %v5060, %v4260
        %v5161 = vmul.f32 %v5061, %v4261
        %v5162 = vmul.f32 %v5062, %v4262
        %v5163 = vmul.f32 %v5063, %v4263
        %v5164 = vmul.f32 %v5064, %v4264
        %v5165 = vmul.f32 %v5065, %v4265
        %v5166 = vmul.f32 %v5066, %v4266
        %v5167 = vmul.f32 %v5067, %v4267
        %v5168 = vmul.f32 %v5068, %v4268
        %v5169 = vmul.f32 %v5069, %v4269
        %v5170 = vmul.f32 %v5070, %v4270
        %v5171 = vmul.f32 %v5071, %v4271
        %v5172 = vmul.f32 %v5072, %v4272
        %v5173 = vmul.f32 %v5073, %v4273
        %v5174 = vmul.f32 %v5074, %v4274
        %v5175 = vmul.f32 %v5075, %v4275
        %v5176 = vmul.f32 %v5076, %v4276
        %v5177 = vmul.f32 %v5077, %v4277
        %v5178 = vmul.f32 %v5078, %v4278
        %v5179 = vmul.f32 %v5079, %v4279
        %v5180 = vmul.f32 %v3880, %v3880
        %v5181 = vmul.f32 %v3881, %v3881
        %v5182 = vmul.f32 %v3882, %v3882
        %v5183 = vmul.f32 %v3883, %v3883
        %v5184 = vmul.f32 %v3884, %v3884
        %v5185 = vmul.f32 %v3885, %v3885
        %v5186 = vmul.f32 %v3886, %v3886
        %v5187 = vmul.f32 %v3887, %v3887
        %v5188 = vmul.f32 %v3888, %v3888
        %v5189 = vmul.f32 %v3889, %v3889
        %v5190 = vmul.f32 %v3890, %v3890
        %v5191 = vmul.f32 %v3891, %v3891
        %v5192 = vmul.f32 %v3892, %v3892
        %v5193 = vmul.f32 %v3893, %v3893
        %v5194 = vmul.f32 %v3894, %v3894
        %v5195 = vmul.f32 %v3895, %v3895
        %v5196 = vmul.f32 %v3896, %v3896
        %v5197 = vmul.f32 %v3897, %v3897
        %v5198 = vmul.f32 %v3898, %v3898
        %v5199 = vmul.f32 %v3899, %v3899
        %v5200 = vmul.f32 %v3900, %v3900
        %v5201 = vmul.f32 %v3901, %v3901
        %v5202 = vmul.f32 %v3902, %v3902
        %v5203 = vmul.f32 %v3903, %v3903
        %v5204 = vmul.f32 %v3904, %v3904
        %v5205 = vmul.f32 %v3905, %v3905
        %v5206 = vmul.f32 %v3906, %v3906
        %v5207 = vmul.f32 %v3907, %v3907
        %v5208 = vmul.f32 %v3908, %v3908
        %v5209 = vmul.f32 %v3909, %v3909
        %v5210 = vmul.f32 %v3910, %v3910
        %v5211 = vmul.f32 %v3911, %v3911
        %v5212 = vmul.f32 %v3912, %v3912
        %v5213 = vmul.f32 %v3913, %v3913
        %v5214 = vmul.f32 %v3914, %v3914
        %v5215 = vmul.f32 %v3915, %v3915
        %v5216 = vmul.f32 %v3916, %v3916
        %v5217 = vmul.f32 %v3917, %v3917
        %v5218 = vmul.f32 %v3918, %v3918
        %v5219 = vmul.f32 %v3919, %v3919
        %v5220 = vmul.f32 %v3920, %v3920
        %v5221 = vmul.f32 %v3921, %v3921
        %v5222 = vmul.f32 %v3922, %v3922
        %v5223 = vmul.f32 %v3923, %v3923
        %v5224 = vmul.f32 %v3924, %v3924
        %v5225 = vmul.f32 %v3925, %v3925
        %v5226 = vmul.f32 %v3926, %v3926
        %v5227 = vmul.f32 %v3927, %v3927
        %v5228 = vmul.f32 %v3928, %v3928
        %v5229 = vmul.f32 %v3929, %v3929
        %v5230 = vmul.f32 %v3930, %v3930
        %v5231 = vmul.f32 %v3931, %v3931
        %v5232 = vmul.f32 %v3932, %v3932
        %v5233 = vmul.f32 %v3933, %v3933
        %v5234 = vmul.f32 %v3934, %v3934
        %v5235 = vmul.f32 %v3935, %v3935
        %v5236 = vmul.f32 %v3936, %v3936
        %v5237 = vmul.f32 %v3937, %v3937
        %v5238 = vmul.f32 %v3938, %v3938
        %v5239 = vmul.f32 %v3939, %v3939
        %v5240 = vmul.f32 %v3940, %v3940
        %v5241 = vmul.f32 %v3941, %v3941
        %v5242 = vmul.f32 %v3942, %v3942
        %v5243 = vmul.f32 %v3943, %v3943
        %v5244 = vmul.f32 %v3944, %v3944
        %v5245 = vmul.f32 %v3945, %v3945
        %v5246 = vmul.f32 %v3946, %v3946
        %v5247 = vmul.f32 %v3947, %v3947
        %v5248 = vmul.f32 %v3948, %v3948
        %v5249 = vmul.f32 %v3949, %v3949
        %v5250 = vmul.f32 %v3950, %v3950
        %v5251 = vmul.f32 %v3951, %v3951
        %v5252 = vmul.f32 %v3952, %v3952
        %v5253 = vmul.f32 %v3953, %v3953
        %v5254 = vmul.f32 %v3954, %v3954
        %v5255 = vmul.f32 %v3955, %v3955
        %v5256 = vmul.f32 %v3956, %v3956
        %v5257 = vmul.f32 %v3957, %v3957
        %v5258 = vmul.f32 %v3958, %v3958
        %v5259 = vmul.f32 %v3959, %v3959
        %v5260 = vmul.f32 %v3960, %v3960
        %v5261 = vmul.f32 %v3961, %v3961
        %v5262 = vmul.f32 %v3962, %v3962
        %v5263 = vmul.f32 %v3963, %v3963
        %v5264 = vmul.f32 %v3964, %v3964
        %v5265 = vmul.f32 %v3965, %v3965
        %v5266 = vmul.f32 %v3966, %v3966
        %v5267 = vmul.f32 %v3967, %v3967
        %v5268 = vmul.f32 %v3968, %v3968
        %v5269 = vmul.f32 %v3969, %v3969
        %v5270 = vmul.f32 %v3970, %v3970
        %v5271 = vmul.f32 %v3971, %v3971
        %v5272 = vmul.f32 %v3972, %v3972
        %v5273 = vmul.f32 %v3973, %v3973
        %v5274 = vmul.f32 %v3974, %v3974
        %v5275 = vmul.f32 %v3975, %v3975
        %v5276 = vmul.f32 %v3976, %v3976
        %v5277 = vmul.f32 %v3977, %v3977
        %v5278 = vmul.f32 %v3978, %v3978
        %v5279 = vmul.f32 %v3979, %v3979
        %v5280 = vsub.f32 0.0, %v5180
        %v5281 = vsub.f32 0.0, %v5181
        %v5282 = vsub.f32 0.0, %v5182
        %v5283 = vsub.f32 0.0, %v5183
        %v5284 = vsub.f32 0.0, %v5184
        %v5285 = vsub.f32 0.0, %v5185
        %v5286 = vsub.f32 0.0, %v5186
        %v5287 = vsub.f32 0.0, %v5187
        %v5288 = vsub.f32 0.0, %v5188
        %v5289 = vsub.f32 0.0, %v5189
        %v5290 = vsub.f32 0.0, %v5190
        %v5291 = vsub.f32 0.0, %v5191
        %v5292 = vsub.f32 0.0, %v5192
        %v5293 = vsub.f32 0.0, %v5193
        %v5294 = vsub.f32 0.0, %v5194
        %v5295 = vsub.f32 0.0, %v5195
        %v5296 = vsub.f32 0.0, %v5196
        %v5297 = vsub.f32 0.0, %v5197
        %v5298 = vsub.f32 0.0, %v5198
        %v5299 = vsub.f32 0.0, %v5199
        %v5300 = vsub.f32 0.0, %v5200
        %v5301 = vsub.f32 0.0, %v5201
        %v5302 = vsub.f32 0.0, %v5202
        %v5303 = vsub.f32 0.0, %v5203
        %v5304 = vsub.f32 0.0, %v5204
        %v5305 = vsub.f32 0.0, %v5205
        %v5306 = vsub.f32 0.0, %v5206
        %v5307 = vsub.f32 0.0, %v5207
        %v5308 = vsub.f32 0.0, %v5208
        %v5309 = vsub.f32 0.0, %v5209
        %v5310 = vsub.f32 0.0, %v5210
        %v5311 = vsub.f32 0.0, %v5211
        %v5312 = vsub.f32 0.0, %v5212
        %v5313 = vsub.f32 0.0, %v5213
        %v5314 = vsub.f32 0.0, %v5214
        %v5315 = vsub.f32 0.0, %v5215
        %v5316 = vsub.f32 0.0, %v5216
        %v5317 = vsub.f32 0.0, %v5217
        %v5318 = vsub.f32 0.0, %v5218
        %v5319 = vsub.f32 0.0, %v5219
        %v5320 = vsub.f32 0.0, %v5220
        %v5321 = vsub.f32 0.0, %v5221
        %v5322 = vsub.f32 0.0, %v5222
        %v5323 = vsub.f32 0.0, %v5223
        %v5324 = vsub.f32 0.0, %v5224
        %v5325 = vsub.f32 0.0, %v5225
        %v5326 = vsub.f32 0.0, %v5226
        %v5327 = vsub.f32 0.0, %v5227
        %v5328 = vsub.f32 0.0, %v5228
        %v5329 = vsub.f32 0.0, %v5229
        %v5330 = vsub.f32 0.0, %v5230
        %v5331 = vsub.f32 0.0, %v5231
        %v5332 = vsub.f32 0.0, %v5232
        %v5333 = vsub.f32 0.0, %v5233
        %v5334 = vsub.f32 0.0, %v5234
        %v5335 = vsub.f32 0.0, %v5235
        %v5336 = vsub.f32 0.0, %v5236
        %v5337 = vsub.f32 0.0, %v5237
        %v5338 = vsub.f32 0.0, %v5238
        %v5339 = vsub.f32 0.0, %v5239
        %v5340 = vsub.f32 0.0, %v5240
        %v5341 = vsub.f32 0.0, %v5241
        %v5342 = vsub.f32 0.0, %v5242
        %v5343 = vsub.f32 0.0, %v5243
        %v5344 = vsub.f32 0.0, %v5244
        %v5345 = vsub.f32 0.0, %v5245
        %v5346 = vsub.f32 0.0, %v5246
        %v5347 = vsub.f32 0.0, %v5247
        %v5348 = vsub.f32 0.0, %v5248
        %v5349 = vsub.f32 0.0, %v5249
        %v5350 = vsub.f32 0.0, %v5250
        %v5351 = vsub.f32 0.0, %v5251
        %v5352 = vsub.f32 0.0, %v5252
        %v5353 = vsub.f32 0.0, %v5253
        %v5354 = vsub.f32 0.0, %v5254
        %v5355 = vsub.f32 0.0, %v5255
        %v5356 = vsub.f32 0.0, %v5256
        %v5357 = vsub.f32 0.0, %v5257
        %v5358 = vsub.f32 0.0, %v5258
        %v5359 = vsub.f32 0.0, %v5259
        %v5360 = vsub.f32 0.0, %v5260
        %v5361 = vsub.f32 0.0, %v5261
        %v5362 = vsub.f32 0.0, %v5262
        %v5363 = vsub.f32 0.0, %v5263
        %v5364 = vsub.f32 0.0, %v5264
        %v5365 = vsub.f32 0.0, %v5265
        %v5366 = vsub.f32 0.0, %v5266
        %v5367 = vsub.f32 0.0, %v5267
        %v5368 = vsub.f32 0.0, %v5268
        %v5369 = vsub.f32 0.0, %v5269
        %v5370 = vsub.f32 0.0, %v5270
        %v5371 = vsub.f32 0.0, %v5271
        %v5372 = vsub.f32 0.0, %v5272
        %v5373 = vsub.f32 0.0, %v5273
        %v5374 = vsub.f32 0.0, %v5274
        %v5375 = vsub.f32 0.0, %v5275
        %v5376 = vsub.f32 0.0, %v5276
        %v5377 = vsub.f32 0.0, %v5277
        %v5378 = vsub.f32 0.0, %v5278
        %v5379 = vsub.f32 0.0, %v5279
        %v5380 = vmul.f32 %v5280, 1.442695
        %v5381 = vpow.pop %v5380
        %v5382 = vmul.f32 %v5281, 1.442695
        %v5383 = vpow.pop %v5382
        %v5384 = vmul.f32 %v5282, 1.442695
        %v5385 = vpow.pop %v5384
        %v5386 = vmul.f32 %v5283, 1.442695
        %v5387 = vpow.pop %v5386
        %v5388 = vmul.f32 %v5284, 1.442695
        %v5389 = vpow.pop %v5388
        %v5390 = vmul.f32 %v5285, 1.442695
        %v5391 = vpow.pop %v5390
        %v5392 = vmul.f32 %v5286, 1.442695
        %v5393 = vpow.pop %v5392
        %v5394 = vmul.f32 %v5287, 1.442695
        %v5395 = vpow.pop %v5394
        %v5396 = vmul.f32 %v5288, 1.442695
        %v5397 = vpow.pop %v5396
        %v5398 = vmul.f32 %v5289, 1.442695
        %v5399 = vpow.pop %v5398
        %v5400 = vmul.f32 %v5290, 1.442695
        %v5401 = vpow.pop %v5400
        %v5402 = vmul.f32 %v5291, 1.442695
        %v5403 = vpow.pop %v5402
        %v5404 = vmul.f32 %v5292, 1.442695
        %v5405 = vpow.pop %v5404
        %v5406 = vmul.f32 %v5293, 1.442695
        %v5407 = vpow.pop %v5406
        %v5408 = vmul.f32 %v5294, 1.442695
        %v5409 = vpow.pop %v5408
        %v5410 = vmul.f32 %v5295, 1.442695
        %v5411 = vpow.pop %v5410
        %v5412 = vmul.f32 %v5296, 1.442695
        %v5413 = vpow.pop %v5412
        %v5414 = vmul.f32 %v5297, 1.442695
        %v5415 = vpow.pop %v5414
        %v5416 = vmul.f32 %v5298, 1.442695
        %v5417 = vpow.pop %v5416
        %v5418 = vmul.f32 %v5299, 1.442695
        %v5419 = vpow.pop %v5418
        %v5420 = vmul.f32 %v5300, 1.442695
        %v5421 = vpow.pop %v5420
        %v5422 = vmul.f32 %v5301, 1.442695
        %v5423 = vpow.pop %v5422
        %v5424 = vmul.f32 %v5302, 1.442695
        %v5425 = vpow.pop %v5424
        %v5426 = vmul.f32 %v5303, 1.442695
        %v5427 = vpow.pop %v5426
        %v5428 = vmul.f32 %v5304, 1.442695
        %v5429 = vpow.pop %v5428
        %v5430 = vmul.f32 %v5305, 1.442695
        %v5431 = vpow.pop %v5430
        %v5432 = vmul.f32 %v5306, 1.442695
        %v5433 = vpow.pop %v5432
        %v5434 = vmul.f32 %v5307, 1.442695
        %v5435 = vpow.pop %v5434
        %v5436 = vmul.f32 %v5308, 1.442695
        %v5437 = vpow.pop %v5436
        %v5438 = vmul.f32 %v5309, 1.442695
        %v5439 = vpow.pop %v5438
        %v5440 = vmul.f32 %v5310, 1.442695
        %v5441 = vpow.pop %v5440
        %v5442 = vmul.f32 %v5311, 1.442695
        %v5443 = vpow.pop %v5442
        %v5444 = vmul.f32 %v5312, 1.442695
        %v5445 = vpow.pop %v5444
        %v5446 = vmul.f32 %v5313, 1.442695
        %v5447 = vpow.pop %v5446
        %v5448 = vmul.f32 %v5314, 1.442695
        %v5449 = vpow.pop %v5448
        %v5450 = vmul.f32 %v5315, 1.442695
        %v5451 = vpow.pop %v5450
        %v5452 = vmul.f32 %v5316, 1.442695
        %v5453 = vpow.pop %v5452
        %v5454 = vmul.f32 %v5317, 1.442695
        %v5455 = vpow.pop %v5454
        %v5456 = vmul.f32 %v5318, 1.442695
        %v5457 = vpow.pop %v5456
        %v5458 = vmul.f32 %v5319, 1.442695
        %v5459 = vpow.pop %v5458
        %v5460 = vmul.f32 %v5320, 1.442695
        %v5461 = vpow.pop %v5460
        %v5462 = vmul.f32 %v5321, 1.442695
        %v5463 = vpow.pop %v5462
        %v5464 = vmul.f32 %v5322, 1.442695
        %v5465 = vpow.pop %v5464
        %v5466 = vmul.f32 %v5323, 1.442695
        %v5467 = vpow.pop %v5466
        %v5468 = vmul.f32 %v5324, 1.442695
        %v5469 = vpow.pop %v5468
        %v5470 = vmul.f32 %v5325, 1.442695
        %v5471 = vpow.pop %v5470
        %v5472 = vmul.f32 %v5326, 1.442695
        %v5473 = vpow.pop %v5472
        %v5474 = vmul.f32 %v5327, 1.442695
        %v5475 = vpow.pop %v5474
        %v5476 = vmul.f32 %v5328, 1.442695
        %v5477 = vpow.pop %v5476
        %v5478 = vmul.f32 %v5329, 1.442695
        %v5479 = vpow.pop %v5478
        %v5480 = vmul.f32 %v5330, 1.442695
        %v5481 = vpow.pop %v5480
        %v5482 = vmul.f32 %v5331, 1.442695
        %v5483 = vpow.pop %v5482
        %v5484 = vmul.f32 %v5332, 1.442695
        %v5485 = vpow.pop %v5484
        %v5486 = vmul.f32 %v5333, 1.442695
        %v5487 = vpow.pop %v5486
        %v5488 = vmul.f32 %v5334, 1.442695
        %v5489 = vpow.pop %v5488
        %v5490 = vmul.f32 %v5335, 1.442695
        %v5491 = vpow.pop %v5490
        %v5492 = vmul.f32 %v5336, 1.442695
        %v5493 = vpow.pop %v5492
        %v5494 = vmul.f32 %v5337, 1.442695
        %v5495 = vpow.pop %v5494
        %v5496 = vmul.f32 %v5338, 1.442695
        %v5497 = vpow.pop %v5496
        %v5498 = vmul.f32 %v5339, 1.442695
        %v5499 = vpow.pop %v5498
        %v5500 = vmul.f32 %v5340, 1.442695
        %v5501 = vpow.pop %v5500
        %v5502 = vmul.f32 %v5341, 1.442695
        %v5503 = vpow.pop %v5502
        %v5504 = vmul.f32 %v5342, 1.442695
        %v5505 = vpow.pop %v5504
        %v5506 = vmul.f32 %v5343, 1.442695
        %v5507 = vpow.pop %v5506
        %v5508 = vmul.f32 %v5344, 1.442695
        %v5509 = vpow.pop %v5508
        %v5510 = vmul.f32 %v5345, 1.442695
        %v5511 = vpow.pop %v5510
        %v5512 = vmul.f32 %v5346, 1.442695
        %v5513 = vpow.pop %v5512
        %v5514 = vmul.f32 %v5347, 1.442695
        %v5515 = vpow.pop %v5514
        %v5516 = vmul.f32 %v5348, 1.442695
        %v5517 = vpow.pop %v5516
        %v5518 = vmul.f32 %v5349, 1.442695
        %v5519 = vpow.pop %v5518
        %v5520 = vmul.f32 %v5350, 1.442695
        %v5521 = vpow.pop %v5520
        %v5522 = vmul.f32 %v5351, 1.442695
        %v5523 = vpow.pop %v5522
        %v5524 = vmul.f32 %v5352, 1.442695
        %v5525 = vpow.pop %v5524
        %v5526 = vmul.f32 %v5353, 1.442695
        %v5527 = vpow.pop %v5526
        %v5528 = vmul.f32 %v5354, 1.442695
        %v5529 = vpow.pop %v5528
        %v5530 = vmul.f32 %v5355, 1.442695
        %v5531 = vpow.pop %v5530
        %v5532 = vmul.f32 %v5356, 1.442695
        %v5533 = vpow.pop %v5532
        %v5534 = vmul.f32 %v5357, 1.442695
        %v5535 = vpow.pop %v5534
        %v5536 = vmul.f32 %v5358, 1.442695
        %v5537 = vpow.pop %v5536
        %v5538 = vmul.f32 %v5359, 1.442695
        %v5539 = vpow.pop %v5538
        %v5540 = vmul.f32 %v5360, 1.442695
        %v5541 = vpow.pop %v5540
        %v5542 = vmul.f32 %v5361, 1.442695
        %v5543 = vpow.pop %v5542
        %v5544 = vmul.f32 %v5362, 1.442695
        %v5545 = vpow.pop %v5544
        %v5546 = vmul.f32 %v5363, 1.442695
        %v5547 = vpow.pop %v5546
        %v5548 = vmul.f32 %v5364, 1.442695
        %v5549 = vpow.pop %v5548
        %v5550 = vmul.f32 %v5365, 1.442695
        %v5551 = vpow.pop %v5550
        %v5552 = vmul.f32 %v5366, 1.442695
        %v5553 = vpow.pop %v5552
        %v5554 = vmul.f32 %v5367, 1.442695
        %v5555 = vpow.pop %v5554
        %v5556 = vmul.f32 %v5368, 1.442695
        %v5557 = vpow.pop %v5556
        %v5558 = vmul.f32 %v5369, 1.442695
        %v5559 = vpow.pop %v5558
        %v5560 = vmul.f32 %v5370, 1.442695
        %v5561 = vpow.pop %v5560
        %v5562 = vmul.f32 %v5371, 1.442695
        %v5563 = vpow.pop %v5562
        %v5564 = vmul.f32 %v5372, 1.442695
        %v5565 = vpow.pop %v5564
        %v5566 = vmul.f32 %v5373, 1.442695
        %v5567 = vpow.pop %v5566
        %v5568 = vmul.f32 %v5374, 1.442695
        %v5569 = vpow.pop %v5568
        %v5570 = vmul.f32 %v5375, 1.442695
        %v5571 = vpow.pop %v5570
        %v5572 = vmul.f32 %v5376, 1.442695
        %v5573 = vpow.pop %v5572
        %v5574 = vmul.f32 %v5377, 1.442695
        %v5575 = vpow.pop %v5574
        %v5576 = vmul.f32 %v5378, 1.442695
        %v5577 = vpow.pop %v5576
        %v5578 = vmul.f32 %v5379, 1.442695
        %v5579 = vpow.pop %v5578
        %v5580 = vmul.f32 %v5080, %v5381
        %v5581 = vmul.f32 %v5081, %v5383
        %v5582 = vmul.f32 %v5082, %v5385
        %v5583 = vmul.f32 %v5083, %v5387
        %v5584 = vmul.f32 %v5084, %v5389
        %v5585 = vmul.f32 %v5085, %v5391
        %v5586 = vmul.f32 %v5086, %v5393
        %v5587 = vmul.f32 %v5087, %v5395
        %v5588 = vmul.f32 %v5088, %v5397
        %v5589 = vmul.f32 %v5089, %v5399
        %v5590 = vmul.f32 %v5090, %v5401
        %v5591 = vmul.f32 %v5091, %v5403
        %v5592 = vmul.f32 %v5092, %v5405
        %v5593 = vmul.f32 %v5093, %v5407
        %v5594 = vmul.f32 %v5094, %v5409
        %v5595 = vmul.f32 %v5095, %v5411
        %v5596 = vmul.f32 %v5096, %v5413
        %v5597 = vmul.f32 %v5097, %v5415
        %v5598 = vmul.f32 %v5098, %v5417
        %v5599 = vmul.f32 %v5099, %v5419
        %v5600 = vmul.f32 %v5100, %v5421
        %v5601 = vmul.f32 %v5101, %v5423
        %v5602 = vmul.f32 %v5102, %v5425
        %v5603 = vmul.f32 %v5103, %v5427
        %v5604 = vmul.f32 %v5104, %v5429
        %v5605 = vmul.f32 %v5105, %v5431
        %v5606 = vmul.f32 %v5106, %v5433
        %v5607 = vmul.f32 %v5107, %v5435
        %v5608 = vmul.f32 %v5108, %v5437
        %v5609 = vmul.f32 %v5109, %v5439
        %v5610 = vmul.f32 %v5110, %v5441
        %v5611 = vmul.f32 %v5111, %v5443
        %v5612 = vmul.f32 %v5112, %v5445
        %v5613 = vmul.f32 %v5113, %v5447
        %v5614 = vmul.f32 %v5114, %v5449
        %v5615 = vmul.f32 %v5115, %v5451
        %v5616 = vmul.f32 %v5116, %v5453
        %v5617 = vmul.f32 %v5117, %v5455
        %v5618 = vmul.f32 %v5118, %v5457
        %v5619 = vmul.f32 %v5119, %v5459
        %v5620 = vmul.f32 %v5120, %v5461
        %v5621 = vmul.f32 %v5121, %v5463
        %v5622 = vmul.f32 %v5122, %v5465
        %v5623 = vmul.f32 %v5123, %v5467
        %v5624 = vmul.f32 %v5124, %v5469
        %v5625 = vmul.f32 %v5125, %v5471
        %v5626 = vmul.f32 %v5126, %v5473
        %v5627 = vmul.f32 %v5127, %v5475
        %v5628 = vmul.f32 %v5128, %v5477
        %v5629 = vmul.f32 %v5129, %v5479
        %v5630 = vmul.f32 %v5130, %v5481
        %v5631 = vmul.f32 %v5131, %v5483
        %v5632 = vmul.f32 %v5132, %v5485
        %v5633 = vmul.f32 %v5133, %v5487
        %v5634 = vmul.f32 %v5134, %v5489
        %v5635 = vmul.f32 %v5135, %v5491
        %v5636 = vmul.f32 %v5136, %v5493
        %v5637 = vmul.f32 %v5137, %v5495
        %v5638 = vmul.f32 %v5138, %v5497
        %v5639 = vmul.f32 %v5139, %v5499
        %v5640 = vmul.f32 %v5140, %v5501
        %v5641 = vmul.f32 %v5141, %v5503
        %v5642 = vmul.f32 %v5142, %v5505
        %v5643 = vmul.f32 %v5143, %v5507
        %v5644 = vmul.f32 %v5144, %v5509
        %v5645 = vmul.f32 %v5145, %v5511
        %v5646 = vmul.f32 %v5146, %v5513
        %v5647 = vmul.f32 %v5147, %v5515
        %v5648 = vmul.f32 %v5148, %v5517
        %v5649 = vmul.f32 %v5149, %v5519
        %v5650 = vmul.f32 %v5150, %v5521
        %v5651 = vmul.f32 %v5151, %v5523
        %v5652 = vmul.f32 %v5152, %v5525
        %v5653 = vmul.f32 %v5153, %v5527
        %v5654 = vmul.f32 %v5154, %v5529
        %v5655 = vmul.f32 %v5155, %v5531
        %v5656 = vmul.f32 %v5156, %v5533
        %v5657 = vmul.f32 %v5157, %v5535
        %v5658 = vmul.f32 %v5158, %v5537
        %v5659 = vmul.f32 %v5159, %v5539
        %v5660 = vmul.f32 %v5160, %v5541
        %v5661 = vmul.f32 %v5161, %v5543
        %v5662 = vmul.f32 %v5162, %v5545
        %v5663 = vmul.f32 %v5163, %v5547
        %v5664 = vmul.f32 %v5164, %v5549
        %v5665 = vmul.f32 %v5165, %v5551
        %v5666 = vmul.f32 %v5166, %v5553
        %v5667 = vmul.f32 %v5167, %v5555
        %v5668 = vmul.f32 %v5168, %v5557
        %v5669 = vmul.f32 %v5169, %v5559
        %v5670 = vmul.f32 %v5170, %v5561
        %v5671 = vmul.f32 %v5171, %v5563
        %v5672 = vmul.f32 %v5172, %v5565
        %v5673 = vmul.f32 %v5173, %v5567
        %v5674 = vmul.f32 %v5174, %v5569
        %v5675 = vmul.f32 %v5175, %v5571
        %v5676 = vmul.f32 %v5176, %v5573
        %v5677 = vmul.f32 %v5177, %v5575
        %v5678 = vmul.f32 %v5178, %v5577
        %v5679 = vmul.f32 %v5179, %v5579
        %v5680 = vsub.f32 1.0, %v5580
        %v5681 = vsub.f32 1.0, %v5581
        %v5682 = vsub.f32 1.0, %v5582
        %v5683 = vsub.f32 1.0, %v5583
        %v5684 = vsub.f32 1.0, %v5584
        %v5685 = vsub.f32 1.0, %v5585
        %v5686 = vsub.f32 1.0, %v5586
        %v5687 = vsub.f32 1.0, %v5587
        %v5688 = vsub.f32 1.0, %v5588
        %v5689 = vsub.f32 1.0, %v5589
        %v5690 = vsub.f32 1.0, %v5590
        %v5691 = vsub.f32 1.0, %v5591
        %v5692 = vsub.f32 1.0, %v5592
        %v5693 = vsub.f32 1.0, %v5593
        %v5694 = vsub.f32 1.0, %v5594
        %v5695 = vsub.f32 1.0, %v5595
        %v5696 = vsub.f32 1.0, %v5596
        %v5697 = vsub.f32 1.0, %v5597
        %v5698 = vsub.f32 1.0, %v5598
        %v5699 = vsub.f32 1.0, %v5599
        %v5700 = vsub.f32 1.0, %v5600
        %v5701 = vsub.f32 1.0, %v5601
        %v5702 = vsub.f32 1.0, %v5602
        %v5703 = vsub.f32 1.0, %v5603
        %v5704 = vsub.f32 1.0, %v5604
        %v5705 = vsub.f32 1.0, %v5605
        %v5706 = vsub.f32 1.0, %v5606
        %v5707 = vsub.f32 1.0, %v5607
        %v5708 = vsub.f32 1.0, %v5608
        %v5709 = vsub.f32 1.0, %v5609
        %v5710 = vsub.f32 1.0, %v5610
        %v5711 = vsub.f32 1.0, %v5611
        %v5712 = vsub.f32 1.0, %v5612
        %v5713 = vsub.f32 1.0, %v5613
        %v5714 = vsub.f32 1.0, %v5614
        %v5715 = vsub.f32 1.0, %v5615
        %v5716 = vsub.f32 1.0, %v5616
        %v5717 = vsub.f32 1.0, %v5617
        %v5718 = vsub.f32 1.0, %v5618
        %v5719 = vsub.f32 1.0, %v5619
        %v5720 = vsub.f32 1.0, %v5620
        %v5721 = vsub.f32 1.0, %v5621
        %v5722 = vsub.f32 1.0, %v5622
        %v5723 = vsub.f32 1.0, %v5623
        %v5724 = vsub.f32 1.0, %v5624
        %v5725 = vsub.f32 1.0, %v5625
        %v5726 = vsub.f32 1.0, %v5626
        %v5727 = vsub.f32 1.0, %v5627
        %v5728 = vsub.f32 1.0, %v5628
        %v5729 = vsub.f32 1.0, %v5629
        %v5730 = vsub.f32 1.0, %v5630
        %v5731 = vsub.f32 1.0, %v5631
        %v5732 = vsub.f32 1.0, %v5632
        %v5733 = vsub.f32 1.0, %v5633
        %v5734 = vsub.f32 1.0, %v5634
        %v5735 = vsub.f32 1.0, %v5635
        %v5736 = vsub.f32 1.0, %v5636
        %v5737 = vsub.f32 1.0, %v5637
        %v5738 = vsub.f32 1.0, %v5638
        %v5739 = vsub.f32 1.0, %v5639
        %v5740 = vsub.f32 1.0, %v5640
        %v5741 = vsub.f32 1.0, %v5641
        %v5742 = vsub.f32 1.0, %v5642
        %v5743 = vsub.f32 1.0, %v5643
        %v5744 = vsub.f32 1.0, %v5644
        %v5745 = vsub.f32 1.0, %v5645
        %v5746 = vsub.f32 1.0, %v5646
        %v5747 = vsub.f32 1.0, %v5647
        %v5748 = vsub.f32 1.0, %v5648
        %v5749 = vsub.f32 1.0, %v5649
        %v5750 = vsub.f32 1.0, %v5650
        %v5751 = vsub.f32 1.0, %v5651
        %v5752 = vsub.f32 1.0, %v5652
        %v5753 = vsub.f32 1.0, %v5653
        %v5754 = vsub.f32 1.0, %v5654
        %v5755 = vsub.f32 1.0, %v5655
        %v5756 = vsub.f32 1.0, %v5656
        %v5757 = vsub.f32 1.0, %v5657
        %v5758 = vsub.f32 1.0, %v5658
        %v5759 = vsub.f32 1.0, %v5659
        %v5760 = vsub.f32 1.0, %v5660
        %v5761 = vsub.f32 1.0, %v5661
        %v5762 = vsub.f32 1.0, %v5662
        %v5763 = vsub.f32 1.0, %v5663
        %v5764 = vsub.f32 1.0, %v5664
        %v5765 = vsub.f32 1.0, %v5665
        %v5766 = vsub.f32 1.0, %v5666
        %v5767 = vsub.f32 1.0, %v5667
        %v5768 = vsub.f32 1.0, %v5668
        %v5769 = vsub.f32 1.0, %v5669
        %v5770 = vsub.f32 1.0, %v5670
        %v5771 = vsub.f32 1.0, %v5671
        %v5772 = vsub.f32 1.0, %v5672
        %v5773 = vsub.f32 1.0, %v5673
        %v5774 = vsub.f32 1.0, %v5674
        %v5775 = vsub.f32 1.0, %v5675
        %v5776 = vsub.f32 1.0, %v5676
        %v5777 = vsub.f32 1.0, %v5677
        %v5778 = vsub.f32 1.0, %v5678
        %v5779 = vsub.f32 1.0, %v5679
        %vm5780 = vcmp.lt.f32.partialorder %v3780, 0.0
        %vm5781 = vcmp.lt.f32.partialorder %v3781, 0.0
        %vm5782 = vcmp.lt.f32.partialorder %v3782, 0.0
        %vm5783 = vcmp.lt.f32.partialorder %v3783, 0.0
        %vm5784 = vcmp.lt.f32.partialorder %v3784, 0.0
        %vm5785 = vcmp.lt.f32.partialorder %v3785, 0.0
        %vm5786 = vcmp.lt.f32.partialorder %v3786, 0.0
        %vm5787 = vcmp.lt.f32.partialorder %v3787, 0.0
        %vm5788 = vcmp.lt.f32.partialorder %v3788, 0.0
        %vm5789 = vcmp.lt.f32.partialorder %v3789, 0.0
        %vm5790 = vcmp.lt.f32.partialorder %v3790, 0.0
        %vm5791 = vcmp.lt.f32.partialorder %v3791, 0.0
        %vm5792 = vcmp.lt.f32.partialorder %v3792, 0.0
        %vm5793 = vcmp.lt.f32.partialorder %v3793, 0.0
        %vm5794 = vcmp.lt.f32.partialorder %v3794, 0.0
        %vm5795 = vcmp.lt.f32.partialorder %v3795, 0.0
        %vm5796 = vcmp.lt.f32.partialorder %v3796, 0.0
        %vm5797 = vcmp.lt.f32.partialorder %v3797, 0.0
        %vm5798 = vcmp.lt.f32.partialorder %v3798, 0.0
        %vm5799 = vcmp.lt.f32.partialorder %v3799, 0.0
        %vm5800 = vcmp.lt.f32.partialorder %v3800, 0.0
        %vm5801 = vcmp.lt.f32.partialorder %v3801, 0.0
        %vm5802 = vcmp.lt.f32.partialorder %v3802, 0.0
        %vm5803 = vcmp.lt.f32.partialorder %v3803, 0.0
        %vm5804 = vcmp.lt.f32.partialorder %v3804, 0.0
        %vm5805 = vcmp.lt.f32.partialorder %v3805, 0.0
        %vm5806 = vcmp.lt.f32.partialorder %v3806, 0.0
        %vm5807 = vcmp.lt.f32.partialorder %v3807, 0.0
        %vm5808 = vcmp.lt.f32.partialorder %v3808, 0.0
        %vm5809 = vcmp.lt.f32.partialorder %v3809, 0.0
        %vm5810 = vcmp.lt.f32.partialorder %v3810, 0.0
        %vm5811 = vcmp.lt.f32.partialorder %v3811, 0.0
        %vm5812 = vcmp.lt.f32.partialorder %v3812, 0.0
        %vm5813 = vcmp.lt.f32.partialorder %v3813, 0.0
        %vm5814 = vcmp.lt.f32.partialorder %v3814, 0.0
        %vm5815 = vcmp.lt.f32.partialorder %v3815, 0.0
        %vm5816 = vcmp.lt.f32.partialorder %v3816, 0.0
        %vm5817 = vcmp.lt.f32.partialorder %v3817, 0.0
        %vm5818 = vcmp.lt.f32.partialorder %v3818, 0.0
        %vm5819 = vcmp.lt.f32.partialorder %v3819, 0.0
        %vm5820 = vcmp.lt.f32.partialorder %v3820, 0.0
        %vm5821 = vcmp.lt.f32.partialorder %v3821, 0.0
        %vm5822 = vcmp.lt.f32.partialorder %v3822, 0.0
        %vm5823 = vcmp.lt.f32.partialorder %v3823, 0.0
        %vm5824 = vcmp.lt.f32.partialorder %v3824, 0.0
        %vm5825 = vcmp.lt.f32.partialorder %v3825, 0.0
        %vm5826 = vcmp.lt.f32.partialorder %v3826, 0.0
        %vm5827 = vcmp.lt.f32.partialorder %v3827, 0.0
        %vm5828 = vcmp.lt.f32.partialorder %v3828, 0.0
        %vm5829 = vcmp.lt.f32.partialorder %v3829, 0.0
        %vm5830 = vcmp.lt.f32.partialorder %v3830, 0.0
        %vm5831 = vcmp.lt.f32.partialorder %v3831, 0.0
        %vm5832 = vcmp.lt.f32.partialorder %v3832, 0.0
        %vm5833 = vcmp.lt.f32.partialorder %v3833, 0.0
        %vm5834 = vcmp.lt.f32.partialorder %v3834, 0.0
        %vm5835 = vcmp.lt.f32.partialorder %v3835, 0.0
        %vm5836 = vcmp.lt.f32.partialorder %v3836, 0.0
        %vm5837 = vcmp.lt.f32.partialorder %v3837, 0.0
        %vm5838 = vcmp.lt.f32.partialorder %v3838, 0.0
        %vm5839 = vcmp.lt.f32.partialorder %v3839, 0.0
        %vm5840 = vcmp.lt.f32.partialorder %v3840, 0.0
        %vm5841 = vcmp.lt.f32.partialorder %v3841, 0.0
        %vm5842 = vcmp.lt.f32.partialorder %v3842, 0.0
        %vm5843 = vcmp.lt.f32.partialorder %v3843, 0.0
        %vm5844 = vcmp.lt.f32.partialorder %v3844, 0.0
        %vm5845 = vcmp.lt.f32.partialorder %v3845, 0.0
        %vm5846 = vcmp.lt.f32.partialorder %v3846, 0.0
        %vm5847 = vcmp.lt.f32.partialorder %v3847, 0.0
        %vm5848 = vcmp.lt.f32.partialorder %v3848, 0.0
        %vm5849 = vcmp.lt.f32.partialorder %v3849, 0.0
        %vm5850 = vcmp.lt.f32.partialorder %v3850, 0.0
        %vm5851 = vcmp.lt.f32.partialorder %v3851, 0.0
        %vm5852 = vcmp.lt.f32.partialorder %v3852, 0.0
        %vm5853 = vcmp.lt.f32.partialorder %v3853, 0.0
        %vm5854 = vcmp.lt.f32.partialorder %v3854, 0.0
        %vm5855 = vcmp.lt.f32.partialorder %v3855, 0.0
        %vm5856 = vcmp.lt.f32.partialorder %v3856, 0.0
        %vm5857 = vcmp.lt.f32.partialorder %v3857, 0.0
        %vm5858 = vcmp.lt.f32.partialorder %v3858, 0.0
        %vm5859 = vcmp.lt.f32.partialorder %v3859, 0.0
        %vm5860 = vcmp.lt.f32.partialorder %v3860, 0.0
        %vm5861 = vcmp.lt.f32.partialorder %v3861, 0.0
        %vm5862 = vcmp.lt.f32.partialorder %v3862, 0.0
        %vm5863 = vcmp.lt.f32.partialorder %v3863, 0.0
        %vm5864 = vcmp.lt.f32.partialorder %v3864, 0.0
        %vm5865 = vcmp.lt.f32.partialorder %v3865, 0.0
        %vm5866 = vcmp.lt.f32.partialorder %v3866, 0.0
        %vm5867 = vcmp.lt.f32.partialorder %v3867, 0.0
        %vm5868 = vcmp.lt.f32.partialorder %v3868, 0.0
        %vm5869 = vcmp.lt.f32.partialorder %v3869, 0.0
        %vm5870 = vcmp.lt.f32.partialorder %v3870, 0.0
        %vm5871 = vcmp.lt.f32.partialorder %v3871, 0.0
        %vm5872 = vcmp.lt.f32.partialorder %v3872, 0.0
        %vm5873 = vcmp.lt.f32.partialorder %v3873, 0.0
        %vm5874 = vcmp.lt.f32.partialorder %v3874, 0.0
        %vm5875 = vcmp.lt.f32.partialorder %v3875, 0.0
        %vm5876 = vcmp.lt.f32.partialorder %v3876, 0.0
        %vm5877 = vcmp.lt.f32.partialorder %v3877, 0.0
        %vm5878 = vcmp.lt.f32.partialorder %v3878, 0.0
        %vm5879 = vcmp.lt.f32.partialorder %v3879, 0.0
        %v5880 = vsub.f32 0.0, %v5680
        %v5881 = vsub.f32 0.0, %v5681
        %v5882 = vsub.f32 0.0, %v5682
        %v5883 = vsub.f32 0.0, %v5683
        %v5884 = vsub.f32 0.0, %v5684
        %v5885 = vsub.f32 0.0, %v5685
        %v5886 = vsub.f32 0.0, %v5686
        %v5887 = vsub.f32 0.0, %v5687
        %v5888 = vsub.f32 0.0, %v5688
        %v5889 = vsub.f32 0.0, %v5689
        %v5890 = vsub.f32 0.0, %v5690
        %v5891 = vsub.f32 0.0, %v5691
        %v5892 = vsub.f32 0.0, %v5692
        %v5893 = vsub.f32 0.0, %v5693
        %v5894 = vsub.f32 0.0, %v5694
        %v5895 = vsub.f32 0.0, %v5695
        %v5896 = vsub.f32 0.0, %v5696
        %v5897 = vsub.f32 0.0, %v5697
        %v5898 = vsub.f32 0.0, %v5698
        %v5899 = vsub.f32 0.0, %v5699
        %v5900 = vsub.f32 0.0, %v5700
        %v5901 = vsub.f32 0.0, %v5701
        %v5902 = vsub.f32 0.0, %v5702
        %v5903 = vsub.f32 0.0, %v5703
        %v5904 = vsub.f32 0.0, %v5704
        %v5905 = vsub.f32 0.0, %v5705
        %v5906 = vsub.f32 0.0, %v5706
        %v5907 = vsub.f32 0.0, %v5707
        %v5908 = vsub.f32 0.0, %v5708
        %v5909 = vsub.f32 0.0, %v5709
        %v5910 = vsub.f32 0.0, %v5710
        %v5911 = vsub.f32 0.0, %v5711
        %v5912 = vsub.f32 0.0, %v5712
        %v5913 = vsub.f32 0.0, %v5713
        %v5914 = vsub.f32 0.0, %v5714
        %v5915 = vsub.f32 0.0, %v5715
        %v5916 = vsub.f32 0.0, %v5716
        %v5917 = vsub.f32 0.0, %v5717
        %v5918 = vsub.f32 0.0, %v5718
        %v5919 = vsub.f32 0.0, %v5719
        %v5920 = vsub.f32 0.0, %v5720
        %v5921 = vsub.f32 0.0, %v5721
        %v5922 = vsub.f32 0.0, %v5722
        %v5923 = vsub.f32 0.0, %v5723
        %v5924 = vsub.f32 0.0, %v5724
        %v5925 = vsub.f32 0.0, %v5725
        %v5926 = vsub.f32 0.0, %v5726
        %v5927 = vsub.f32 0.0, %v5727
        %v5928 = vsub.f32 0.0, %v5728
        %v5929 = vsub.f32 0.0, %v5729
        %v5930 = vsub.f32 0.0, %v5730
        %v5931 = vsub.f32 0.0, %v5731
        %v5932 = vsub.f32 0.0, %v5732
        %v5933 = vsub.f32 0.0, %v5733
        %v5934 = vsub.f32 0.0, %v5734
        %v5935 = vsub.f32 0.0, %v5735
        %v5936 = vsub.f32 0.0, %v5736
        %v5937 = vsub.f32 0.0, %v5737
        %v5938 = vsub.f32 0.0, %v5738
        %v5939 = vsub.f32 0.0, %v5739
        %v5940 = vsub.f32 0.0, %v5740
        %v5941 = vsub.f32 0.0, %v5741
        %v5942 = vsub.f32 0.0, %v5742
        %v5943 = vsub.f32 0.0, %v5743
        %v5944 = vsub.f32 0.0, %v5744
        %v5945 = vsub.f32 0.0, %v5745
        %v5946 = vsub.f32 0.0, %v5746
        %v5947 = vsub.f32 0.0, %v5747
        %v5948 = vsub.f32 0.0, %v5748
        %v5949 = vsub.f32 0.0, %v5749
        %v5950 = vsub.f32 0.0, %v5750
        %v5951 = vsub.f32 0.0, %v5751
        %v5952 = vsub.f32 0.0, %v5752
        %v5953 = vsub.f32 0.0, %v5753
        %v5954 = vsub.f32 0.0, %v5754
        %v5955 = vsub.f32 0.0, %v5755
        %v5956 = vsub.f32 0.0, %v5756
        %v5957 = vsub.f32 0.0, %v5757
        %v5958 = vsub.f32 0.0, %v5758
        %v5959 = vsub.f32 0.0, %v5759
        %v5960 = vsub.f32 0.0, %v5760
        %v5961 = vsub.f32 0.0, %v5761
        %v5962 = vsub.f32 0.0, %v5762
        %v5963 = vsub.f32 0.0, %v5763
        %v5964 = vsub.f32 0.0, %v5764
        %v5965 = vsub.f32 0.0, %v5765
        %v5966 = vsub.f32 0.0, %v5766
        %v5967 = vsub.f32 0.0, %v5767
        %v5968 = vsub.f32 0.0, %v5768
        %v5969 = vsub.f32 0.0, %v5769
        %v5970 = vsub.f32 0.0, %v5770
        %v5971 = vsub.f32 0.0, %v5771
        %v5972 = vsub.f32 0.0, %v5772
        %v5973 = vsub.f32 0.0, %v5773
        %v5974 = vsub.f32 0.0, %v5774
        %v5975 = vsub.f32 0.0, %v5775
        %v5976 = vsub.f32 0.0, %v5776
        %v5977 = vsub.f32 0.0, %v5777
        %v5978 = vsub.f32 0.0, %v5778
        %v5979 = vsub.f32 0.0, %v5779
        %v5980 = vsel %vm5780, %v5880, %v5680
        %v5981 = vsel %vm5781, %v5881, %v5681
        %v5982 = vsel %vm5782, %v5882, %v5682
        %v5983 = vsel %vm5783, %v5883, %v5683
        %v5984 = vsel %vm5784, %v5884, %v5684
        %v5985 = vsel %vm5785, %v5885, %v5685
        %v5986 = vsel %vm5786, %v5886, %v5686
        %v5987 = vsel %vm5787, %v5887, %v5687
        %v5988 = vsel %vm5788, %v5888, %v5688
        %v5989 = vsel %vm5789, %v5889, %v5689
        %v5990 = vsel %vm5790, %v5890, %v5690
        %v5991 = vsel %vm5791, %v5891, %v5691
        %v5992 = vsel %vm5792, %v5892, %v5692
        %v5993 = vsel %vm5793, %v5893, %v5693
        %v5994 = vsel %vm5794, %v5894, %v5694
        %v5995 = vsel %vm5795, %v5895, %v5695
        %v5996 = vsel %vm5796, %v5896, %v5696
        %v5997 = vsel %vm5797, %v5897, %v5697
        %v5998 = vsel %vm5798, %v5898, %v5698
        %v5999 = vsel %vm5799, %v5899, %v5699
        %v6000 = vsel %vm5800, %v5900, %v5700
        %v6001 = vsel %vm5801, %v5901, %v5701
        %v6002 = vsel %vm5802, %v5902, %v5702
        %v6003 = vsel %vm5803, %v5903, %v5703
        %v6004 = vsel %vm5804, %v5904, %v5704
        %v6005 = vsel %vm5805, %v5905, %v5705
        %v6006 = vsel %vm5806, %v5906, %v5706
        %v6007 = vsel %vm5807, %v5907, %v5707
        %v6008 = vsel %vm5808, %v5908, %v5708
        %v6009 = vsel %vm5809, %v5909, %v5709
        %v6010 = vsel %vm5810, %v5910, %v5710
        %v6011 = vsel %vm5811, %v5911, %v5711
        %v6012 = vsel %vm5812, %v5912, %v5712
        %v6013 = vsel %vm5813, %v5913, %v5713
        %v6014 = vsel %vm5814, %v5914, %v5714
        %v6015 = vsel %vm5815, %v5915, %v5715
        %v6016 = vsel %vm5816, %v5916, %v5716
        %v6017 = vsel %vm5817, %v5917, %v5717
        %v6018 = vsel %vm5818, %v5918, %v5718
        %v6019 = vsel %vm5819, %v5919, %v5719
        %v6020 = vsel %vm5820, %v5920, %v5720
        %v6021 = vsel %vm5821, %v5921, %v5721
        %v6022 = vsel %vm5822, %v5922, %v5722
        %v6023 = vsel %vm5823, %v5923, %v5723
        %v6024 = vsel %vm5824, %v5924, %v5724
        %v6025 = vsel %vm5825, %v5925, %v5725
        %v6026 = vsel %vm5826, %v5926, %v5726
        %v6027 = vsel %vm5827, %v5927, %v5727
        %v6028 = vsel %vm5828, %v5928, %v5728
        %v6029 = vsel %vm5829, %v5929, %v5729
        %v6030 = vsel %vm5830, %v5930, %v5730
        %v6031 = vsel %vm5831, %v5931, %v5731
        %v6032 = vsel %vm5832, %v5932, %v5732
        %v6033 = vsel %vm5833, %v5933, %v5733
        %v6034 = vsel %vm5834, %v5934, %v5734
        %v6035 = vsel %vm5835, %v5935, %v5735
        %v6036 = vsel %vm5836, %v5936, %v5736
        %v6037 = vsel %vm5837, %v5937, %v5737
        %v6038 = vsel %vm5838, %v5938, %v5738
        %v6039 = vsel %vm5839, %v5939, %v5739
        %v6040 = vsel %vm5840, %v5940, %v5740
        %v6041 = vsel %vm5841, %v5941, %v5741
        %v6042 = vsel %vm5842, %v5942, %v5742
        %v6043 = vsel %vm5843, %v5943, %v5743
        %v6044 = vsel %vm5844, %v5944, %v5744
        %v6045 = vsel %vm5845, %v5945, %v5745
        %v6046 = vsel %vm5846, %v5946, %v5746
        %v6047 = vsel %vm5847, %v5947, %v5747
        %v6048 = vsel %vm5848, %v5948, %v5748
        %v6049 = vsel %vm5849, %v5949, %v5749
        %v6050 = vsel %vm5850, %v5950, %v5750
        %v6051 = vsel %vm5851, %v5951, %v5751
        %v6052 = vsel %vm5852, %v5952, %v5752
        %v6053 = vsel %vm5853, %v5953, %v5753
        %v6054 = vsel %vm5854, %v5954, %v5754
        %v6055 = vsel %vm5855, %v5955, %v5755
        %v6056 = vsel %vm5856, %v5956, %v5756
        %v6057 = vsel %vm5857, %v5957, %v5757
        %v6058 = vsel %vm5858, %v5958, %v5758
        %v6059 = vsel %vm5859, %v5959, %v5759
        %v6060 = vsel %vm5860, %v5960, %v5760
        %v6061 = vsel %vm5861, %v5961, %v5761
        %v6062 = vsel %vm5862, %v5962, %v5762
        %v6063 = vsel %vm5863, %v5963, %v5763
        %v6064 = vsel %vm5864, %v5964, %v5764
        %v6065 = vsel %vm5865, %v5965, %v5765
        %v6066 = vsel %vm5866, %v5966, %v5766
        %v6067 = vsel %vm5867, %v5967, %v5767
        %v6068 = vsel %vm5868, %v5968, %v5768
        %v6069 = vsel %vm5869, %v5969, %v5769
        %v6070 = vsel %vm5870, %v5970, %v5770
        %v6071 = vsel %vm5871, %v5971, %v5771
        %v6072 = vsel %vm5872, %v5972, %v5772
        %v6073 = vsel %vm5873, %v5973, %v5773
        %v6074 = vsel %vm5874, %v5974, %v5774
        %v6075 = vsel %vm5875, %v5975, %v5775
        %v6076 = vsel %vm5876, %v5976, %v5776
        %v6077 = vsel %vm5877, %v5977, %v5777
        %v6078 = vsel %vm5878, %v5978, %v5778
        %v6079 = vsel %vm5879, %v5979, %v5779
        %v6080 = vmul.f32 %v2841, 0.5
        %v6081 = vmul.f32 %v3133, 0.5
        %v6082 = vmul.f32 %v3425, 0.5
        %v6083 = vmul.f32 %v3717, 0.5
        %v6084 = vmul.f32 %v2843, 0.5
        %v6085 = vmul.f32 %v3135, 0.5
        %v6086 = vmul.f32 %v3427, 0.5
        %v6087 = vmul.f32 %v3719, 0.5
        %v6088 = vmul.f32 %v2846, 0.5
        %v6089 = vmul.f32 %v3138, 0.5
        %v6090 = vmul.f32 %v3430, 0.5
        %v6091 = vmul.f32 %v3722, 0.5
        %v6092 = vmul.f32 %v2848, 0.5
        %v6093 = vmul.f32 %v3140, 0.5
        %v6094 = vmul.f32 %v3432, 0.5
        %v6095 = vmul.f32 %v3724, 0.5
        %v6096 = vmul.f32 %v2851, 0.5
        %v6097 = vmul.f32 %v3143, 0.5
        %v6098 = vmul.f32 %v3435, 0.5
        %v6099 = vmul.f32 %v3727, 0.5
        %v6100 = vmul.f32 %v2853, 0.5
        %v6101 = vmul.f32 %v3145, 0.5
        %v6102 = vmul.f32 %v3437, 0.5
        %v6103 = vmul.f32 %v3729, 0.5
        %v6104 = vmul.f32 %v2856, 0.5
        %v6105 = vmul.f32 %v3148, 0.5
        %v6106 = vmul.f32 %v3440, 0.5
        %v6107 = vmul.f32 %v3732, 0.5
        %v6108 = vmul.f32 %v2858, 0.5
        %v6109 = vmul.f32 %v3150, 0.5
        %v6110 = vmul.f32 %v3442, 0.5
        %v6111 = vmul.f32 %v3734, 0.5
        %v6112 = vmul.f32 %v2861, 0.5
        %v6113 = vmul.f32 %v3153, 0.5
        %v6114 = vmul.f32 %v3445, 0.5
        %v6115 = vmul.f32 %v3737, 0.5
        %v6116 = vmul.f32 %v2863, 0.5
        %v6117 = vmul.f32 %v3155, 0.5
        %v6118 = vmul.f32 %v3447, 0.5
        %v6119 = vmul.f32 %v3739, 0.5
        %v6120 = vmul.f32 %v2866, 0.5
        %v6121 = vmul.f32 %v3158, 0.5
        %v6122 = vmul.f32 %v3450, 0.5
        %v6123 = vmul.f32 %v3742, 0.5
        %v6124 = vmul.f32 %v2868, 0.5
        %v6125 = vmul.f32 %v3160, 0.5
        %v6126 = vmul.f32 %v3452, 0.5
        %v6127 = vmul.f32 %v3744, 0.5
        %v6128 = vmul.f32 %v2871, 0.5
        %v6129 = vmul.f32 %v3163, 0.5
        %v6130 = vmul.f32 %v3455, 0.5
        %v6131 = vmul.f32 %v3747, 0.5
        %v6132 = vmul.f32 %v2873, 0.5
        %v6133 = vmul.f32 %v3165, 0.5
        %v6134 = vmul.f32 %v3457, 0.5
        %v6135 = vmul.f32 %v3749, 0.5
        %v6136 = vmul.f32 %v2876, 0.5
        %v6137 = vmul.f32 %v3168, 0.5
        %v6138 = vmul.f32 %v3460, 0.5
        %v6139 = vmul.f32 %v3752, 0.5
        %v6140 = vmul.f32 %v2878, 0.5
        %v6141 = vmul.f32 %v3170, 0.5
        %v6142 = vmul.f32 %v3462, 0.5
        %v6143 = vmul.f32 %v3754, 0.5
        %v6144 = vmul.f32 %v2881, 0.5
        %v6145 = vmul.f32 %v3173, 0.5
        %v6146 = vmul.f32 %v3465, 0.5
        %v6147 = vmul.f32 %v3757, 0.5
        %v6148 = vmul.f32 %v2883, 0.5
        %v6149 = vmul.f32 %v3175, 0.5
        %v6150 = vmul.f32 %v3467, 0.5
        %v6151 = vmul.f32 %v3759, 0.5
        %v6152 = vmul.f32 %v2886, 0.5
        %v6153 = vmul.f32 %v3178, 0.5
        %v6154 = vmul.f32 %v3470, 0.5
        %v6155 = vmul.f32 %v3762, 0.5
        %v6156 = vmul.f32 %v2888, 0.5
        %v6157 = vmul.f32 %v3180, 0.5
        %v6158 = vmul.f32 %v3472, 0.5
        %v6159 = vmul.f32 %v3764, 0.5
        %v6160 = vmul.f32 %v2891, 0.5
        %v6161 = vmul.f32 %v3183, 0.5
        %v6162 = vmul.f32 %v3475, 0.5
        %v6163 = vmul.f32 %v3767, 0.5
        %v6164 = vmul.f32 %v2893, 0.5
        %v6165 = vmul.f32 %v3185, 0.5
        %v6166 = vmul.f32 %v3477, 0.5
        %v6167 = vmul.f32 %v3769, 0.5
        %v6168 = vmul.f32 %v2896, 0.5
        %v6169 = vmul.f32 %v3188, 0.5
        %v6170 = vmul.f32 %v3480, 0.5
        %v6171 = vmul.f32 %v3772, 0.5
        %v6172 = vmul.f32 %v2898, 0.5
        %v6173 = vmul.f32 %v3190, 0.5
        %v6174 = vmul.f32 %v3482, 0.5
        %v6175 = vmul.f32 %v3774, 0.5
        %v6176 = vmul.f32 %v2901, 0.5
        %v6177 = vmul.f32 %v3193, 0.5
        %v6178 = vmul.f32 %v3485, 0.5
        %v6179 = vmul.f32 %v3777, 0.5
        %v6180 = vadd.f32 %v5980, 1.0
        %v6181 = vadd.f32 %v5981, 1.0
        %v6182 = vadd.f32 %v5982, 1.0
        %v6183 = vadd.f32 %v5983, 1.0
        %v6184 = vadd.f32 %v5984, 1.0
        %v6185 = vadd.f32 %v5985, 1.0
        %v6186 = vadd.f32 %v5986, 1.0
        %v6187 = vadd.f32 %v5987, 1.0
        %v6188 = vadd.f32 %v5988, 1.0
        %v6189 = vadd.f32 %v5989, 1.0
        %v6190 = vadd.f32 %v5990, 1.0
        %v6191 = vadd.f32 %v5991, 1.0
        %v6192 = vadd.f32 %v5992, 1.0
        %v6193 = vadd.f32 %v5993, 1.0
        %v6194 = vadd.f32 %v5994, 1.0
        %v6195 = vadd.f32 %v5995, 1.0
        %v6196 = vadd.f32 %v5996, 1.0
        %v6197 = vadd.f32 %v5997, 1.0
        %v6198 = vadd.f32 %v5998, 1.0
        %v6199 = vadd.f32 %v5999, 1.0
        %v6200 = vadd.f32 %v6000, 1.0
        %v6201 = vadd.f32 %v6001, 1.0
        %v6202 = vadd.f32 %v6002, 1.0
        %v6203 = vadd.f32 %v6003, 1.0
        %v6204 = vadd.f32 %v6004, 1.0
        %v6205 = vadd.f32 %v6005, 1.0
        %v6206 = vadd.f32 %v6006, 1.0
        %v6207 = vadd.f32 %v6007, 1.0
        %v6208 = vadd.f32 %v6008, 1.0
        %v6209 = vadd.f32 %v6009, 1.0
        %v6210 = vadd.f32 %v6010, 1.0
        %v6211 = vadd.f32 %v6011, 1.0
        %v6212 = vadd.f32 %v6012, 1.0
        %v6213 = vadd.f32 %v6013, 1.0
        %v6214 = vadd.f32 %v6014, 1.0
        %v6215 = vadd.f32 %v6015, 1.0
        %v6216 = vadd.f32 %v6016, 1.0
        %v6217 = vadd.f32 %v6017, 1.0
        %v6218 = vadd.f32 %v6018, 1.0
        %v6219 = vadd.f32 %v6019, 1.0
        %v6220 = vadd.f32 %v6020, 1.0
        %v6221 = vadd.f32 %v6021, 1.0
        %v6222 = vadd.f32 %v6022, 1.0
        %v6223 = vadd.f32 %v6023, 1.0
        %v6224 = vadd.f32 %v6024, 1.0
        %v6225 = vadd.f32 %v6025, 1.0
        %v6226 = vadd.f32 %v6026, 1.0
        %v6227 = vadd.f32 %v6027, 1.0
        %v6228 = vadd.f32 %v6028, 1.0
        %v6229 = vadd.f32 %v6029, 1.0
        %v6230 = vadd.f32 %v6030, 1.0
        %v6231 = vadd.f32 %v6031, 1.0
        %v6232 = vadd.f32 %v6032, 1.0
        %v6233 = vadd.f32 %v6033, 1.0
        %v6234 = vadd.f32 %v6034, 1.0
        %v6235 = vadd.f32 %v6035, 1.0
        %v6236 = vadd.f32 %v6036, 1.0
        %v6237 = vadd.f32 %v6037, 1.0
        %v6238 = vadd.f32 %v6038, 1.0
        %v6239 = vadd.f32 %v6039, 1.0
        %v6240 = vadd.f32 %v6040, 1.0
        %v6241 = vadd.f32 %v6041, 1.0
        %v6242 = vadd.f32 %v6042, 1.0
        %v6243 = vadd.f32 %v6043, 1.0
        %v6244 = vadd.f32 %v6044, 1.0
        %v6245 = vadd.f32 %v6045, 1.0
        %v6246 = vadd.f32 %v6046, 1.0
        %v6247 = vadd.f32 %v6047, 1.0
        %v6248 = vadd.f32 %v6048, 1.0
        %v6249 = vadd.f32 %v6049, 1.0
        %v6250 = vadd.f32 %v6050, 1.0
        %v6251 = vadd.f32 %v6051, 1.0
        %v6252 = vadd.f32 %v6052, 1.0
        %v6253 = vadd.f32 %v6053, 1.0
        %v6254 = vadd.f32 %v6054, 1.0
        %v6255 = vadd.f32 %v6055, 1.0
        %v6256 = vadd.f32 %v6056, 1.0
        %v6257 = vadd.f32 %v6057, 1.0
        %v6258 = vadd.f32 %v6058, 1.0
        %v6259 = vadd.f32 %v6059, 1.0
        %v6260 = vadd.f32 %v6060, 1.0
        %v6261 = vadd.f32 %v6061, 1.0
        %v6262 = vadd.f32 %v6062, 1.0
        %v6263 = vadd.f32 %v6063, 1.0
        %v6264 = vadd.f32 %v6064, 1.0
        %v6265 = vadd.f32 %v6065, 1.0
        %v6266 = vadd.f32 %v6066, 1.0
        %v6267 = vadd.f32 %v6067, 1.0
        %v6268 = vadd.f32 %v6068, 1.0
        %v6269 = vadd.f32 %v6069, 1.0
        %v6270 = vadd.f32 %v6070, 1.0
        %v6271 = vadd.f32 %v6071, 1.0
        %v6272 = vadd.f32 %v6072, 1.0
        %v6273 = vadd.f32 %v6073, 1.0
        %v6274 = vadd.f32 %v6074, 1.0
        %v6275 = vadd.f32 %v6075, 1.0
        %v6276 = vadd.f32 %v6076, 1.0
        %v6277 = vadd.f32 %v6077, 1.0
        %v6278 = vadd.f32 %v6078, 1.0
        %v6279 = vadd.f32 %v6079, 1.0
        %v6280 = vmul.f32 %v6080, %v6180
        %v6281 = vmul.f32 %v6081, %v6181
        %v6282 = vmul.f32 %v6082, %v6182
        %v6283 = vmul.f32 %v6083, %v6183
        %v6284 = vmul.f32 %v6084, %v6184
        %v6285 = vmul.f32 %v6085, %v6185
        %v6286 = vmul.f32 %v6086, %v6186
        %v6287 = vmul.f32 %v6087, %v6187
        %v6288 = vmul.f32 %v6088, %v6188
        %v6289 = vmul.f32 %v6089, %v6189
        %v6290 = vmul.f32 %v6090, %v6190
        %v6291 = vmul.f32 %v6091, %v6191
        %v6292 = vmul.f32 %v6092, %v6192
        %v6293 = vmul.f32 %v6093, %v6193
        %v6294 = vmul.f32 %v6094, %v6194
        %v6295 = vmul.f32 %v6095, %v6195
        %v6296 = vmul.f32 %v6096, %v6196
        %v6297 = vmul.f32 %v6097, %v6197
        %v6298 = vmul.f32 %v6098, %v6198
        %v6299 = vmul.f32 %v6099, %v6199
        %v6300 = vmul.f32 %v6100, %v6200
        %v6301 = vmul.f32 %v6101, %v6201
        %v6302 = vmul.f32 %v6102, %v6202
        %v6303 = vmul.f32 %v6103, %v6203
        %v6304 = vmul.f32 %v6104, %v6204
        %v6305 = vmul.f32 %v6105, %v6205
        %v6306 = vmul.f32 %v6106, %v6206
        %v6307 = vmul.f32 %v6107, %v6207
        %v6308 = vmul.f32 %v6108, %v6208
        %v6309 = vmul.f32 %v6109, %v6209
        %v6310 = vmul.f32 %v6110, %v6210
        %v6311 = vmul.f32 %v6111, %v6211
        %v6312 = vmul.f32 %v6112, %v6212
        %v6313 = vmul.f32 %v6113, %v6213
        %v6314 = vmul.f32 %v6114, %v6214
        %v6315 = vmul.f32 %v6115, %v6215
        %v6316 = vmul.f32 %v6116, %v6216
        %v6317 = vmul.f32 %v6117, %v6217
        %v6318 = vmul.f32 %v6118, %v6218
        %v6319 = vmul.f32 %v6119, %v6219
        %v6320 = vmul.f32 %v6120, %v6220
        %v6321 = vmul.f32 %v6121, %v6221
        %v6322 = vmul.f32 %v6122, %v6222
        %v6323 = vmul.f32 %v6123, %v6223
        %v6324 = vmul.f32 %v6124, %v6224
        %v6325 = vmul.f32 %v6125, %v6225
        %v6326 = vmul.f32 %v6126, %v6226
        %v6327 = vmul.f32 %v6127, %v6227
        %v6328 = vmul.f32 %v6128, %v6228
        %v6329 = vmul.f32 %v6129, %v6229
        %v6330 = vmul.f32 %v6130, %v6230
        %v6331 = vmul.f32 %v6131, %v6231
        %v6332 = vmul.f32 %v6132, %v6232
        %v6333 = vmul.f32 %v6133, %v6233
        %v6334 = vmul.f32 %v6134, %v6234
        %v6335 = vmul.f32 %v6135, %v6235
        %v6336 = vmul.f32 %v6136, %v6236
        %v6337 = vmul.f32 %v6137, %v6237
        %v6338 = vmul.f32 %v6138, %v6238
        %v6339 = vmul.f32 %v6139, %v6239
        %v6340 = vmul.f32 %v6140, %v6240
        %v6341 = vmul.f32 %v6141, %v6241
        %v6342 = vmul.f32 %v6142, %v6242
        %v6343 = vmul.f32 %v6143, %v6243
        %v6344 = vmul.f32 %v6144, %v6244
        %v6345 = vmul.f32 %v6145, %v6245
        %v6346 = vmul.f32 %v6146, %v6246
        %v6347 = vmul.f32 %v6147, %v6247
        %v6348 = vmul.f32 %v6148, %v6248
        %v6349 = vmul.f32 %v6149, %v6249
        %v6350 = vmul.f32 %v6150, %v6250
        %v6351 = vmul.f32 %v6151, %v6251
        %v6352 = vmul.f32 %v6152, %v6252
        %v6353 = vmul.f32 %v6153, %v6253
        %v6354 = vmul.f32 %v6154, %v6254
        %v6355 = vmul.f32 %v6155, %v6255
        %v6356 = vmul.f32 %v6156, %v6256
        %v6357 = vmul.f32 %v6157, %v6257
        %v6358 = vmul.f32 %v6158, %v6258
        %v6359 = vmul.f32 %v6159, %v6259
        %v6360 = vmul.f32 %v6160, %v6260
        %v6361 = vmul.f32 %v6161, %v6261
        %v6362 = vmul.f32 %v6162, %v6262
        %v6363 = vmul.f32 %v6163, %v6263
        %v6364 = vmul.f32 %v6164, %v6264
        %v6365 = vmul.f32 %v6165, %v6265
        %v6366 = vmul.f32 %v6166, %v6266
        %v6367 = vmul.f32 %v6167, %v6267
        %v6368 = vmul.f32 %v6168, %v6268
        %v6369 = vmul.f32 %v6169, %v6269
        %v6370 = vmul.f32 %v6170, %v6270
        %v6371 = vmul.f32 %v6171, %v6271
        %v6372 = vmul.f32 %v6172, %v6272
        %v6373 = vmul.f32 %v6173, %v6273
        %v6374 = vmul.f32 %v6174, %v6274
        %v6375 = vmul.f32 %v6175, %v6275
        %v6376 = vmul.f32 %v6176, %v6276
        %v6377 = vmul.f32 %v6177, %v6277
        %v6378 = vmul.f32 %v6178, %v6278
        %v6379 = vmul.f32 %v6179, %v6279
        %6380 = vst [vmem:[%s367] sm:$0xff] %v6280
        %6381 = vst [vmem:[%s367 + $0x8] sm:$0xff] %v6281
        %6382 = vst [vmem:[%s367 + $0x10] sm:$0xff] %v6282
        %6383 = vst [vmem:[%s367 + $0x18] sm:$0xff] %v6283
        %6384 = vst [vmem:[%s367 + $0x20] sm:$0xff] %v6284
        %6385 = vst [vmem:[%s367 + $0x28] sm:$0xff] %v6285
        %6386 = vst [vmem:[%s367 + $0x30] sm:$0xff] %v6286
        %6387 = vst [vmem:[%s367 + $0x38] sm:$0xff] %v6287
        %6388 = vst [vmem:[%s367 + $0x40] sm:$0xff] %v6288
        %6389 = vst [vmem:[%s367 + $0x48] sm:$0xff] %v6289
        %6390 = vst [vmem:[%s367 + $0x50] sm:$0xff] %v6290
        %6391 = vst [vmem:[%s367 + $0x58] sm:$0xff] %v6291
        %6392 = vst [vmem:[%s367 + $0x60] sm:$0xff] %v6292
        %6393 = vst [vmem:[%s367 + $0x68] sm:$0xff] %v6293
        %6394 = vst [vmem:[%s367 + $0x70] sm:$0xff] %v6294
        %6395 = vst [vmem:[%s367 + $0x78] sm:$0xff] %v6295
        %6396 = vst [vmem:[%s367 + $0x80] sm:$0xff] %v6296
        %6397 = vst [vmem:[%s367 + $0x88] sm:$0xff] %v6297
        %6398 = vst [vmem:[%s367 + $0x90] sm:$0xff] %v6298
        %6399 = vst [vmem:[%s367 + $0x98] sm:$0xff] %v6299
        %6400 = vst [vmem:[%s367 + $0xa0] sm:$0xff] %v6300
        %6401 = vst [vmem:[%s367 + $0xa8] sm:$0xff] %v6301
        %6402 = vst [vmem:[%s367 + $0xb0] sm:$0xff] %v6302
        %6403 = vst [vmem:[%s367 + $0xb8] sm:$0xff] %v6303
        %6404 = vst [vmem:[%s367 + $0xc0] sm:$0xff] %v6304
        %6405 = vst [vmem:[%s367 + $0xc8] sm:$0xff] %v6305
        %6406 = vst [vmem:[%s367 + $0xd0] sm:$0xff] %v6306
        %6407 = vst [vmem:[%s367 + $0xd8] sm:$0xff] %v6307
        %6408 = vst [vmem:[%s367 + $0xe0] sm:$0xff] %v6308
        %6409 = vst [vmem:[%s367 + $0xe8] sm:$0xff] %v6309
        %6410 = vst [vmem:[%s367 + $0xf0] sm:$0xff] %v6310
        %6411 = vst [vmem:[%s367 + $0xf8] sm:$0xff] %v6311
        %6412 = vst [vmem:[%s367 + $0x100] sm:$0xff] %v6312
        %6413 = vst [vmem:[%s367 + $0x108] sm:$0xff] %v6313
        %6414 = vst [vmem:[%s367 + $0x110] sm:$0xff] %v6314
        %6415 = vst [vmem:[%s367 + $0x118] sm:$0xff] %v6315
        %6416 = vst [vmem:[%s367 + $0x120] sm:$0xff] %v6316
        %6417 = vst [vmem:[%s367 + $0x128] sm:$0xff] %v6317
        %6418 = vst [vmem:[%s367 + $0x130] sm:$0xff] %v6318
        %6419 = vst [vmem:[%s367 + $0x138] sm:$0xff] %v6319
        %6420 = vst [vmem:[%s367 + $0x140] sm:$0xff] %v6320
        %6421 = vst [vmem:[%s367 + $0x148] sm:$0xff] %v6321
        %6422 = vst [vmem:[%s367 + $0x150] sm:$0xff] %v6322
        %6423 = vst [vmem:[%s367 + $0x158] sm:$0xff] %v6323
        %6424 = vst [vmem:[%s367 + $0x160] sm:$0xff] %v6324
        %6425 = vst [vmem:[%s367 + $0x168] sm:$0xff] %v6325
        %6426 = vst [vmem:[%s367 + $0x170] sm:$0xff] %v6326
        %6427 = vst [vmem:[%s367 + $0x178] sm:$0xff] %v6327
        %6428 = vst [vmem:[%s367 + $0x180] sm:$0xff] %v6328
        %6429 = vst [vmem:[%s367 + $0x188] sm:$0xff] %v6329
        %6430 = vst [vmem:[%s367 + $0x190] sm:$0xff] %v6330
        %6431 = vst [vmem:[%s367 + $0x198] sm:$0xff] %v6331
        %6432 = vst [vmem:[%s367 + $0x1a0] sm:$0xff] %v6332
        %6433 = vst [vmem:[%s367 + $0x1a8] sm:$0xff] %v6333
        %6434 = vst [vmem:[%s367 + $0x1b0] sm:$0xff] %v6334
        %6435 = vst [vmem:[%s367 + $0x1b8] sm:$0xff] %v6335
        %6436 = vst [vmem:[%s367 + $0x1c0] sm:$0xff] %v6336
        %6437 = vst [vmem:[%s367 + $0x1c8] sm:$0xff] %v6337
        %6438 = vst [vmem:[%s367 + $0x1d0] sm:$0xff] %v6338
        %6439 = vst [vmem:[%s367 + $0x1d8] sm:$0xff] %v6339
        %6440 = vst [vmem:[%s367 + $0x1e0] sm:$0xff] %v6340
        %6441 = vst [vmem:[%s367 + $0x1e8] sm:$0xff] %v6341
        %6442 = vst [vmem:[%s367 + $0x1f0] sm:$0xff] %v6342
        %6443 = vst [vmem:[%s367 + $0x1f8] sm:$0xff] %v6343
        %6444 = vst [vmem:[%s367 + $0x200] sm:$0xff] %v6344
        %6445 = vst [vmem:[%s367 + $0x208] sm:$0xff] %v6345
        %6446 = vst [vmem:[%s367 + $0x210] sm:$0xff] %v6346
        %6447 = vst [vmem:[%s367 + $0x218] sm:$0xff] %v6347
        %6448 = vst [vmem:[%s367 + $0x220] sm:$0xff] %v6348
        %6449 = vst [vmem:[%s367 + $0x228] sm:$0xff] %v6349
        %6450 = vst [vmem:[%s367 + $0x230] sm:$0xff] %v6350
        %6451 = vst [vmem:[%s367 + $0x238] sm:$0xff] %v6351
        %6452 = vst [vmem:[%s367 + $0x240] sm:$0xff] %v6352
        %6453 = vst [vmem:[%s367 + $0x248] sm:$0xff] %v6353
        %6454 = vst [vmem:[%s367 + $0x250] sm:$0xff] %v6354
        %6455 = vst [vmem:[%s367 + $0x258] sm:$0xff] %v6355
        %6456 = vst [vmem:[%s367 + $0x260] sm:$0xff] %v6356
        %6457 = vst [vmem:[%s367 + $0x268] sm:$0xff] %v6357
        %6458 = vst [vmem:[%s367 + $0x270] sm:$0xff] %v6358
        %6459 = vst [vmem:[%s367 + $0x278] sm:$0xff] %v6359
        %6460 = vst [vmem:[%s367 + $0x280] sm:$0xff] %v6360
        %6461 = vst [vmem:[%s367 + $0x288] sm:$0xff] %v6361
        %6462 = vst [vmem:[%s367 + $0x290] sm:$0xff] %v6362
        %6463 = vst [vmem:[%s367 + $0x298] sm:$0xff] %v6363
        %6464 = vst [vmem:[%s367 + $0x2a0] sm:$0xff] %v6364
        %6465 = vst [vmem:[%s367 + $0x2a8] sm:$0xff] %v6365
        %6466 = vst [vmem:[%s367 + $0x2b0] sm:$0xff] %v6366
        %6467 = vst [vmem:[%s367 + $0x2b8] sm:$0xff] %v6367
        %6468 = vst [vmem:[%s367 + $0x2c0] sm:$0xff] %v6368
        %6469 = vst [vmem:[%s367 + $0x2c8] sm:$0xff] %v6369
        %6470 = vst [vmem:[%s367 + $0x2d0] sm:$0xff] %v6370
        %6471 = vst [vmem:[%s367 + $0x2d8] sm:$0xff] %v6371
        %6472 = vst [vmem:[%s367 + $0x2e0] sm:$0xff] %v6372
        %6473 = vst [vmem:[%s367 + $0x2e8] sm:$0xff] %v6373
        %6474 = vst [vmem:[%s367 + $0x2f0] sm:$0xff] %v6374
        %6475 = vst [vmem:[%s367 + $0x2f8] sm:$0xff] %v6375
        %6476 = vst [vmem:[%s367 + $0x300] sm:$0xf] %v6376
        %6477 = vst [vmem:[%s367 + $0x308] sm:$0xf] %v6377
        %6478 = vst [vmem:[%s367 + $0x310] sm:$0xf] %v6378
        %6479 = vst [vmem:[%s367 + $0x318] sm:$0xf] %v6379
        %s6480 = sand.u32 %s167, 1
        %s6481 = scalar_lea.sflag [#allocation4], %s6480
        %s6482 = sand.u32 %s167, 1
        %s6483 = smul.addr %s6482, 800
        %s6484 = scalar_lea.vmem [#allocation12], %s6483
        // Predicated region
        $region69: #{tpu_custom_call.1} parent=43 // pred_check
          %p6485 = pneg %p177
        $region70: #{tpu_custom_call.1} parent=43 // pred_check_branch
          %6487 = sbr.rel (%p6485) target = $region72
        $region71: #{tpu_custom_call.1} parent=43 // pred_region
          %s6488 = smul.u32 4, %s23
          %6490 = vsyncadd %s6481, 0
          %s6491 = smul.addr %s6488, 8
          %s6492 = scalar_lea.hbm %s6, %s6491
          %s6493 = sshll.u32 %s6484, 4
          %s6494 = int_to_ptr.vmem [resolvable:$true] %s6493
          %s6495 = sshll.u32 %s6492, 4
          %s6496 = int_to_ptr.hbm [resolvable:$true] %s6495
          %6501 = dma.vmem_to_hbm [thread:$0]  %s6494, 12800, %s6496, %s6481, 512, 2048, 32
        $region72: #{tpu_custom_call.1} parent=43 // pred_fallthru
          _
      $region44: #{tpu_custom_call.1} parent=5 // pred_fallthru
        _
      %p6502 = scmp.le.s32.totalorder 2, %s18
      // Predicated region
      $region73: #{tpu_custom_call.1} parent=5 // pred_check
        %p6503 = pneg %p6502
      $region74: #{tpu_custom_call.1} parent=5 // pred_check_branch
        %6505 = sbr.rel (%p6503) target = $region76
      $region75: #{tpu_custom_call.1} parent=5 // pred_region
        %s6506 = ssub.s32 %s18, 2
        // Predicated region
        $region77: #{tpu_custom_call.1} parent=75 // pred_check
          %p6507 = pneg %p183
        $region78: #{tpu_custom_call.1} parent=75 // pred_check_branch
          %6509 = sbr.rel (%p6507) target = $region80
        $region79: #{tpu_custom_call.1} parent=75 // pred_region
          %s6510 = sand.u32 %s168, 1
          %s6511 = scalar_lea.sflag [#allocation4], %s6510
          %s6512 = sand.u32 %s168, 1
          %s6513 = smul.addr %s6512, 800
          %s6514 = scalar_lea.vmem [#allocation12], %s6513
          %6516 = dma.done %s6511, 12800
        $region80: #{tpu_custom_call.1} parent=75 // pred_fallthru
          _
      $region76: #{tpu_custom_call.1} parent=5 // pred_fallthru
        _
    $region6: #{tpu_custom_call.1} parent=1 // loop_footer
      %s22 = sadd.s32 1, %s18
    $region7: #{tpu_custom_call.1} parent=1 // loop_footer_branch
      %17 = sbr.rel target = $region3
    $region8: #{tpu_custom_call.1} parent=1 // loop_exit
      _
    %6517 = vsyncpa [#allocation3], 1
    %s6518 = scalar_lea.sflag [#allocation3], 1
    %6519 = vsyncpa %s6518, 1
    %6520 = vsyncpa [#allocation6], 1
    %6521 = vsyncpa [#allocation9], 1
    %6522 = vsyncpa [#allocation4], 1
    %s6523 = scalar_lea.sflag [#allocation4], 1
    %6524 = vsyncpa %s6523, 1

</llo_original>
